<compile_context>
chip_gen: v7x
topology: tpu7x:2x2x1
jax: 0.10.0
libtpu: 0.0.40
codegen_flags: <defaults>
</compile_context>

<pallas_src>
import math

import jax
import jax.numpy as jnp
from jax import lax
from jax.experimental import pallas as pl
from jax.experimental.pallas import tpu as pltpu


# ---------------------------------------------------------------------------
# Fused kernel
# ---------------------------------------------------------------------------
def _make_fused_kernel(T, B, H):
    NS = 2 * B          # a and b batched together (rows 0:B = a, B:2B = b)
    G = 4 * H           # gate width of one direction (PyTorch order i, f, g, o)

    def _gates(g, c):
        # g: (NS, 4H) pre-activation gates; c: (NS, H) previous cell state.
        sg = jax.nn.sigmoid(g)          # one EUP pass over the full vreg
        tg = jnp.tanh(g)                # one EUP pass over the full vreg
        i = sg[:, 0:H]
        f = sg[:, H:2 * H]
        gg = tg[:, 2 * H:3 * H]
        o = sg[:, 3 * H:4 * H]
        c_new = f * c + i * gg
        h_new = o * jnp.tanh(c_new)
        return h_new, c_new

    def kernel(x_ref, wih0_ref, whh0_ref, b0_ref,
               wih1_ref, whh1_ref, b1_ref,
               fcw_ref, fcb_ref, out_ref, hsf_ref, hsb_ref):
        f32 = jnp.float32

        def run_layer(gx, whh_f, whh_b, store_hidden):
            # gx: (T*NS, 8H) precomputed input projection (+bias) for both dirs.
            h_f = jnp.zeros((NS, H), f32)
            c_f = jnp.zeros((NS, H), f32)
            h_b = jnp.zeros((NS, H), f32)
            c_b = jnp.zeros((NS, H), f32)
            for s in range(T):                      # fully unrolled (T static)
                rf = s * NS                         # forward reads time s
                rb = (T - 1 - s) * NS               # backward reads time T-1-s
                g_f = gx[rf:rf + NS, 0:G] + jnp.dot(
                    h_f, whh_f, preferred_element_type=f32)
                g_b = gx[rb:rb + NS, G:2 * G] + jnp.dot(
                    h_b, whh_b, preferred_element_type=f32)
                h_f, c_f = _gates(g_f, c_f)
                h_b, c_b = _gates(g_b, c_b)
                if store_hidden:                    # layer-0 hidden seq -> VMEM
                    hsf_ref[rf:rf + NS, :] = h_f
                    hsb_ref[rb:rb + NS, :] = h_b
            return c_f, c_b

        # ----- layer 0: hoisted input projection (both directions, one matmul)
        gx0 = (jnp.dot(x_ref[...], wih0_ref[...], preferred_element_type=f32)
               + b0_ref[...])                        # (T*NS, 8H)
        c0_f, c0_b = run_layer(gx0, whh0_ref[0], whh0_ref[1], True)

        # ----- layer 1: input = [h_fwd | h_bwd]; projection split by source half
        gx1 = (jnp.dot(hsf_ref[...], wih1_ref[0], preferred_element_type=f32)
               + jnp.dot(hsb_ref[...], wih1_ref[1], preferred_element_type=f32)
               + b1_ref[...])                        # (T*NS, 8H)
        c1_f, c1_b = run_layer(gx1, whh1_ref[0], whh1_ref[1], False)

        # ----- FC + ReLU on the concatenated final cell states.
        # fc-input column blocks (PyTorch c_n order, then [v1 | v2]):
        #   0:a_l0f 1:a_l0b 2:a_l1f 3:a_l1b 4:b_l0f 5:b_l0b 6:b_l1f 7:b_l1b
        blocks = (c0_f, c0_b, c1_f, c1_b)            # each (2B, H): rows 0:B = a
        y = jnp.zeros((B, H), f32)
        for k, blk in enumerate(blocks):
            y = y + jnp.dot(blk[0:B, :],
                            fcw_ref[k * H:(k + 1) * H, :],
                            preferred_element_type=f32)
            y = y + jnp.dot(blk[B:2 * B, :],
                            fcw_ref[(4 + k) * H:(5 + k) * H, :],
                            preferred_element_type=f32)
        out_ref[...] = jnp.maximum(y + fcb_ref[...], 0.0)

    return kernel


# ---------------------------------------------------------------------------
# Wrapper (one pallas_call for the whole module)
# ---------------------------------------------------------------------------
def lstm_module_forward(params, a, b):
    B, T, H = a.shape
    NS = 2 * B
    # Batch a and b together, go time-major, flatten rows to (T*2B, H).
    x = jnp.concatenate([a, b], axis=0)                       # (2B, T, H)
    x = jnp.transpose(x, (1, 0, 2)).reshape(T * NS, H)        # row = t*2B + n

    kernel = _make_fused_kernel(T, B, H)
    vmem = pl.BlockSpec(memory_space=pltpu.MemorySpace.VMEM)
    return pl.pallas_call(
        kernel,
        out_shape=jax.ShapeDtypeStruct((B, H), jnp.float32),
        in_specs=[vmem] * 9,
        out_specs=vmem,
        scratch_shapes=[pltpu.VMEM((T * NS, H), jnp.float32),   # layer-0 h_fwd seq
                        pltpu.VMEM((T * NS, H), jnp.float32)],  # layer-0 h_bwd seq
    )(x, params["wih0"], params["whh0"], params["b0"],
      params["wih1"], params["whh1"], params["b1"],
      params["fc_w"], params["fc_b"])


# ---------------------------------------------------------------------------
# Parameters (generated in PyTorch shapes, then packed into the fused layout)
# ---------------------------------------------------------------------------
def init_params(key, hidden_dim):
    H = hidden_dim
    G = 4 * H
    k = 1.0 / math.sqrt(H)

    def uni(kk, shape, scale):
        return jax.random.uniform(kk, shape, jnp.float32, -scale, scale)

    keys = iter(jax.random.split(key, 18))

    # layer 0 (input size H); directions: 0 = fwd, 1 = bwd
    wih0_d, whh0_d, b0_d = [], [], []
    for _ in range(2):
        w_ih = uni(next(keys), (G, H), k)           # PyTorch weight_ih_l0(_rev)
        w_hh = uni(next(keys), (G, H), k)
        b_ih = uni(next(keys), (G,), k)
        b_hh = uni(next(keys), (G,), k)
        wih0_d.append(w_ih.T)                       # (H, 4H)
        whh0_d.append(w_hh.T)                       # (H, 4H)
        b0_d.append(b_ih + b_hh)
    wih0 = jnp.concatenate(wih0_d, axis=1)          # (H, 8H)   [fwd | bwd] gates
    whh0 = jnp.stack(whh0_d, axis=0)                # (2, H, 4H)
    b0 = jnp.concatenate(b0_d).reshape(1, 2 * G)

    # layer 1 (input size 2H)
    wihT_d, whh1_d, b1_d = [], [], []
    for _ in range(2):
        w_ih = uni(next(keys), (G, 2 * H), k)
        w_hh = uni(next(keys), (G, H), k)
        b_ih = uni(next(keys), (G,), k)
        b_hh = uni(next(keys), (G,), k)
        wihT_d.append(w_ih.T)                       # (2H, 4H)
        whh1_d.append(w_hh.T)
        b1_d.append(b_ih + b_hh)
    # split by input-source half: [0] applied to fwd-origin hidden, [1] to bwd
    wih1 = jnp.stack(
        [jnp.concatenate([wihT_d[0][:H], wihT_d[1][:H]], axis=1),
         jnp.concatenate([wihT_d[0][H:], wihT_d[1][H:]], axis=1)], axis=0)  # (2,H,8H)
    whh1 = jnp.stack(whh1_d, axis=0)                # (2, H, 4H)
    b1 = jnp.concatenate(b1_d).reshape(1, 2 * G)

    # FC: nn.Linear(8H, H)
    in_fc = 8 * H
    kf = 1.0 / math.sqrt(in_fc)
    w_fc = uni(next(keys), (H, in_fc), kf)          # PyTorch (out, in)
    b_fc = uni(next(keys), (H,), kf)
    return {"wih0": wih0, "whh0": whh0, "b0": b0,
            "wih1": wih1, "whh1": whh1, "b1": b1,
            "fc_w": w_fc.T, "fc_b": b_fc.reshape(1, H)}


# ---------------------------------------------------------------------------
# Pure-JAX reference (module semantics) for numerical validation
# ---------------------------------------------------------------------------
def _ref_bilstm_cell_states(params, x_bth):
    H = x_bth.shape[-1]
    G = 4 * H
    x = jnp.transpose(x_bth, (1, 0, 2))             # (T, B, H)

    def run_dir(x_seq, w_ih, w_hh, bias):
        Hh = w_hh.shape[0]
        N = x_seq.shape[1]

        def step(carry, x_t):
            h, c = carry
            g = x_t @ w_ih + h @ w_hh + bias
            i = jax.nn.sigmoid(g[:, :Hh])
            f = jax.nn.sigmoid(g[:, Hh:2 * Hh])
            gg = jnp.tanh(g[:, 2 * Hh:3 * Hh])
            o = jax.nn.sigmoid(g[:, 3 * Hh:])
            c = f * c + i * gg
            h = o * jnp.tanh(c)
            return (h, c), h

        init = (jnp.zeros((N, Hh), jnp.float32), jnp.zeros((N, Hh), jnp.float32))
        (_, c_T), hs = lax.scan(step, init, x_seq)
        return hs, c_T

    # layer 0
    hs_f, c0f = run_dir(x, params["wih0"][:, :G], params["whh0"][0],
                        params["b0"][0, :G])
    hs_b, c0b = run_dir(x[::-1], params["wih0"][:, G:], params["whh0"][1],
                        params["b0"][0, G:])
    x1 = jnp.concatenate([hs_f, hs_b[::-1]], axis=-1)          # (T, B, 2H)

    # layer 1 (reassemble (2H, 4H) per-direction input weights)
    w1f = jnp.concatenate([params["wih1"][0][:, :G], params["wih1"][1][:, :G]], axis=0)
    w1b = jnp.concatenate([params["wih1"][0][:, G:], params["wih1"][1][:, G:]], axis=0)
    _, c1f = run_dir(x1, w1f, params["whh1"][0], params["b1"][0, :G])
    _, c1b = run_dir(x1[::-1], w1b, params["whh1"][1], params["b1"][0, G:])

    return jnp.concatenate([c0f, c0b, c1f, c1b], axis=-1)      # (B, 4H)


def reference_forward(params, a, b):
    v1 = _ref_bilstm_cell_states(params, a)
    v2 = _ref_bilstm_cell_states(params, b)
    fcin = jnp.concatenate([v1, v2], axis=1)
    return jnp.maximum(fcin @ params["fc_w"] + params["fc_b"], 0.0)


# ---------------------------------------------------------------------------
if __name__ == "__main__":
    B, T, H = 2, 8, 32
    key = jax.random.PRNGKey(0)
    kp, ka, kb = jax.random.split(key, 3)
    params = init_params(kp, H)
    a = jax.random.normal(ka, (B, T, H), jnp.float32)
    b = jax.random.normal(kb, (B, T, H), jnp.float32)

    fwd = jax.jit(lstm_module_forward)
    out = jax.block_until_ready(fwd(params, a, b))
    assert out.shape == (B, H), out.shape

    ref = reference_forward(params, a, b)
    err = float(jnp.max(jnp.abs(out - ref)))
    assert jnp.allclose(out, ref, rtol=1e-4, atol=1e-4), err
    print("KERNEL_OK")
</pallas_src>

<mosaic_0001>
module attributes {stable_mosaic.version = 11 : i64} {
  func.func @kernel(%arg0: memref<32x32xf32, #tpu.memory_space<vmem>>, %arg1: memref<32x256xf32, #tpu.memory_space<vmem>>, %arg2: memref<2x32x128xf32, #tpu.memory_space<vmem>>, %arg3: memref<1x256xf32, #tpu.memory_space<vmem>>, %arg4: memref<2x32x256xf32, #tpu.memory_space<vmem>>, %arg5: memref<2x32x128xf32, #tpu.memory_space<vmem>>, %arg6: memref<1x256xf32, #tpu.memory_space<vmem>>, %arg7: memref<256x32xf32, #tpu.memory_space<vmem>>, %arg8: memref<1x32xf32, #tpu.memory_space<vmem>>, %arg9: memref<2x32xf32, #tpu.memory_space<vmem>>, %arg10: memref<32x32xf32, #tpu.memory_space<vmem>>, %arg11: memref<32x32xf32, #tpu.memory_space<vmem>>) attributes {dimension_semantics = [], scalar_prefetch = 0 : i64, scratch_operands = 2 : i64, tpu.core_type = #tpu.core_type<tc>} {
    %c0 = arith.constant 0 : index
    %c0_0 = arith.constant 0 : index
    %0 = vector.load %arg0[%c0, %c0_0] : memref<32x32xf32, #tpu.memory_space<vmem>>, vector<32x32xf32>
    %c0_1 = arith.constant 0 : index
    %c0_2 = arith.constant 0 : index
    %1 = vector.load %arg1[%c0_1, %c0_2] : memref<32x256xf32, #tpu.memory_space<vmem>>, vector<32x256xf32>
    %cst = arith.constant dense<0.000000e+00> : vector<32x256xf32>
    %2 = tpu.matmul %0, %1, %cst {dimension_numbers = #tpu.dot_dimension_numbers<[1], [0], [0], [1], [0, 0, 1, 1], [], []>} : vector<32x32xf32>, vector<32x256xf32>, vector<32x256xf32> -> vector<32x256xf32>
    %c0_3 = arith.constant 0 : index
    %c0_4 = arith.constant 0 : index
    %3 = vector.load %arg3[%c0_3, %c0_4] : memref<1x256xf32, #tpu.memory_space<vmem>>, vector<1x256xf32>
    %4 = vector.broadcast %3 : vector<1x256xf32> to vector<32x256xf32>
    %5 = arith.addf %2, %4 : vector<32x256xf32>
    %c0_5 = arith.constant 0 : index
    %c0_6 = arith.constant 0 : index
    %c0_7 = arith.constant 0 : index
    %6 = vector.load %arg2[%c0_5, %c0_6, %c0_7] : memref<2x32x128xf32, #tpu.memory_space<vmem>>, vector<1x32x128xf32>
    %7 = vector.shape_cast %6 : vector<1x32x128xf32> to vector<32x128xf32>
    %c1 = arith.constant 1 : index
    %c0_8 = arith.constant 0 : index
    %c0_9 = arith.constant 0 : index
    %8 = vector.load %arg2[%c1, %c0_8, %c0_9] : memref<2x32x128xf32, #tpu.memory_space<vmem>>, vector<1x32x128xf32>
    %9 = vector.shape_cast %8 : vector<1x32x128xf32> to vector<32x128xf32>
    %cst_10 = arith.constant 0.000000e+00 : f32
    %10 = vector.broadcast %cst_10 : f32 to vector<4x32xf32>
    %cst_11 = arith.constant 0.000000e+00 : f32
    %11 = vector.broadcast %cst_11 : f32 to vector<4x32xf32>
    %cst_12 = arith.constant 0.000000e+00 : f32
    %12 = vector.broadcast %cst_12 : f32 to vector<4x32xf32>
    %cst_13 = arith.constant 0.000000e+00 : f32
    %13 = vector.broadcast %cst_13 : f32 to vector<4x32xf32>
    %14 = vector.extract_strided_slice %5 {offsets = [0, 0], sizes = [4, 128], strides = [1, 1]} : vector<32x256xf32> to vector<4x128xf32>
    %cst_14 = arith.constant dense<0.000000e+00> : vector<4x128xf32>
    %15 = tpu.matmul %10, %7, %cst_14 {dimension_numbers = #tpu.dot_dimension_numbers<[1], [0], [0], [1], [0, 0, 1, 1], [], []>} : vector<4x32xf32>, vector<32x128xf32>, vector<4x128xf32> -> vector<4x128xf32>
    %16 = arith.addf %14, %15 : vector<4x128xf32>
    %17 = vector.extract_strided_slice %5 {offsets = [28, 128], sizes = [4, 128], strides = [1, 1]} : vector<32x256xf32> to vector<4x128xf32>
    %cst_15 = arith.constant dense<0.000000e+00> : vector<4x128xf32>
    %18 = tpu.matmul %12, %9, %cst_15 {dimension_numbers = #tpu.dot_dimension_numbers<[1], [0], [0], [1], [0, 0, 1, 1], [], []>} : vector<4x32xf32>, vector<32x128xf32>, vector<4x128xf32> -> vector<4x128xf32>
    %19 = arith.addf %17, %18 : vector<4x128xf32>
    %20 = arith.negf %16 : vector<4x128xf32>
    %21 = math.exp %20 : vector<4x128xf32>
    %cst_16 = arith.constant 1.000000e+00 : f32
    %22 = vector.broadcast %cst_16 : f32 to vector<4x128xf32>
    %23 = arith.addf %22, %21 : vector<4x128xf32>
    %24 = arith.divf %22, %23 : vector<4x128xf32>
    %25 = math.tanh %16 : vector<4x128xf32>
    %26 = vector.extract_strided_slice %24 {offsets = [0, 0], sizes = [4, 32], strides = [1, 1]} : vector<4x128xf32> to vector<4x32xf32>
    %27 = vector.extract_strided_slice %24 {offsets = [0, 32], sizes = [4, 32], strides = [1, 1]} : vector<4x128xf32> to vector<4x32xf32>
    %28 = vector.extract_strided_slice %25 {offsets = [0, 64], sizes = [4, 32], strides = [1, 1]} : vector<4x128xf32> to vector<4x32xf32>
    %29 = vector.extract_strided_slice %24 {offsets = [0, 96], sizes = [4, 32], strides = [1, 1]} : vector<4x128xf32> to vector<4x32xf32>
    %30 = arith.mulf %27, %11 : vector<4x32xf32>
    %31 = arith.mulf %26, %28 : vector<4x32xf32>
    %32 = arith.addf %30, %31 : vector<4x32xf32>
    %33 = math.tanh %32 : vector<4x32xf32>
    %34 = arith.mulf %29, %33 : vector<4x32xf32>
    %35 = arith.negf %19 : vector<4x128xf32>
    %36 = math.exp %35 : vector<4x128xf32>
    %cst_17 = arith.constant 1.000000e+00 : f32
    %37 = vector.broadcast %cst_17 : f32 to vector<4x128xf32>
    %38 = arith.addf %37, %36 : vector<4x128xf32>
    %39 = arith.divf %37, %38 : vector<4x128xf32>
    %40 = math.tanh %19 : vector<4x128xf32>
    %41 = vector.extract_strided_slice %39 {offsets = [0, 0], sizes = [4, 32], strides = [1, 1]} : vector<4x128xf32> to vector<4x32xf32>
    %42 = vector.extract_strided_slice %39 {offsets = [0, 32], sizes = [4, 32], strides = [1, 1]} : vector<4x128xf32> to vector<4x32xf32>
    %43 = vector.extract_strided_slice %40 {offsets = [0, 64], sizes = [4, 32], strides = [1, 1]} : vector<4x128xf32> to vector<4x32xf32>
    %44 = vector.extract_strided_slice %39 {offsets = [0, 96], sizes = [4, 32], strides = [1, 1]} : vector<4x128xf32> to vector<4x32xf32>
    %45 = arith.mulf %42, %13 : vector<4x32xf32>
    %46 = arith.mulf %41, %43 : vector<4x32xf32>
    %47 = arith.addf %45, %46 : vector<4x32xf32>
    %48 = math.tanh %47 : vector<4x32xf32>
    %49 = arith.mulf %44, %48 : vector<4x32xf32>
    %c0_18 = arith.constant 0 : index
    %c0_19 = arith.constant 0 : index
    %50 = vector.load %arg10[%c0_18, %c0_19] : memref<32x32xf32, #tpu.memory_space<vmem>>, vector<4x32xf32>
    tpu.vector_store %arg10[%c0_18, %c0_19], %34 {strides = array<i32>} : memref<32x32xf32, #tpu.memory_space<vmem>>, vector<4x32xf32>,
    %c28 = arith.constant 28 : index
    %c0_20 = arith.constant 0 : index
    %51 = vector.load %arg11[%c28, %c0_20] : memref<32x32xf32, #tpu.memory_space<vmem>>, vector<4x32xf32>
    tpu.vector_store %arg11[%c28, %c0_20], %49 {strides = array<i32>} : memref<32x32xf32, #tpu.memory_space<vmem>>, vector<4x32xf32>,
    %52 = vector.extract_strided_slice %5 {offsets = [4, 0], sizes = [4, 128], strides = [1, 1]} : vector<32x256xf32> to vector<4x128xf32>
    %cst_21 = arith.constant dense<0.000000e+00> : vector<4x128xf32>
    %53 = tpu.matmul %34, %7, %cst_21 {dimension_numbers = #tpu.dot_dimension_numbers<[1], [0], [0], [1], [0, 0, 1, 1], [], []>} : vector<4x32xf32>, vector<32x128xf32>, vector<4x128xf32> -> vector<4x128xf32>
    %54 = arith.addf %52, %53 : vector<4x128xf32>
    %55 = vector.extract_strided_slice %5 {offsets = [24, 128], sizes = [4, 128], strides = [1, 1]} : vector<32x256xf32> to vector<4x128xf32>
    %cst_22 = arith.constant dense<0.000000e+00> : vector<4x128xf32>
    %56 = tpu.matmul %49, %9, %cst_22 {dimension_numbers = #tpu.dot_dimension_numbers<[1], [0], [0], [1], [0, 0, 1, 1], [], []>} : vector<4x32xf32>, vector<32x128xf32>, vector<4x128xf32> -> vector<4x128xf32>
    %57 = arith.addf %55, %56 : vector<4x128xf32>
    %58 = arith.negf %54 : vector<4x128xf32>
    %59 = math.exp %58 : vector<4x128xf32>
    %cst_23 = arith.constant 1.000000e+00 : f32
    %60 = vector.broadcast %cst_23 : f32 to vector<4x128xf32>
    %61 = arith.addf %60, %59 : vector<4x128xf32>
    %62 = arith.divf %60, %61 : vector<4x128xf32>
    %63 = math.tanh %54 : vector<4x128xf32>
    %64 = vector.extract_strided_slice %62 {offsets = [0, 0], sizes = [4, 32], strides = [1, 1]} : vector<4x128xf32> to vector<4x32xf32>
    %65 = vector.extract_strided_slice %62 {offsets = [0, 32], sizes = [4, 32], strides = [1, 1]} : vector<4x128xf32> to vector<4x32xf32>
    %66 = vector.extract_strided_slice %63 {offsets = [0, 64], sizes = [4, 32], strides = [1, 1]} : vector<4x128xf32> to vector<4x32xf32>
    %67 = vector.extract_strided_slice %62 {offsets = [0, 96], sizes = [4, 32], strides = [1, 1]} : vector<4x128xf32> to vector<4x32xf32>
    %68 = arith.mulf %65, %32 : vector<4x32xf32>
    %69 = arith.mulf %64, %66 : vector<4x32xf32>
    %70 = arith.addf %68, %69 : vector<4x32xf32>
    %71 = math.tanh %70 : vector<4x32xf32>
    %72 = arith.mulf %67, %71 : vector<4x32xf32>
    %73 = arith.negf %57 : vector<4x128xf32>
    %74 = math.exp %73 : vector<4x128xf32>
    %cst_24 = arith.constant 1.000000e+00 : f32
    %75 = vector.broadcast %cst_24 : f32 to vector<4x128xf32>
    %76 = arith.addf %75, %74 : vector<4x128xf32>
    %77 = arith.divf %75, %76 : vector<4x128xf32>
    %78 = math.tanh %57 : vector<4x128xf32>
    %79 = vector.extract_strided_slice %77 {offsets = [0, 0], sizes = [4, 32], strides = [1, 1]} : vector<4x128xf32> to vector<4x32xf32>
    %80 = vector.extract_strided_slice %77 {offsets = [0, 32], sizes = [4, 32], strides = [1, 1]} : vector<4x128xf32> to vector<4x32xf32>
    %81 = vector.extract_strided_slice %78 {offsets = [0, 64], sizes = [4, 32], strides = [1, 1]} : vector<4x128xf32> to vector<4x32xf32>
    %82 = vector.extract_strided_slice %77 {offsets = [0, 96], sizes = [4, 32], strides = [1, 1]} : vector<4x128xf32> to vector<4x32xf32>
    %83 = arith.mulf %80, %47 : vector<4x32xf32>
    %84 = arith.mulf %79, %81 : vector<4x32xf32>
    %85 = arith.addf %83, %84 : vector<4x32xf32>
    %86 = math.tanh %85 : vector<4x32xf32>
    %87 = arith.mulf %82, %86 : vector<4x32xf32>
    %c4 = arith.constant 4 : index
    %c0_25 = arith.constant 0 : index
    %88 = vector.load %arg10[%c4, %c0_25] : memref<32x32xf32, #tpu.memory_space<vmem>>, vector<4x32xf32>
    tpu.vector_store %arg10[%c4, %c0_25], %72 {strides = array<i32>} : memref<32x32xf32, #tpu.memory_space<vmem>>, vector<4x32xf32>,
    %c24 = arith.constant 24 : index
    %c0_26 = arith.constant 0 : index
    %89 = vector.load %arg11[%c24, %c0_26] : memref<32x32xf32, #tpu.memory_space<vmem>>, vector<4x32xf32>
    tpu.vector_store %arg11[%c24, %c0_26], %87 {strides = array<i32>} : memref<32x32xf32, #tpu.memory_space<vmem>>, vector<4x32xf32>,
    %90 = vector.extract_strided_slice %5 {offsets = [8, 0], sizes = [4, 128], strides = [1, 1]} : vector<32x256xf32> to vector<4x128xf32>
    %cst_27 = arith.constant dense<0.000000e+00> : vector<4x128xf32>
    %91 = tpu.matmul %72, %7, %cst_27 {dimension_numbers = #tpu.dot_dimension_numbers<[1], [0], [0], [1], [0, 0, 1, 1], [], []>} : vector<4x32xf32>, vector<32x128xf32>, vector<4x128xf32> -> vector<4x128xf32>
    %92 = arith.addf %90, %91 : vector<4x128xf32>
    %93 = vector.extract_strided_slice %5 {offsets = [20, 128], sizes = [4, 128], strides = [1, 1]} : vector<32x256xf32> to vector<4x128xf32>
    %cst_28 = arith.constant dense<0.000000e+00> : vector<4x128xf32>
    %94 = tpu.matmul %87, %9, %cst_28 {dimension_numbers = #tpu.dot_dimension_numbers<[1], [0], [0], [1], [0, 0, 1, 1], [], []>} : vector<4x32xf32>, vector<32x128xf32>, vector<4x128xf32> -> vector<4x128xf32>
    %95 = arith.addf %93, %94 : vector<4x128xf32>
    %96 = arith.negf %92 : vector<4x128xf32>
    %97 = math.exp %96 : vector<4x128xf32>
    %cst_29 = arith.constant 1.000000e+00 : f32
    %98 = vector.broadcast %cst_29 : f32 to vector<4x128xf32>
    %99 = arith.addf %98, %97 : vector<4x128xf32>
    %100 = arith.divf %98, %99 : vector<4x128xf32>
    %101 = math.tanh %92 : vector<4x128xf32>
    %102 = vector.extract_strided_slice %100 {offsets = [0, 0], sizes = [4, 32], strides = [1, 1]} : vector<4x128xf32> to vector<4x32xf32>
    %103 = vector.extract_strided_slice %100 {offsets = [0, 32], sizes = [4, 32], strides = [1, 1]} : vector<4x128xf32> to vector<4x32xf32>
    %104 = vector.extract_strided_slice %101 {offsets = [0, 64], sizes = [4, 32], strides = [1, 1]} : vector<4x128xf32> to vector<4x32xf32>
    %105 = vector.extract_strided_slice %100 {offsets = [0, 96], sizes = [4, 32], strides = [1, 1]} : vector<4x128xf32> to vector<4x32xf32>
    %106 = arith.mulf %103, %70 : vector<4x32xf32>
    %107 = arith.mulf %102, %104 : vector<4x32xf32>
    %108 = arith.addf %106, %107 : vector<4x32xf32>
    %109 = math.tanh %108 : vector<4x32xf32>
    %110 = arith.mulf %105, %109 : vector<4x32xf32>
    %111 = arith.negf %95 : vector<4x128xf32>
    %112 = math.exp %111 : vector<4x128xf32>
    %cst_30 = arith.constant 1.000000e+00 : f32
    %113 = vector.broadcast %cst_30 : f32 to vector<4x128xf32>
    %114 = arith.addf %113, %112 : vector<4x128xf32>
    %115 = arith.divf %113, %114 : vector<4x128xf32>
    %116 = math.tanh %95 : vector<4x128xf32>
    %117 = vector.extract_strided_slice %115 {offsets = [0, 0], sizes = [4, 32], strides = [1, 1]} : vector<4x128xf32> to vector<4x32xf32>
    %118 = vector.extract_strided_slice %115 {offsets = [0, 32], sizes = [4, 32], strides = [1, 1]} : vector<4x128xf32> to vector<4x32xf32>
    %119 = vector.extract_strided_slice %116 {offsets = [0, 64], sizes = [4, 32], strides = [1, 1]} : vector<4x128xf32> to vector<4x32xf32>
    %120 = vector.extract_strided_slice %115 {offsets = [0, 96], sizes = [4, 32], strides = [1, 1]} : vector<4x128xf32> to vector<4x32xf32>
    %121 = arith.mulf %118, %85 : vector<4x32xf32>
    %122 = arith.mulf %117, %119 : vector<4x32xf32>
    %123 = arith.addf %121, %122 : vector<4x32xf32>
    %124 = math.tanh %123 : vector<4x32xf32>
    %125 = arith.mulf %120, %124 : vector<4x32xf32>
    %c8 = arith.constant 8 : index
    %c0_31 = arith.constant 0 : index
    %126 = vector.load %arg10[%c8, %c0_31] : memref<32x32xf32, #tpu.memory_space<vmem>>, vector<4x32xf32>
    tpu.vector_store %arg10[%c8, %c0_31], %110 {strides = array<i32>} : memref<32x32xf32, #tpu.memory_space<vmem>>, vector<4x32xf32>,
    %c20 = arith.constant 20 : index
    %c0_32 = arith.constant 0 : index
    %127 = vector.load %arg11[%c20, %c0_32] : memref<32x32xf32, #tpu.memory_space<vmem>>, vector<4x32xf32>
    tpu.vector_store %arg11[%c20, %c0_32], %125 {strides = array<i32>} : memref<32x32xf32, #tpu.memory_space<vmem>>, vector<4x32xf32>,
    %128 = vector.extract_strided_slice %5 {offsets = [12, 0], sizes = [4, 128], strides = [1, 1]} : vector<32x256xf32> to vector<4x128xf32>
    %cst_33 = arith.constant dense<0.000000e+00> : vector<4x128xf32>
    %129 = tpu.matmul %110, %7, %cst_33 {dimension_numbers = #tpu.dot_dimension_numbers<[1], [0], [0], [1], [0, 0, 1, 1], [], []>} : vector<4x32xf32>, vector<32x128xf32>, vector<4x128xf32> -> vector<4x128xf32>
    %130 = arith.addf %128, %129 : vector<4x128xf32>
    %131 = vector.extract_strided_slice %5 {offsets = [16, 128], sizes = [4, 128], strides = [1, 1]} : vector<32x256xf32> to vector<4x128xf32>
    %cst_34 = arith.constant dense<0.000000e+00> : vector<4x128xf32>
    %132 = tpu.matmul %125, %9, %cst_34 {dimension_numbers = #tpu.dot_dimension_numbers<[1], [0], [0], [1], [0, 0, 1, 1], [], []>} : vector<4x32xf32>, vector<32x128xf32>, vector<4x128xf32> -> vector<4x128xf32>
    %133 = arith.addf %131, %132 : vector<4x128xf32>
    %134 = arith.negf %130 : vector<4x128xf32>
    %135 = math.exp %134 : vector<4x128xf32>
    %cst_35 = arith.constant 1.000000e+00 : f32
    %136 = vector.broadcast %cst_35 : f32 to vector<4x128xf32>
    %137 = arith.addf %136, %135 : vector<4x128xf32>
    %138 = arith.divf %136, %137 : vector<4x128xf32>
    %139 = math.tanh %130 : vector<4x128xf32>
    %140 = vector.extract_strided_slice %138 {offsets = [0, 0], sizes = [4, 32], strides = [1, 1]} : vector<4x128xf32> to vector<4x32xf32>
    %141 = vector.extract_strided_slice %138 {offsets = [0, 32], sizes = [4, 32], strides = [1, 1]} : vector<4x128xf32> to vector<4x32xf32>
    %142 = vector.extract_strided_slice %139 {offsets = [0, 64], sizes = [4, 32], strides = [1, 1]} : vector<4x128xf32> to vector<4x32xf32>
    %143 = vector.extract_strided_slice %138 {offsets = [0, 96], sizes = [4, 32], strides = [1, 1]} : vector<4x128xf32> to vector<4x32xf32>
    %144 = arith.mulf %141, %108 : vector<4x32xf32>
    %145 = arith.mulf %140, %142 : vector<4x32xf32>
    %146 = arith.addf %144, %145 : vector<4x32xf32>
    %147 = math.tanh %146 : vector<4x32xf32>
    %148 = arith.mulf %143, %147 : vector<4x32xf32>
    %149 = arith.negf %133 : vector<4x128xf32>
    %150 = math.exp %149 : vector<4x128xf32>
    %cst_36 = arith.constant 1.000000e+00 : f32
    %151 = vector.broadcast %cst_36 : f32 to vector<4x128xf32>
    %152 = arith.addf %151, %150 : vector<4x128xf32>
    %153 = arith.divf %151, %152 : vector<4x128xf32>
    %154 = math.tanh %133 : vector<4x128xf32>
    %155 = vector.extract_strided_slice %153 {offsets = [0, 0], sizes = [4, 32], strides = [1, 1]} : vector<4x128xf32> to vector<4x32xf32>
    %156 = vector.extract_strided_slice %153 {offsets = [0, 32], sizes = [4, 32], strides = [1, 1]} : vector<4x128xf32> to vector<4x32xf32>
    %157 = vector.extract_strided_slice %154 {offsets = [0, 64], sizes = [4, 32], strides = [1, 1]} : vector<4x128xf32> to vector<4x32xf32>
    %158 = vector.extract_strided_slice %153 {offsets = [0, 96], sizes = [4, 32], strides = [1, 1]} : vector<4x128xf32> to vector<4x32xf32>
    %159 = arith.mulf %156, %123 : vector<4x32xf32>
    %160 = arith.mulf %155, %157 : vector<4x32xf32>
    %161 = arith.addf %159, %160 : vector<4x32xf32>
    %162 = math.tanh %161 : vector<4x32xf32>
    %163 = arith.mulf %158, %162 : vector<4x32xf32>
    %c12 = arith.constant 12 : index
    %c0_37 = arith.constant 0 : index
    %164 = vector.load %arg10[%c12, %c0_37] : memref<32x32xf32, #tpu.memory_space<vmem>>, vector<4x32xf32>
    tpu.vector_store %arg10[%c12, %c0_37], %148 {strides = array<i32>} : memref<32x32xf32, #tpu.memory_space<vmem>>, vector<4x32xf32>,
    %c16 = arith.constant 16 : index
    %c0_38 = arith.constant 0 : index
    %165 = vector.load %arg11[%c16, %c0_38] : memref<32x32xf32, #tpu.memory_space<vmem>>, vector<4x32xf32>
    tpu.vector_store %arg11[%c16, %c0_38], %163 {strides = array<i32>} : memref<32x32xf32, #tpu.memory_space<vmem>>, vector<4x32xf32>,
    %166 = vector.extract_strided_slice %5 {offsets = [16, 0], sizes = [4, 128], strides = [1, 1]} : vector<32x256xf32> to vector<4x128xf32>
    %cst_39 = arith.constant dense<0.000000e+00> : vector<4x128xf32>
    %167 = tpu.matmul %148, %7, %cst_39 {dimension_numbers = #tpu.dot_dimension_numbers<[1], [0], [0], [1], [0, 0, 1, 1], [], []>} : vector<4x32xf32>, vector<32x128xf32>, vector<4x128xf32> -> vector<4x128xf32>
    %168 = arith.addf %166, %167 : vector<4x128xf32>
    %169 = vector.extract_strided_slice %5 {offsets = [12, 128], sizes = [4, 128], strides = [1, 1]} : vector<32x256xf32> to vector<4x128xf32>
    %cst_40 = arith.constant dense<0.000000e+00> : vector<4x128xf32>
    %170 = tpu.matmul %163, %9, %cst_40 {dimension_numbers = #tpu.dot_dimension_numbers<[1], [0], [0], [1], [0, 0, 1, 1], [], []>} : vector<4x32xf32>, vector<32x128xf32>, vector<4x128xf32> -> vector<4x128xf32>
    %171 = arith.addf %169, %170 : vector<4x128xf32>
    %172 = arith.negf %168 : vector<4x128xf32>
    %173 = math.exp %172 : vector<4x128xf32>
    %cst_41 = arith.constant 1.000000e+00 : f32
    %174 = vector.broadcast %cst_41 : f32 to vector<4x128xf32>
    %175 = arith.addf %174, %173 : vector<4x128xf32>
    %176 = arith.divf %174, %175 : vector<4x128xf32>
    %177 = math.tanh %168 : vector<4x128xf32>
    %178 = vector.extract_strided_slice %176 {offsets = [0, 0], sizes = [4, 32], strides = [1, 1]} : vector<4x128xf32> to vector<4x32xf32>
    %179 = vector.extract_strided_slice %176 {offsets = [0, 32], sizes = [4, 32], strides = [1, 1]} : vector<4x128xf32> to vector<4x32xf32>
    %180 = vector.extract_strided_slice %177 {offsets = [0, 64], sizes = [4, 32], strides = [1, 1]} : vector<4x128xf32> to vector<4x32xf32>
    %181 = vector.extract_strided_slice %176 {offsets = [0, 96], sizes = [4, 32], strides = [1, 1]} : vector<4x128xf32> to vector<4x32xf32>
    %182 = arith.mulf %179, %146 : vector<4x32xf32>
    %183 = arith.mulf %178, %180 : vector<4x32xf32>
    %184 = arith.addf %182, %183 : vector<4x32xf32>
    %185 = math.tanh %184 : vector<4x32xf32>
    %186 = arith.mulf %181, %185 : vector<4x32xf32>
    %187 = arith.negf %171 : vector<4x128xf32>
    %188 = math.exp %187 : vector<4x128xf32>
    %cst_42 = arith.constant 1.000000e+00 : f32
    %189 = vector.broadcast %cst_42 : f32 to vector<4x128xf32>
    %190 = arith.addf %189, %188 : vector<4x128xf32>
    %191 = arith.divf %189, %190 : vector<4x128xf32>
    %192 = math.tanh %171 : vector<4x128xf32>
    %193 = vector.extract_strided_slice %191 {offsets = [0, 0], sizes = [4, 32], strides = [1, 1]} : vector<4x128xf32> to vector<4x32xf32>
    %194 = vector.extract_strided_slice %191 {offsets = [0, 32], sizes = [4, 32], strides = [1, 1]} : vector<4x128xf32> to vector<4x32xf32>
    %195 = vector.extract_strided_slice %192 {offsets = [0, 64], sizes = [4, 32], strides = [1, 1]} : vector<4x128xf32> to vector<4x32xf32>
    %196 = vector.extract_strided_slice %191 {offsets = [0, 96], sizes = [4, 32], strides = [1, 1]} : vector<4x128xf32> to vector<4x32xf32>
    %197 = arith.mulf %194, %161 : vector<4x32xf32>
    %198 = arith.mulf %193, %195 : vector<4x32xf32>
    %199 = arith.addf %197, %198 : vector<4x32xf32>
    %200 = math.tanh %199 : vector<4x32xf32>
    %201 = arith.mulf %196, %200 : vector<4x32xf32>
    %c16_43 = arith.constant 16 : index
    %c0_44 = arith.constant 0 : index
    %202 = vector.load %arg10[%c16_43, %c0_44] : memref<32x32xf32, #tpu.memory_space<vmem>>, vector<4x32xf32>
    tpu.vector_store %arg10[%c16_43, %c0_44], %186 {strides = array<i32>} : memref<32x32xf32, #tpu.memory_space<vmem>>, vector<4x32xf32>,
    %c12_45 = arith.constant 12 : index
    %c0_46 = arith.constant 0 : index
    %203 = vector.load %arg11[%c12_45, %c0_46] : memref<32x32xf32, #tpu.memory_space<vmem>>, vector<4x32xf32>
    tpu.vector_store %arg11[%c12_45, %c0_46], %201 {strides = array<i32>} : memref<32x32xf32, #tpu.memory_space<vmem>>, vector<4x32xf32>,
    %204 = vector.extract_strided_slice %5 {offsets = [20, 0], sizes = [4, 128], strides = [1, 1]} : vector<32x256xf32> to vector<4x128xf32>
    %cst_47 = arith.constant dense<0.000000e+00> : vector<4x128xf32>
    %205 = tpu.matmul %186, %7, %cst_47 {dimension_numbers = #tpu.dot_dimension_numbers<[1], [0], [0], [1], [0, 0, 1, 1], [], []>} : vector<4x32xf32>, vector<32x128xf32>, vector<4x128xf32> -> vector<4x128xf32>
    %206 = arith.addf %204, %205 : vector<4x128xf32>
    %207 = vector.extract_strided_slice %5 {offsets = [8, 128], sizes = [4, 128], strides = [1, 1]} : vector<32x256xf32> to vector<4x128xf32>
    %cst_48 = arith.constant dense<0.000000e+00> : vector<4x128xf32>
    %208 = tpu.matmul %201, %9, %cst_48 {dimension_numbers = #tpu.dot_dimension_numbers<[1], [0], [0], [1], [0, 0, 1, 1], [], []>} : vector<4x32xf32>, vector<32x128xf32>, vector<4x128xf32> -> vector<4x128xf32>
    %209 = arith.addf %207, %208 : vector<4x128xf32>
    %210 = arith.negf %206 : vector<4x128xf32>
    %211 = math.exp %210 : vector<4x128xf32>
    %cst_49 = arith.constant 1.000000e+00 : f32
    %212 = vector.broadcast %cst_49 : f32 to vector<4x128xf32>
    %213 = arith.addf %212, %211 : vector<4x128xf32>
    %214 = arith.divf %212, %213 : vector<4x128xf32>
    %215 = math.tanh %206 : vector<4x128xf32>
    %216 = vector.extract_strided_slice %214 {offsets = [0, 0], sizes = [4, 32], strides = [1, 1]} : vector<4x128xf32> to vector<4x32xf32>
    %217 = vector.extract_strided_slice %214 {offsets = [0, 32], sizes = [4, 32], strides = [1, 1]} : vector<4x128xf32> to vector<4x32xf32>
    %218 = vector.extract_strided_slice %215 {offsets = [0, 64], sizes = [4, 32], strides = [1, 1]} : vector<4x128xf32> to vector<4x32xf32>
    %219 = vector.extract_strided_slice %214 {offsets = [0, 96], sizes = [4, 32], strides = [1, 1]} : vector<4x128xf32> to vector<4x32xf32>
    %220 = arith.mulf %217, %184 : vector<4x32xf32>
    %221 = arith.mulf %216, %218 : vector<4x32xf32>
    %222 = arith.addf %220, %221 : vector<4x32xf32>
    %223 = math.tanh %222 : vector<4x32xf32>
    %224 = arith.mulf %219, %223 : vector<4x32xf32>
    %225 = arith.negf %209 : vector<4x128xf32>
    %226 = math.exp %225 : vector<4x128xf32>
    %cst_50 = arith.constant 1.000000e+00 : f32
    %227 = vector.broadcast %cst_50 : f32 to vector<4x128xf32>
    %228 = arith.addf %227, %226 : vector<4x128xf32>
    %229 = arith.divf %227, %228 : vector<4x128xf32>
    %230 = math.tanh %209 : vector<4x128xf32>
    %231 = vector.extract_strided_slice %229 {offsets = [0, 0], sizes = [4, 32], strides = [1, 1]} : vector<4x128xf32> to vector<4x32xf32>
    %232 = vector.extract_strided_slice %229 {offsets = [0, 32], sizes = [4, 32], strides = [1, 1]} : vector<4x128xf32> to vector<4x32xf32>
    %233 = vector.extract_strided_slice %230 {offsets = [0, 64], sizes = [4, 32], strides = [1, 1]} : vector<4x128xf32> to vector<4x32xf32>
    %234 = vector.extract_strided_slice %229 {offsets = [0, 96], sizes = [4, 32], strides = [1, 1]} : vector<4x128xf32> to vector<4x32xf32>
    %235 = arith.mulf %232, %199 : vector<4x32xf32>
    %236 = arith.mulf %231, %233 : vector<4x32xf32>
    %237 = arith.addf %235, %236 : vector<4x32xf32>
    %238 = math.tanh %237 : vector<4x32xf32>
    %239 = arith.mulf %234, %238 : vector<4x32xf32>
    %c20_51 = arith.constant 20 : index
    %c0_52 = arith.constant 0 : index
    %240 = vector.load %arg10[%c20_51, %c0_52] : memref<32x32xf32, #tpu.memory_space<vmem>>, vector<4x32xf32>
    tpu.vector_store %arg10[%c20_51, %c0_52], %224 {strides = array<i32>} : memref<32x32xf32, #tpu.memory_space<vmem>>, vector<4x32xf32>,
    %c8_53 = arith.constant 8 : index
    %c0_54 = arith.constant 0 : index
    %241 = vector.load %arg11[%c8_53, %c0_54] : memref<32x32xf32, #tpu.memory_space<vmem>>, vector<4x32xf32>
    tpu.vector_store %arg11[%c8_53, %c0_54], %239 {strides = array<i32>} : memref<32x32xf32, #tpu.memory_space<vmem>>, vector<4x32xf32>,
    %242 = vector.extract_strided_slice %5 {offsets = [24, 0], sizes = [4, 128], strides = [1, 1]} : vector<32x256xf32> to vector<4x128xf32>
    %cst_55 = arith.constant dense<0.000000e+00> : vector<4x128xf32>
    %243 = tpu.matmul %224, %7, %cst_55 {dimension_numbers = #tpu.dot_dimension_numbers<[1], [0], [0], [1], [0, 0, 1, 1], [], []>} : vector<4x32xf32>, vector<32x128xf32>, vector<4x128xf32> -> vector<4x128xf32>
    %244 = arith.addf %242, %243 : vector<4x128xf32>
    %245 = vector.extract_strided_slice %5 {offsets = [4, 128], sizes = [4, 128], strides = [1, 1]} : vector<32x256xf32> to vector<4x128xf32>
    %cst_56 = arith.constant dense<0.000000e+00> : vector<4x128xf32>
    %246 = tpu.matmul %239, %9, %cst_56 {dimension_numbers = #tpu.dot_dimension_numbers<[1], [0], [0], [1], [0, 0, 1, 1], [], []>} : vector<4x32xf32>, vector<32x128xf32>, vector<4x128xf32> -> vector<4x128xf32>
    %247 = arith.addf %245, %246 : vector<4x128xf32>
    %248 = arith.negf %244 : vector<4x128xf32>
    %249 = math.exp %248 : vector<4x128xf32>
    %cst_57 = arith.constant 1.000000e+00 : f32
    %250 = vector.broadcast %cst_57 : f32 to vector<4x128xf32>
    %251 = arith.addf %250, %249 : vector<4x128xf32>
    %252 = arith.divf %250, %251 : vector<4x128xf32>
    %253 = math.tanh %244 : vector<4x128xf32>
    %254 = vector.extract_strided_slice %252 {offsets = [0, 0], sizes = [4, 32], strides = [1, 1]} : vector<4x128xf32> to vector<4x32xf32>
    %255 = vector.extract_strided_slice %252 {offsets = [0, 32], sizes = [4, 32], strides = [1, 1]} : vector<4x128xf32> to vector<4x32xf32>
    %256 = vector.extract_strided_slice %253 {offsets = [0, 64], sizes = [4, 32], strides = [1, 1]} : vector<4x128xf32> to vector<4x32xf32>
    %257 = vector.extract_strided_slice %252 {offsets = [0, 96], sizes = [4, 32], strides = [1, 1]} : vector<4x128xf32> to vector<4x32xf32>
    %258 = arith.mulf %255, %222 : vector<4x32xf32>
    %259 = arith.mulf %254, %256 : vector<4x32xf32>
    %260 = arith.addf %258, %259 : vector<4x32xf32>
    %261 = math.tanh %260 : vector<4x32xf32>
    %262 = arith.mulf %257, %261 : vector<4x32xf32>
    %263 = arith.negf %247 : vector<4x128xf32>
    %264 = math.exp %263 : vector<4x128xf32>
    %cst_58 = arith.constant 1.000000e+00 : f32
    %265 = vector.broadcast %cst_58 : f32 to vector<4x128xf32>
    %266 = arith.addf %265, %264 : vector<4x128xf32>
    %267 = arith.divf %265, %266 : vector<4x128xf32>
    %268 = math.tanh %247 : vector<4x128xf32>
    %269 = vector.extract_strided_slice %267 {offsets = [0, 0], sizes = [4, 32], strides = [1, 1]} : vector<4x128xf32> to vector<4x32xf32>
    %270 = vector.extract_strided_slice %267 {offsets = [0, 32], sizes = [4, 32], strides = [1, 1]} : vector<4x128xf32> to vector<4x32xf32>
    %271 = vector.extract_strided_slice %268 {offsets = [0, 64], sizes = [4, 32], strides = [1, 1]} : vector<4x128xf32> to vector<4x32xf32>
    %272 = vector.extract_strided_slice %267 {offsets = [0, 96], sizes = [4, 32], strides = [1, 1]} : vector<4x128xf32> to vector<4x32xf32>
    %273 = arith.mulf %270, %237 : vector<4x32xf32>
    %274 = arith.mulf %269, %271 : vector<4x32xf32>
    %275 = arith.addf %273, %274 : vector<4x32xf32>
    %276 = math.tanh %275 : vector<4x32xf32>
    %277 = arith.mulf %272, %276 : vector<4x32xf32>
    %c24_59 = arith.constant 24 : index
    %c0_60 = arith.constant 0 : index
    %278 = vector.load %arg10[%c24_59, %c0_60] : memref<32x32xf32, #tpu.memory_space<vmem>>, vector<4x32xf32>
    tpu.vector_store %arg10[%c24_59, %c0_60], %262 {strides = array<i32>} : memref<32x32xf32, #tpu.memory_space<vmem>>, vector<4x32xf32>,
    %c4_61 = arith.constant 4 : index
    %c0_62 = arith.constant 0 : index
    %279 = vector.load %arg11[%c4_61, %c0_62] : memref<32x32xf32, #tpu.memory_space<vmem>>, vector<4x32xf32>
    tpu.vector_store %arg11[%c4_61, %c0_62], %277 {strides = array<i32>} : memref<32x32xf32, #tpu.memory_space<vmem>>, vector<4x32xf32>,
    %280 = vector.extract_strided_slice %5 {offsets = [28, 0], sizes = [4, 128], strides = [1, 1]} : vector<32x256xf32> to vector<4x128xf32>
    %cst_63 = arith.constant dense<0.000000e+00> : vector<4x128xf32>
    %281 = tpu.matmul %262, %7, %cst_63 {dimension_numbers = #tpu.dot_dimension_numbers<[1], [0], [0], [1], [0, 0, 1, 1], [], []>} : vector<4x32xf32>, vector<32x128xf32>, vector<4x128xf32> -> vector<4x128xf32>
    %282 = arith.addf %280, %281 : vector<4x128xf32>
    %283 = vector.extract_strided_slice %5 {offsets = [0, 128], sizes = [4, 128], strides = [1, 1]} : vector<32x256xf32> to vector<4x128xf32>
    %cst_64 = arith.constant dense<0.000000e+00> : vector<4x128xf32>
    %284 = tpu.matmul %277, %9, %cst_64 {dimension_numbers = #tpu.dot_dimension_numbers<[1], [0], [0], [1], [0, 0, 1, 1], [], []>} : vector<4x32xf32>, vector<32x128xf32>, vector<4x128xf32> -> vector<4x128xf32>
    %285 = arith.addf %283, %284 : vector<4x128xf32>
    %286 = arith.negf %282 : vector<4x128xf32>
    %287 = math.exp %286 : vector<4x128xf32>
    %cst_65 = arith.constant 1.000000e+00 : f32
    %288 = vector.broadcast %cst_65 : f32 to vector<4x128xf32>
    %289 = arith.addf %288, %287 : vector<4x128xf32>
    %290 = arith.divf %288, %289 : vector<4x128xf32>
    %291 = math.tanh %282 : vector<4x128xf32>
    %292 = vector.extract_strided_slice %290 {offsets = [0, 0], sizes = [4, 32], strides = [1, 1]} : vector<4x128xf32> to vector<4x32xf32>
    %293 = vector.extract_strided_slice %290 {offsets = [0, 32], sizes = [4, 32], strides = [1, 1]} : vector<4x128xf32> to vector<4x32xf32>
    %294 = vector.extract_strided_slice %291 {offsets = [0, 64], sizes = [4, 32], strides = [1, 1]} : vector<4x128xf32> to vector<4x32xf32>
    %295 = vector.extract_strided_slice %290 {offsets = [0, 96], sizes = [4, 32], strides = [1, 1]} : vector<4x128xf32> to vector<4x32xf32>
    %296 = arith.mulf %293, %260 : vector<4x32xf32>
    %297 = arith.mulf %292, %294 : vector<4x32xf32>
    %298 = arith.addf %296, %297 : vector<4x32xf32>
    %299 = math.tanh %298 : vector<4x32xf32>
    %300 = arith.mulf %295, %299 : vector<4x32xf32>
    %301 = arith.negf %285 : vector<4x128xf32>
    %302 = math.exp %301 : vector<4x128xf32>
    %cst_66 = arith.constant 1.000000e+00 : f32
    %303 = vector.broadcast %cst_66 : f32 to vector<4x128xf32>
    %304 = arith.addf %303, %302 : vector<4x128xf32>
    %305 = arith.divf %303, %304 : vector<4x128xf32>
    %306 = math.tanh %285 : vector<4x128xf32>
    %307 = vector.extract_strided_slice %305 {offsets = [0, 0], sizes = [4, 32], strides = [1, 1]} : vector<4x128xf32> to vector<4x32xf32>
    %308 = vector.extract_strided_slice %305 {offsets = [0, 32], sizes = [4, 32], strides = [1, 1]} : vector<4x128xf32> to vector<4x32xf32>
    %309 = vector.extract_strided_slice %306 {offsets = [0, 64], sizes = [4, 32], strides = [1, 1]} : vector<4x128xf32> to vector<4x32xf32>
    %310 = vector.extract_strided_slice %305 {offsets = [0, 96], sizes = [4, 32], strides = [1, 1]} : vector<4x128xf32> to vector<4x32xf32>
    %311 = arith.mulf %308, %275 : vector<4x32xf32>
    %312 = arith.mulf %307, %309 : vector<4x32xf32>
    %313 = arith.addf %311, %312 : vector<4x32xf32>
    %314 = math.tanh %313 : vector<4x32xf32>
    %315 = arith.mulf %310, %314 : vector<4x32xf32>
    %c28_67 = arith.constant 28 : index
    %c0_68 = arith.constant 0 : index
    %316 = vector.load %arg10[%c28_67, %c0_68] : memref<32x32xf32, #tpu.memory_space<vmem>>, vector<4x32xf32>
    tpu.vector_store %arg10[%c28_67, %c0_68], %300 {strides = array<i32>} : memref<32x32xf32, #tpu.memory_space<vmem>>, vector<4x32xf32>,
    %c0_69 = arith.constant 0 : index
    %c0_70 = arith.constant 0 : index
    %317 = vector.load %arg11[%c0_69, %c0_70] : memref<32x32xf32, #tpu.memory_space<vmem>>, vector<4x32xf32>
    tpu.vector_store %arg11[%c0_69, %c0_70], %315 {strides = array<i32>} : memref<32x32xf32, #tpu.memory_space<vmem>>, vector<4x32xf32>,
    %c0_71 = arith.constant 0 : index
    %c0_72 = arith.constant 0 : index
    %318 = vector.load %arg10[%c0_71, %c0_72] : memref<32x32xf32, #tpu.memory_space<vmem>>, vector<32x32xf32>
    %c0_73 = arith.constant 0 : index
    %c0_74 = arith.constant 0 : index
    %c0_75 = arith.constant 0 : index
    %319 = vector.load %arg4[%c0_73, %c0_74, %c0_75] : memref<2x32x256xf32, #tpu.memory_space<vmem>>, vector<1x32x256xf32>
    %320 = vector.shape_cast %319 : vector<1x32x256xf32> to vector<32x256xf32>
    %cst_76 = arith.constant dense<0.000000e+00> : vector<32x256xf32>
    %321 = tpu.matmul %318, %320, %cst_76 {dimension_numbers = #tpu.dot_dimension_numbers<[1], [0], [0], [1], [0, 0, 1, 1], [], []>} : vector<32x32xf32>, vector<32x256xf32>, vector<32x256xf32> -> vector<32x256xf32>
    %c0_77 = arith.constant 0 : index
    %c0_78 = arith.constant 0 : index
    %322 = vector.load %arg11[%c0_77, %c0_78] : memref<32x32xf32, #tpu.memory_space<vmem>>, vector<32x32xf32>
    %c1_79 = arith.constant 1 : index
    %c0_80 = arith.constant 0 : index
    %c0_81 = arith.constant 0 : index
    %323 = vector.load %arg4[%c1_79, %c0_80, %c0_81] : memref<2x32x256xf32, #tpu.memory_space<vmem>>, vector<1x32x256xf32>
    %324 = vector.shape_cast %323 : vector<1x32x256xf32> to vector<32x256xf32>
    %cst_82 = arith.constant dense<0.000000e+00> : vector<32x256xf32>
    %325 = tpu.matmul %322, %324, %cst_82 {dimension_numbers = #tpu.dot_dimension_numbers<[1], [0], [0], [1], [0, 0, 1, 1], [], []>} : vector<32x32xf32>, vector<32x256xf32>, vector<32x256xf32> -> vector<32x256xf32>
    %326 = arith.addf %321, %325 : vector<32x256xf32>
    %c0_83 = arith.constant 0 : index
    %c0_84 = arith.constant 0 : index
    %327 = vector.load %arg6[%c0_83, %c0_84] : memref<1x256xf32, #tpu.memory_space<vmem>>, vector<1x256xf32>
    %328 = vector.broadcast %327 : vector<1x256xf32> to vector<32x256xf32>
    %329 = arith.addf %326, %328 : vector<32x256xf32>
    %c0_85 = arith.constant 0 : index
    %c0_86 = arith.constant 0 : index
    %c0_87 = arith.constant 0 : index
    %330 = vector.load %arg5[%c0_85, %c0_86, %c0_87] : memref<2x32x128xf32, #tpu.memory_space<vmem>>, vector<1x32x128xf32>
    %331 = vector.shape_cast %330 : vector<1x32x128xf32> to vector<32x128xf32>
    %c1_88 = arith.constant 1 : index
    %c0_89 = arith.constant 0 : index
    %c0_90 = arith.constant 0 : index
    %332 = vector.load %arg5[%c1_88, %c0_89, %c0_90] : memref<2x32x128xf32, #tpu.memory_space<vmem>>, vector<1x32x128xf32>
    %333 = vector.shape_cast %332 : vector<1x32x128xf32> to vector<32x128xf32>
    %cst_91 = arith.constant 0.000000e+00 : f32
    %334 = vector.broadcast %cst_91 : f32 to vector<4x32xf32>
    %cst_92 = arith.constant 0.000000e+00 : f32
    %335 = vector.broadcast %cst_92 : f32 to vector<4x32xf32>
    %cst_93 = arith.constant 0.000000e+00 : f32
    %336 = vector.broadcast %cst_93 : f32 to vector<4x32xf32>
    %cst_94 = arith.constant 0.000000e+00 : f32
    %337 = vector.broadcast %cst_94 : f32 to vector<4x32xf32>
    %338 = vector.extract_strided_slice %329 {offsets = [0, 0], sizes = [4, 128], strides = [1, 1]} : vector<32x256xf32> to vector<4x128xf32>
    %cst_95 = arith.constant dense<0.000000e+00> : vector<4x128xf32>
    %339 = tpu.matmul %334, %331, %cst_95 {dimension_numbers = #tpu.dot_dimension_numbers<[1], [0], [0], [1], [0, 0, 1, 1], [], []>} : vector<4x32xf32>, vector<32x128xf32>, vector<4x128xf32> -> vector<4x128xf32>
    %340 = arith.addf %338, %339 : vector<4x128xf32>
    %341 = vector.extract_strided_slice %329 {offsets = [28, 128], sizes = [4, 128], strides = [1, 1]} : vector<32x256xf32> to vector<4x128xf32>
    %cst_96 = arith.constant dense<0.000000e+00> : vector<4x128xf32>
    %342 = tpu.matmul %336, %333, %cst_96 {dimension_numbers = #tpu.dot_dimension_numbers<[1], [0], [0], [1], [0, 0, 1, 1], [], []>} : vector<4x32xf32>, vector<32x128xf32>, vector<4x128xf32> -> vector<4x128xf32>
    %343 = arith.addf %341, %342 : vector<4x128xf32>
    %344 = arith.negf %340 : vector<4x128xf32>
    %345 = math.exp %344 : vector<4x128xf32>
    %cst_97 = arith.constant 1.000000e+00 : f32
    %346 = vector.broadcast %cst_97 : f32 to vector<4x128xf32>
    %347 = arith.addf %346, %345 : vector<4x128xf32>
    %348 = arith.divf %346, %347 : vector<4x128xf32>
    %349 = math.tanh %340 : vector<4x128xf32>
    %350 = vector.extract_strided_slice %348 {offsets = [0, 0], sizes = [4, 32], strides = [1, 1]} : vector<4x128xf32> to vector<4x32xf32>
    %351 = vector.extract_strided_slice %348 {offsets = [0, 32], sizes = [4, 32], strides = [1, 1]} : vector<4x128xf32> to vector<4x32xf32>
    %352 = vector.extract_strided_slice %349 {offsets = [0, 64], sizes = [4, 32], strides = [1, 1]} : vector<4x128xf32> to vector<4x32xf32>
    %353 = vector.extract_strided_slice %348 {offsets = [0, 96], sizes = [4, 32], strides = [1, 1]} : vector<4x128xf32> to vector<4x32xf32>
    %354 = arith.mulf %351, %335 : vector<4x32xf32>
    %355 = arith.mulf %350, %352 : vector<4x32xf32>
    %356 = arith.addf %354, %355 : vector<4x32xf32>
    %357 = math.tanh %356 : vector<4x32xf32>
    %358 = arith.mulf %353, %357 : vector<4x32xf32>
    %359 = arith.negf %343 : vector<4x128xf32>
    %360 = math.exp %359 : vector<4x128xf32>
    %cst_98 = arith.constant 1.000000e+00 : f32
    %361 = vector.broadcast %cst_98 : f32 to vector<4x128xf32>
    %362 = arith.addf %361, %360 : vector<4x128xf32>
    %363 = arith.divf %361, %362 : vector<4x128xf32>
    %364 = math.tanh %343 : vector<4x128xf32>
    %365 = vector.extract_strided_slice %363 {offsets = [0, 0], sizes = [4, 32], strides = [1, 1]} : vector<4x128xf32> to vector<4x32xf32>
    %366 = vector.extract_strided_slice %363 {offsets = [0, 32], sizes = [4, 32], strides = [1, 1]} : vector<4x128xf32> to vector<4x32xf32>
    %367 = vector.extract_strided_slice %364 {offsets = [0, 64], sizes = [4, 32], strides = [1, 1]} : vector<4x128xf32> to vector<4x32xf32>
    %368 = vector.extract_strided_slice %363 {offsets = [0, 96], sizes = [4, 32], strides = [1, 1]} : vector<4x128xf32> to vector<4x32xf32>
    %369 = arith.mulf %366, %337 : vector<4x32xf32>
    %370 = arith.mulf %365, %367 : vector<4x32xf32>
    %371 = arith.addf %369, %370 : vector<4x32xf32>
    %372 = math.tanh %371 : vector<4x32xf32>
    %373 = arith.mulf %368, %372 : vector<4x32xf32>
    %374 = vector.extract_strided_slice %329 {offsets = [4, 0], sizes = [4, 128], strides = [1, 1]} : vector<32x256xf32> to vector<4x128xf32>
    %cst_99 = arith.constant dense<0.000000e+00> : vector<4x128xf32>
    %375 = tpu.matmul %358, %331, %cst_99 {dimension_numbers = #tpu.dot_dimension_numbers<[1], [0], [0], [1], [0, 0, 1, 1], [], []>} : vector<4x32xf32>, vector<32x128xf32>, vector<4x128xf32> -> vector<4x128xf32>
    %376 = arith.addf %374, %375 : vector<4x128xf32>
    %377 = vector.extract_strided_slice %329 {offsets = [24, 128], sizes = [4, 128], strides = [1, 1]} : vector<32x256xf32> to vector<4x128xf32>
    %cst_100 = arith.constant dense<0.000000e+00> : vector<4x128xf32>
    %378 = tpu.matmul %373, %333, %cst_100 {dimension_numbers = #tpu.dot_dimension_numbers<[1], [0], [0], [1], [0, 0, 1, 1], [], []>} : vector<4x32xf32>, vector<32x128xf32>, vector<4x128xf32> -> vector<4x128xf32>
    %379 = arith.addf %377, %378 : vector<4x128xf32>
    %380 = arith.negf %376 : vector<4x128xf32>
    %381 = math.exp %380 : vector<4x128xf32>
    %cst_101 = arith.constant 1.000000e+00 : f32
    %382 = vector.broadcast %cst_101 : f32 to vector<4x128xf32>
    %383 = arith.addf %382, %381 : vector<4x128xf32>
    %384 = arith.divf %382, %383 : vector<4x128xf32>
    %385 = math.tanh %376 : vector<4x128xf32>
    %386 = vector.extract_strided_slice %384 {offsets = [0, 0], sizes = [4, 32], strides = [1, 1]} : vector<4x128xf32> to vector<4x32xf32>
    %387 = vector.extract_strided_slice %384 {offsets = [0, 32], sizes = [4, 32], strides = [1, 1]} : vector<4x128xf32> to vector<4x32xf32>
    %388 = vector.extract_strided_slice %385 {offsets = [0, 64], sizes = [4, 32], strides = [1, 1]} : vector<4x128xf32> to vector<4x32xf32>
    %389 = vector.extract_strided_slice %384 {offsets = [0, 96], sizes = [4, 32], strides = [1, 1]} : vector<4x128xf32> to vector<4x32xf32>
    %390 = arith.mulf %387, %356 : vector<4x32xf32>
    %391 = arith.mulf %386, %388 : vector<4x32xf32>
    %392 = arith.addf %390, %391 : vector<4x32xf32>
    %393 = math.tanh %392 : vector<4x32xf32>
    %394 = arith.mulf %389, %393 : vector<4x32xf32>
    %395 = arith.negf %379 : vector<4x128xf32>
    %396 = math.exp %395 : vector<4x128xf32>
    %cst_102 = arith.constant 1.000000e+00 : f32
    %397 = vector.broadcast %cst_102 : f32 to vector<4x128xf32>
    %398 = arith.addf %397, %396 : vector<4x128xf32>
    %399 = arith.divf %397, %398 : vector<4x128xf32>
    %400 = math.tanh %379 : vector<4x128xf32>
    %401 = vector.extract_strided_slice %399 {offsets = [0, 0], sizes = [4, 32], strides = [1, 1]} : vector<4x128xf32> to vector<4x32xf32>
    %402 = vector.extract_strided_slice %399 {offsets = [0, 32], sizes = [4, 32], strides = [1, 1]} : vector<4x128xf32> to vector<4x32xf32>
    %403 = vector.extract_strided_slice %400 {offsets = [0, 64], sizes = [4, 32], strides = [1, 1]} : vector<4x128xf32> to vector<4x32xf32>
    %404 = vector.extract_strided_slice %399 {offsets = [0, 96], sizes = [4, 32], strides = [1, 1]} : vector<4x128xf32> to vector<4x32xf32>
    %405 = arith.mulf %402, %371 : vector<4x32xf32>
    %406 = arith.mulf %401, %403 : vector<4x32xf32>
    %407 = arith.addf %405, %406 : vector<4x32xf32>
    %408 = math.tanh %407 : vector<4x32xf32>
    %409 = arith.mulf %404, %408 : vector<4x32xf32>
    %410 = vector.extract_strided_slice %329 {offsets = [8, 0], sizes = [4, 128], strides = [1, 1]} : vector<32x256xf32> to vector<4x128xf32>
    %cst_103 = arith.constant dense<0.000000e+00> : vector<4x128xf32>
    %411 = tpu.matmul %394, %331, %cst_103 {dimension_numbers = #tpu.dot_dimension_numbers<[1], [0], [0], [1], [0, 0, 1, 1], [], []>} : vector<4x32xf32>, vector<32x128xf32>, vector<4x128xf32> -> vector<4x128xf32>
    %412 = arith.addf %410, %411 : vector<4x128xf32>
    %413 = vector.extract_strided_slice %329 {offsets = [20, 128], sizes = [4, 128], strides = [1, 1]} : vector<32x256xf32> to vector<4x128xf32>
    %cst_104 = arith.constant dense<0.000000e+00> : vector<4x128xf32>
    %414 = tpu.matmul %409, %333, %cst_104 {dimension_numbers = #tpu.dot_dimension_numbers<[1], [0], [0], [1], [0, 0, 1, 1], [], []>} : vector<4x32xf32>, vector<32x128xf32>, vector<4x128xf32> -> vector<4x128xf32>
    %415 = arith.addf %413, %414 : vector<4x128xf32>
    %416 = arith.negf %412 : vector<4x128xf32>
    %417 = math.exp %416 : vector<4x128xf32>
    %cst_105 = arith.constant 1.000000e+00 : f32
    %418 = vector.broadcast %cst_105 : f32 to vector<4x128xf32>
    %419 = arith.addf %418, %417 : vector<4x128xf32>
    %420 = arith.divf %418, %419 : vector<4x128xf32>
    %421 = math.tanh %412 : vector<4x128xf32>
    %422 = vector.extract_strided_slice %420 {offsets = [0, 0], sizes = [4, 32], strides = [1, 1]} : vector<4x128xf32> to vector<4x32xf32>
    %423 = vector.extract_strided_slice %420 {offsets = [0, 32], sizes = [4, 32], strides = [1, 1]} : vector<4x128xf32> to vector<4x32xf32>
    %424 = vector.extract_strided_slice %421 {offsets = [0, 64], sizes = [4, 32], strides = [1, 1]} : vector<4x128xf32> to vector<4x32xf32>
    %425 = vector.extract_strided_slice %420 {offsets = [0, 96], sizes = [4, 32], strides = [1, 1]} : vector<4x128xf32> to vector<4x32xf32>
    %426 = arith.mulf %423, %392 : vector<4x32xf32>
    %427 = arith.mulf %422, %424 : vector<4x32xf32>
    %428 = arith.addf %426, %427 : vector<4x32xf32>
    %429 = math.tanh %428 : vector<4x32xf32>
    %430 = arith.mulf %425, %429 : vector<4x32xf32>
    %431 = arith.negf %415 : vector<4x128xf32>
    %432 = math.exp %431 : vector<4x128xf32>
    %cst_106 = arith.constant 1.000000e+00 : f32
    %433 = vector.broadcast %cst_106 : f32 to vector<4x128xf32>
    %434 = arith.addf %433, %432 : vector<4x128xf32>
    %435 = arith.divf %433, %434 : vector<4x128xf32>
    %436 = math.tanh %415 : vector<4x128xf32>
    %437 = vector.extract_strided_slice %435 {offsets = [0, 0], sizes = [4, 32], strides = [1, 1]} : vector<4x128xf32> to vector<4x32xf32>
    %438 = vector.extract_strided_slice %435 {offsets = [0, 32], sizes = [4, 32], strides = [1, 1]} : vector<4x128xf32> to vector<4x32xf32>
    %439 = vector.extract_strided_slice %436 {offsets = [0, 64], sizes = [4, 32], strides = [1, 1]} : vector<4x128xf32> to vector<4x32xf32>
    %440 = vector.extract_strided_slice %435 {offsets = [0, 96], sizes = [4, 32], strides = [1, 1]} : vector<4x128xf32> to vector<4x32xf32>
    %441 = arith.mulf %438, %407 : vector<4x32xf32>
    %442 = arith.mulf %437, %439 : vector<4x32xf32>
    %443 = arith.addf %441, %442 : vector<4x32xf32>
    %444 = math.tanh %443 : vector<4x32xf32>
    %445 = arith.mulf %440, %444 : vector<4x32xf32>
    %446 = vector.extract_strided_slice %329 {offsets = [12, 0], sizes = [4, 128], strides = [1, 1]} : vector<32x256xf32> to vector<4x128xf32>
    %cst_107 = arith.constant dense<0.000000e+00> : vector<4x128xf32>
    %447 = tpu.matmul %430, %331, %cst_107 {dimension_numbers = #tpu.dot_dimension_numbers<[1], [0], [0], [1], [0, 0, 1, 1], [], []>} : vector<4x32xf32>, vector<32x128xf32>, vector<4x128xf32> -> vector<4x128xf32>
    %448 = arith.addf %446, %447 : vector<4x128xf32>
    %449 = vector.extract_strided_slice %329 {offsets = [16, 128], sizes = [4, 128], strides = [1, 1]} : vector<32x256xf32> to vector<4x128xf32>
    %cst_108 = arith.constant dense<0.000000e+00> : vector<4x128xf32>
    %450 = tpu.matmul %445, %333, %cst_108 {dimension_numbers = #tpu.dot_dimension_numbers<[1], [0], [0], [1], [0, 0, 1, 1], [], []>} : vector<4x32xf32>, vector<32x128xf32>, vector<4x128xf32> -> vector<4x128xf32>
    %451 = arith.addf %449, %450 : vector<4x128xf32>
    %452 = arith.negf %448 : vector<4x128xf32>
    %453 = math.exp %452 : vector<4x128xf32>
    %cst_109 = arith.constant 1.000000e+00 : f32
    %454 = vector.broadcast %cst_109 : f32 to vector<4x128xf32>
    %455 = arith.addf %454, %453 : vector<4x128xf32>
    %456 = arith.divf %454, %455 : vector<4x128xf32>
    %457 = math.tanh %448 : vector<4x128xf32>
    %458 = vector.extract_strided_slice %456 {offsets = [0, 0], sizes = [4, 32], strides = [1, 1]} : vector<4x128xf32> to vector<4x32xf32>
    %459 = vector.extract_strided_slice %456 {offsets = [0, 32], sizes = [4, 32], strides = [1, 1]} : vector<4x128xf32> to vector<4x32xf32>
    %460 = vector.extract_strided_slice %457 {offsets = [0, 64], sizes = [4, 32], strides = [1, 1]} : vector<4x128xf32> to vector<4x32xf32>
    %461 = vector.extract_strided_slice %456 {offsets = [0, 96], sizes = [4, 32], strides = [1, 1]} : vector<4x128xf32> to vector<4x32xf32>
    %462 = arith.mulf %459, %428 : vector<4x32xf32>
    %463 = arith.mulf %458, %460 : vector<4x32xf32>
    %464 = arith.addf %462, %463 : vector<4x32xf32>
    %465 = math.tanh %464 : vector<4x32xf32>
    %466 = arith.mulf %461, %465 : vector<4x32xf32>
    %467 = arith.negf %451 : vector<4x128xf32>
    %468 = math.exp %467 : vector<4x128xf32>
    %cst_110 = arith.constant 1.000000e+00 : f32
    %469 = vector.broadcast %cst_110 : f32 to vector<4x128xf32>
    %470 = arith.addf %469, %468 : vector<4x128xf32>
    %471 = arith.divf %469, %470 : vector<4x128xf32>
    %472 = math.tanh %451 : vector<4x128xf32>
    %473 = vector.extract_strided_slice %471 {offsets = [0, 0], sizes = [4, 32], strides = [1, 1]} : vector<4x128xf32> to vector<4x32xf32>
    %474 = vector.extract_strided_slice %471 {offsets = [0, 32], sizes = [4, 32], strides = [1, 1]} : vector<4x128xf32> to vector<4x32xf32>
    %475 = vector.extract_strided_slice %472 {offsets = [0, 64], sizes = [4, 32], strides = [1, 1]} : vector<4x128xf32> to vector<4x32xf32>
    %476 = vector.extract_strided_slice %471 {offsets = [0, 96], sizes = [4, 32], strides = [1, 1]} : vector<4x128xf32> to vector<4x32xf32>
    %477 = arith.mulf %474, %443 : vector<4x32xf32>
    %478 = arith.mulf %473, %475 : vector<4x32xf32>
    %479 = arith.addf %477, %478 : vector<4x32xf32>
    %480 = math.tanh %479 : vector<4x32xf32>
    %481 = arith.mulf %476, %480 : vector<4x32xf32>
    %482 = vector.extract_strided_slice %329 {offsets = [16, 0], sizes = [4, 128], strides = [1, 1]} : vector<32x256xf32> to vector<4x128xf32>
    %cst_111 = arith.constant dense<0.000000e+00> : vector<4x128xf32>
    %483 = tpu.matmul %466, %331, %cst_111 {dimension_numbers = #tpu.dot_dimension_numbers<[1], [0], [0], [1], [0, 0, 1, 1], [], []>} : vector<4x32xf32>, vector<32x128xf32>, vector<4x128xf32> -> vector<4x128xf32>
    %484 = arith.addf %482, %483 : vector<4x128xf32>
    %485 = vector.extract_strided_slice %329 {offsets = [12, 128], sizes = [4, 128], strides = [1, 1]} : vector<32x256xf32> to vector<4x128xf32>
    %cst_112 = arith.constant dense<0.000000e+00> : vector<4x128xf32>
    %486 = tpu.matmul %481, %333, %cst_112 {dimension_numbers = #tpu.dot_dimension_numbers<[1], [0], [0], [1], [0, 0, 1, 1], [], []>} : vector<4x32xf32>, vector<32x128xf32>, vector<4x128xf32> -> vector<4x128xf32>
    %487 = arith.addf %485, %486 : vector<4x128xf32>
    %488 = arith.negf %484 : vector<4x128xf32>
    %489 = math.exp %488 : vector<4x128xf32>
    %cst_113 = arith.constant 1.000000e+00 : f32
    %490 = vector.broadcast %cst_113 : f32 to vector<4x128xf32>
    %491 = arith.addf %490, %489 : vector<4x128xf32>
    %492 = arith.divf %490, %491 : vector<4x128xf32>
    %493 = math.tanh %484 : vector<4x128xf32>
    %494 = vector.extract_strided_slice %492 {offsets = [0, 0], sizes = [4, 32], strides = [1, 1]} : vector<4x128xf32> to vector<4x32xf32>
    %495 = vector.extract_strided_slice %492 {offsets = [0, 32], sizes = [4, 32], strides = [1, 1]} : vector<4x128xf32> to vector<4x32xf32>
    %496 = vector.extract_strided_slice %493 {offsets = [0, 64], sizes = [4, 32], strides = [1, 1]} : vector<4x128xf32> to vector<4x32xf32>
    %497 = vector.extract_strided_slice %492 {offsets = [0, 96], sizes = [4, 32], strides = [1, 1]} : vector<4x128xf32> to vector<4x32xf32>
    %498 = arith.mulf %495, %464 : vector<4x32xf32>
    %499 = arith.mulf %494, %496 : vector<4x32xf32>
    %500 = arith.addf %498, %499 : vector<4x32xf32>
    %501 = math.tanh %500 : vector<4x32xf32>
    %502 = arith.mulf %497, %501 : vector<4x32xf32>
    %503 = arith.negf %487 : vector<4x128xf32>
    %504 = math.exp %503 : vector<4x128xf32>
    %cst_114 = arith.constant 1.000000e+00 : f32
    %505 = vector.broadcast %cst_114 : f32 to vector<4x128xf32>
    %506 = arith.addf %505, %504 : vector<4x128xf32>
    %507 = arith.divf %505, %506 : vector<4x128xf32>
    %508 = math.tanh %487 : vector<4x128xf32>
    %509 = vector.extract_strided_slice %507 {offsets = [0, 0], sizes = [4, 32], strides = [1, 1]} : vector<4x128xf32> to vector<4x32xf32>
    %510 = vector.extract_strided_slice %507 {offsets = [0, 32], sizes = [4, 32], strides = [1, 1]} : vector<4x128xf32> to vector<4x32xf32>
    %511 = vector.extract_strided_slice %508 {offsets = [0, 64], sizes = [4, 32], strides = [1, 1]} : vector<4x128xf32> to vector<4x32xf32>
    %512 = vector.extract_strided_slice %507 {offsets = [0, 96], sizes = [4, 32], strides = [1, 1]} : vector<4x128xf32> to vector<4x32xf32>
    %513 = arith.mulf %510, %479 : vector<4x32xf32>
    %514 = arith.mulf %509, %511 : vector<4x32xf32>
    %515 = arith.addf %513, %514 : vector<4x32xf32>
    %516 = math.tanh %515 : vector<4x32xf32>
    %517 = arith.mulf %512, %516 : vector<4x32xf32>
    %518 = vector.extract_strided_slice %329 {offsets = [20, 0], sizes = [4, 128], strides = [1, 1]} : vector<32x256xf32> to vector<4x128xf32>
    %cst_115 = arith.constant dense<0.000000e+00> : vector<4x128xf32>
    %519 = tpu.matmul %502, %331, %cst_115 {dimension_numbers = #tpu.dot_dimension_numbers<[1], [0], [0], [1], [0, 0, 1, 1], [], []>} : vector<4x32xf32>, vector<32x128xf32>, vector<4x128xf32> -> vector<4x128xf32>
    %520 = arith.addf %518, %519 : vector<4x128xf32>
    %521 = vector.extract_strided_slice %329 {offsets = [8, 128], sizes = [4, 128], strides = [1, 1]} : vector<32x256xf32> to vector<4x128xf32>
    %cst_116 = arith.constant dense<0.000000e+00> : vector<4x128xf32>
    %522 = tpu.matmul %517, %333, %cst_116 {dimension_numbers = #tpu.dot_dimension_numbers<[1], [0], [0], [1], [0, 0, 1, 1], [], []>} : vector<4x32xf32>, vector<32x128xf32>, vector<4x128xf32> -> vector<4x128xf32>
    %523 = arith.addf %521, %522 : vector<4x128xf32>
    %524 = arith.negf %520 : vector<4x128xf32>
    %525 = math.exp %524 : vector<4x128xf32>
    %cst_117 = arith.constant 1.000000e+00 : f32
    %526 = vector.broadcast %cst_117 : f32 to vector<4x128xf32>
    %527 = arith.addf %526, %525 : vector<4x128xf32>
    %528 = arith.divf %526, %527 : vector<4x128xf32>
    %529 = math.tanh %520 : vector<4x128xf32>
    %530 = vector.extract_strided_slice %528 {offsets = [0, 0], sizes = [4, 32], strides = [1, 1]} : vector<4x128xf32> to vector<4x32xf32>
    %531 = vector.extract_strided_slice %528 {offsets = [0, 32], sizes = [4, 32], strides = [1, 1]} : vector<4x128xf32> to vector<4x32xf32>
    %532 = vector.extract_strided_slice %529 {offsets = [0, 64], sizes = [4, 32], strides = [1, 1]} : vector<4x128xf32> to vector<4x32xf32>
    %533 = vector.extract_strided_slice %528 {offsets = [0, 96], sizes = [4, 32], strides = [1, 1]} : vector<4x128xf32> to vector<4x32xf32>
    %534 = arith.mulf %531, %500 : vector<4x32xf32>
    %535 = arith.mulf %530, %532 : vector<4x32xf32>
    %536 = arith.addf %534, %535 : vector<4x32xf32>
    %537 = math.tanh %536 : vector<4x32xf32>
    %538 = arith.mulf %533, %537 : vector<4x32xf32>
    %539 = arith.negf %523 : vector<4x128xf32>
    %540 = math.exp %539 : vector<4x128xf32>
    %cst_118 = arith.constant 1.000000e+00 : f32
    %541 = vector.broadcast %cst_118 : f32 to vector<4x128xf32>
    %542 = arith.addf %541, %540 : vector<4x128xf32>
    %543 = arith.divf %541, %542 : vector<4x128xf32>
    %544 = math.tanh %523 : vector<4x128xf32>
    %545 = vector.extract_strided_slice %543 {offsets = [0, 0], sizes = [4, 32], strides = [1, 1]} : vector<4x128xf32> to vector<4x32xf32>
    %546 = vector.extract_strided_slice %543 {offsets = [0, 32], sizes = [4, 32], strides = [1, 1]} : vector<4x128xf32> to vector<4x32xf32>
    %547 = vector.extract_strided_slice %544 {offsets = [0, 64], sizes = [4, 32], strides = [1, 1]} : vector<4x128xf32> to vector<4x32xf32>
    %548 = vector.extract_strided_slice %543 {offsets = [0, 96], sizes = [4, 32], strides = [1, 1]} : vector<4x128xf32> to vector<4x32xf32>
    %549 = arith.mulf %546, %515 : vector<4x32xf32>
    %550 = arith.mulf %545, %547 : vector<4x32xf32>
    %551 = arith.addf %549, %550 : vector<4x32xf32>
    %552 = math.tanh %551 : vector<4x32xf32>
    %553 = arith.mulf %548, %552 : vector<4x32xf32>
    %554 = vector.extract_strided_slice %329 {offsets = [24, 0], sizes = [4, 128], strides = [1, 1]} : vector<32x256xf32> to vector<4x128xf32>
    %cst_119 = arith.constant dense<0.000000e+00> : vector<4x128xf32>
    %555 = tpu.matmul %538, %331, %cst_119 {dimension_numbers = #tpu.dot_dimension_numbers<[1], [0], [0], [1], [0, 0, 1, 1], [], []>} : vector<4x32xf32>, vector<32x128xf32>, vector<4x128xf32> -> vector<4x128xf32>
    %556 = arith.addf %554, %555 : vector<4x128xf32>
    %557 = vector.extract_strided_slice %329 {offsets = [4, 128], sizes = [4, 128], strides = [1, 1]} : vector<32x256xf32> to vector<4x128xf32>
    %cst_120 = arith.constant dense<0.000000e+00> : vector<4x128xf32>
    %558 = tpu.matmul %553, %333, %cst_120 {dimension_numbers = #tpu.dot_dimension_numbers<[1], [0], [0], [1], [0, 0, 1, 1], [], []>} : vector<4x32xf32>, vector<32x128xf32>, vector<4x128xf32> -> vector<4x128xf32>
    %559 = arith.addf %557, %558 : vector<4x128xf32>
    %560 = arith.negf %556 : vector<4x128xf32>
    %561 = math.exp %560 : vector<4x128xf32>
    %cst_121 = arith.constant 1.000000e+00 : f32
    %562 = vector.broadcast %cst_121 : f32 to vector<4x128xf32>
    %563 = arith.addf %562, %561 : vector<4x128xf32>
    %564 = arith.divf %562, %563 : vector<4x128xf32>
    %565 = math.tanh %556 : vector<4x128xf32>
    %566 = vector.extract_strided_slice %564 {offsets = [0, 0], sizes = [4, 32], strides = [1, 1]} : vector<4x128xf32> to vector<4x32xf32>
    %567 = vector.extract_strided_slice %564 {offsets = [0, 32], sizes = [4, 32], strides = [1, 1]} : vector<4x128xf32> to vector<4x32xf32>
    %568 = vector.extract_strided_slice %565 {offsets = [0, 64], sizes = [4, 32], strides = [1, 1]} : vector<4x128xf32> to vector<4x32xf32>
    %569 = vector.extract_strided_slice %564 {offsets = [0, 96], sizes = [4, 32], strides = [1, 1]} : vector<4x128xf32> to vector<4x32xf32>
    %570 = arith.mulf %567, %536 : vector<4x32xf32>
    %571 = arith.mulf %566, %568 : vector<4x32xf32>
    %572 = arith.addf %570, %571 : vector<4x32xf32>
    %573 = math.tanh %572 : vector<4x32xf32>
    %574 = arith.mulf %569, %573 : vector<4x32xf32>
    %575 = arith.negf %559 : vector<4x128xf32>
    %576 = math.exp %575 : vector<4x128xf32>
    %cst_122 = arith.constant 1.000000e+00 : f32
    %577 = vector.broadcast %cst_122 : f32 to vector<4x128xf32>
    %578 = arith.addf %577, %576 : vector<4x128xf32>
    %579 = arith.divf %577, %578 : vector<4x128xf32>
    %580 = math.tanh %559 : vector<4x128xf32>
    %581 = vector.extract_strided_slice %579 {offsets = [0, 0], sizes = [4, 32], strides = [1, 1]} : vector<4x128xf32> to vector<4x32xf32>
    %582 = vector.extract_strided_slice %579 {offsets = [0, 32], sizes = [4, 32], strides = [1, 1]} : vector<4x128xf32> to vector<4x32xf32>
    %583 = vector.extract_strided_slice %580 {offsets = [0, 64], sizes = [4, 32], strides = [1, 1]} : vector<4x128xf32> to vector<4x32xf32>
    %584 = vector.extract_strided_slice %579 {offsets = [0, 96], sizes = [4, 32], strides = [1, 1]} : vector<4x128xf32> to vector<4x32xf32>
    %585 = arith.mulf %582, %551 : vector<4x32xf32>
    %586 = arith.mulf %581, %583 : vector<4x32xf32>
    %587 = arith.addf %585, %586 : vector<4x32xf32>
    %588 = math.tanh %587 : vector<4x32xf32>
    %589 = arith.mulf %584, %588 : vector<4x32xf32>
    %590 = vector.extract_strided_slice %329 {offsets = [28, 0], sizes = [4, 128], strides = [1, 1]} : vector<32x256xf32> to vector<4x128xf32>
    %cst_123 = arith.constant dense<0.000000e+00> : vector<4x128xf32>
    %591 = tpu.matmul %574, %331, %cst_123 {dimension_numbers = #tpu.dot_dimension_numbers<[1], [0], [0], [1], [0, 0, 1, 1], [], []>} : vector<4x32xf32>, vector<32x128xf32>, vector<4x128xf32> -> vector<4x128xf32>
    %592 = arith.addf %590, %591 : vector<4x128xf32>
    %593 = vector.extract_strided_slice %329 {offsets = [0, 128], sizes = [4, 128], strides = [1, 1]} : vector<32x256xf32> to vector<4x128xf32>
    %cst_124 = arith.constant dense<0.000000e+00> : vector<4x128xf32>
    %594 = tpu.matmul %589, %333, %cst_124 {dimension_numbers = #tpu.dot_dimension_numbers<[1], [0], [0], [1], [0, 0, 1, 1], [], []>} : vector<4x32xf32>, vector<32x128xf32>, vector<4x128xf32> -> vector<4x128xf32>
    %595 = arith.addf %593, %594 : vector<4x128xf32>
    %596 = arith.negf %592 : vector<4x128xf32>
    %597 = math.exp %596 : vector<4x128xf32>
    %cst_125 = arith.constant 1.000000e+00 : f32
    %598 = vector.broadcast %cst_125 : f32 to vector<4x128xf32>
    %599 = arith.addf %598, %597 : vector<4x128xf32>
    %600 = arith.divf %598, %599 : vector<4x128xf32>
    %601 = math.tanh %592 : vector<4x128xf32>
    %602 = vector.extract_strided_slice %600 {offsets = [0, 0], sizes = [4, 32], strides = [1, 1]} : vector<4x128xf32> to vector<4x32xf32>
    %603 = vector.extract_strided_slice %600 {offsets = [0, 32], sizes = [4, 32], strides = [1, 1]} : vector<4x128xf32> to vector<4x32xf32>
    %604 = vector.extract_strided_slice %601 {offsets = [0, 64], sizes = [4, 32], strides = [1, 1]} : vector<4x128xf32> to vector<4x32xf32>
    %605 = arith.mulf %603, %572 : vector<4x32xf32>
    %606 = arith.mulf %602, %604 : vector<4x32xf32>
    %607 = arith.addf %605, %606 : vector<4x32xf32>
    %608 = arith.negf %595 : vector<4x128xf32>
    %609 = math.exp %608 : vector<4x128xf32>
    %cst_126 = arith.constant 1.000000e+00 : f32
    %610 = vector.broadcast %cst_126 : f32 to vector<4x128xf32>
    %611 = arith.addf %610, %609 : vector<4x128xf32>
    %612 = arith.divf %610, %611 : vector<4x128xf32>
    %613 = math.tanh %595 : vector<4x128xf32>
    %614 = vector.extract_strided_slice %612 {offsets = [0, 0], sizes = [4, 32], strides = [1, 1]} : vector<4x128xf32> to vector<4x32xf32>
    %615 = vector.extract_strided_slice %612 {offsets = [0, 32], sizes = [4, 32], strides = [1, 1]} : vector<4x128xf32> to vector<4x32xf32>
    %616 = vector.extract_strided_slice %613 {offsets = [0, 64], sizes = [4, 32], strides = [1, 1]} : vector<4x128xf32> to vector<4x32xf32>
    %617 = arith.mulf %615, %587 : vector<4x32xf32>
    %618 = arith.mulf %614, %616 : vector<4x32xf32>
    %619 = arith.addf %617, %618 : vector<4x32xf32>
    %cst_127 = arith.constant 0.000000e+00 : f32
    %620 = vector.broadcast %cst_127 : f32 to vector<2x32xf32>
    %621 = vector.extract_strided_slice %298 {offsets = [0, 0], sizes = [2, 32], strides = [1, 1]} : vector<4x32xf32> to vector<2x32xf32>
    %c0_128 = arith.constant 0 : index
    %c0_129 = arith.constant 0 : index
    %622 = vector.load %arg7[%c0_128, %c0_129] : memref<256x32xf32, #tpu.memory_space<vmem>>, vector<32x32xf32>
    %cst_130 = arith.constant dense<0.000000e+00> : vector<2x32xf32>
    %623 = tpu.matmul %621, %622, %cst_130 {dimension_numbers = #tpu.dot_dimension_numbers<[1], [0], [0], [1], [0, 0, 1, 1], [], []>} : vector<2x32xf32>, vector<32x32xf32>, vector<2x32xf32> -> vector<2x32xf32>
    %624 = arith.addf %620, %623 : vector<2x32xf32>
    %625 = vector.extract_strided_slice %298 {offsets = [2, 0], sizes = [2, 32], strides = [1, 1]} : vector<4x32xf32> to vector<2x32xf32>
    %c128 = arith.constant 128 : index
    %c0_131 = arith.constant 0 : index
    %626 = vector.load %arg7[%c128, %c0_131] : memref<256x32xf32, #tpu.memory_space<vmem>>, vector<32x32xf32>
    %cst_132 = arith.constant dense<0.000000e+00> : vector<2x32xf32>
    %627 = tpu.matmul %625, %626, %cst_132 {dimension_numbers = #tpu.dot_dimension_numbers<[1], [0], [0], [1], [0, 0, 1, 1], [], []>} : vector<2x32xf32>, vector<32x32xf32>, vector<2x32xf32> -> vector<2x32xf32>
    %628 = arith.addf %624, %627 : vector<2x32xf32>
    %629 = vector.extract_strided_slice %313 {offsets = [0, 0], sizes = [2, 32], strides = [1, 1]} : vector<4x32xf32> to vector<2x32xf32>
    %c32 = arith.constant 32 : index
    %c0_133 = arith.constant 0 : index
    %630 = vector.load %arg7[%c32, %c0_133] : memref<256x32xf32, #tpu.memory_space<vmem>>, vector<32x32xf32>
    %cst_134 = arith.constant dense<0.000000e+00> : vector<2x32xf32>
    %631 = tpu.matmul %629, %630, %cst_134 {dimension_numbers = #tpu.dot_dimension_numbers<[1], [0], [0], [1], [0, 0, 1, 1], [], []>} : vector<2x32xf32>, vector<32x32xf32>, vector<2x32xf32> -> vector<2x32xf32>
    %632 = arith.addf %628, %631 : vector<2x32xf32>
    %633 = vector.extract_strided_slice %313 {offsets = [2, 0], sizes = [2, 32], strides = [1, 1]} : vector<4x32xf32> to vector<2x32xf32>
    %c160 = arith.constant 160 : index
    %c0_135 = arith.constant 0 : index
    %634 = vector.load %arg7[%c160, %c0_135] : memref<256x32xf32, #tpu.memory_space<vmem>>, vector<32x32xf32>
    %cst_136 = arith.constant dense<0.000000e+00> : vector<2x32xf32>
    %635 = tpu.matmul %633, %634, %cst_136 {dimension_numbers = #tpu.dot_dimension_numbers<[1], [0], [0], [1], [0, 0, 1, 1], [], []>} : vector<2x32xf32>, vector<32x32xf32>, vector<2x32xf32> -> vector<2x32xf32>
    %636 = arith.addf %632, %635 : vector<2x32xf32>
    %637 = vector.extract_strided_slice %607 {offsets = [0, 0], sizes = [2, 32], strides = [1, 1]} : vector<4x32xf32> to vector<2x32xf32>
    %c64 = arith.constant 64 : index
    %c0_137 = arith.constant 0 : index
    %638 = vector.load %arg7[%c64, %c0_137] : memref<256x32xf32, #tpu.memory_space<vmem>>, vector<32x32xf32>
    %cst_138 = arith.constant dense<0.000000e+00> : vector<2x32xf32>
    %639 = tpu.matmul %637, %638, %cst_138 {dimension_numbers = #tpu.dot_dimension_numbers<[1], [0], [0], [1], [0, 0, 1, 1], [], []>} : vector<2x32xf32>, vector<32x32xf32>, vector<2x32xf32> -> vector<2x32xf32>
    %640 = arith.addf %636, %639 : vector<2x32xf32>
    %641 = vector.extract_strided_slice %607 {offsets = [2, 0], sizes = [2, 32], strides = [1, 1]} : vector<4x32xf32> to vector<2x32xf32>
    %c192 = arith.constant 192 : index
    %c0_139 = arith.constant 0 : index
    %642 = vector.load %arg7[%c192, %c0_139] : memref<256x32xf32, #tpu.memory_space<vmem>>, vector<32x32xf32>
    %cst_140 = arith.constant dense<0.000000e+00> : vector<2x32xf32>
    %643 = tpu.matmul %641, %642, %cst_140 {dimension_numbers = #tpu.dot_dimension_numbers<[1], [0], [0], [1], [0, 0, 1, 1], [], []>} : vector<2x32xf32>, vector<32x32xf32>, vector<2x32xf32> -> vector<2x32xf32>
    %644 = arith.addf %640, %643 : vector<2x32xf32>
    %645 = vector.extract_strided_slice %619 {offsets = [0, 0], sizes = [2, 32], strides = [1, 1]} : vector<4x32xf32> to vector<2x32xf32>
    %c96 = arith.constant 96 : index
    %c0_141 = arith.constant 0 : index
    %646 = vector.load %arg7[%c96, %c0_141] : memref<256x32xf32, #tpu.memory_space<vmem>>, vector<32x32xf32>
    %cst_142 = arith.constant dense<0.000000e+00> : vector<2x32xf32>
    %647 = tpu.matmul %645, %646, %cst_142 {dimension_numbers = #tpu.dot_dimension_numbers<[1], [0], [0], [1], [0, 0, 1, 1], [], []>} : vector<2x32xf32>, vector<32x32xf32>, vector<2x32xf32> -> vector<2x32xf32>
    %648 = arith.addf %644, %647 : vector<2x32xf32>
    %649 = vector.extract_strided_slice %619 {offsets = [2, 0], sizes = [2, 32], strides = [1, 1]} : vector<4x32xf32> to vector<2x32xf32>
    %c224 = arith.constant 224 : index
    %c0_143 = arith.constant 0 : index
    %650 = vector.load %arg7[%c224, %c0_143] : memref<256x32xf32, #tpu.memory_space<vmem>>, vector<32x32xf32>
    %cst_144 = arith.constant dense<0.000000e+00> : vector<2x32xf32>
    %651 = tpu.matmul %649, %650, %cst_144 {dimension_numbers = #tpu.dot_dimension_numbers<[1], [0], [0], [1], [0, 0, 1, 1], [], []>} : vector<2x32xf32>, vector<32x32xf32>, vector<2x32xf32> -> vector<2x32xf32>
    %652 = arith.addf %648, %651 : vector<2x32xf32>
    %c0_145 = arith.constant 0 : index
    %c0_146 = arith.constant 0 : index
    %653 = vector.load %arg8[%c0_145, %c0_146] : memref<1x32xf32, #tpu.memory_space<vmem>>, vector<1x32xf32>
    %654 = vector.broadcast %653 : vector<1x32xf32> to vector<2x32xf32>
    %655 = arith.addf %652, %654 : vector<2x32xf32>
    %cst_147 = arith.constant 0.000000e+00 : f32
    %656 = vector.broadcast %cst_147 : f32 to vector<2x32xf32>
    %657 = arith.maximumf %655, %656 : vector<2x32xf32>
    %c0_148 = arith.constant 0 : index
    %c0_149 = arith.constant 0 : index
    %658 = vector.load %arg9[%c0_148, %c0_149] : memref<2x32xf32, #tpu.memory_space<vmem>>, vector<2x32xf32>
    tpu.vector_store %arg9[%c0_148, %c0_149], %657 {strides = array<i32>} : memref<2x32xf32, #tpu.memory_space<vmem>>, vector<2x32xf32>,
    return
  }
}

</mosaic_0001>

<llo_original>
// kernel: lstm_module_forward.1
$region0: #{lstm_module_forward.1}
  #allocation0 [shape = 'u32[]', space=smem, size = 0x4, offset = 0x4, fixed_abs, tag = 'smem constant byte address 0x4 - core index']
  #allocation1 [shape = 'u32[144,128]{1,0:T(1,128)}', space=vmem, size = 0x12000, scoped, tag = 'internal scratch']
  #allocation2 [shape = 'f32[32,32]{1,0:T(8,128)}', space=vmem, size = 0x4000, scoped, tag = 'scratch operand']
  #allocation3 [shape = 'f32[32,32]{1,0:T(8,128)}', space=vmem, size = 0x4000, scoped, tag = 'scratch operand']
  %s0 = inlined_call_operand.vmem [shape: f32[32,32], index: 0, kind: input, shape index: {}]
  %s1 = inlined_call_operand.vmem [shape: f32[32,256], index: 1, kind: input, shape index: {}]
  %s2 = inlined_call_operand.vmem [shape: f32[2,32,128], index: 2, kind: input, shape index: {}]
  %s3 = inlined_call_operand.vmem [shape: f32[1,256], index: 3, kind: input, shape index: {}]
  %s4 = inlined_call_operand.vmem [shape: f32[2,32,256], index: 4, kind: input, shape index: {}]
  %s5 = inlined_call_operand.vmem [shape: f32[2,32,128], index: 5, kind: input, shape index: {}]
  %s6 = inlined_call_operand.vmem [shape: f32[1,256], index: 6, kind: input, shape index: {}]
  %s7 = inlined_call_operand.vmem [shape: f32[256,32], index: 7, kind: input, shape index: {}]
  %s8 = inlined_call_operand.vmem [shape: f32[1,32], index: 8, kind: input, shape index: {}]
  %s9 = inlined_call_operand.hbm [shape: f32[2,32], index: 9, kind: output, shape index: {}]
  %s10 = sld [smem:[#allocation0]]
  $region46: #{lstm_module_forward.1} parent=0
    _
  %s12 = ssub.s32 1, %s10
  %s13 = scalar_select 0, %s12, %s10
  $region1: #{lstm_module_forward.1} parent=0
    #allocation4 [shape = 'u8[1024]{0}', space=vmem, size = 0x400, scoped, tag = 'output window, operand 0, single buffered']
    #allocation5 [shape = 's32[1]{0}', space=sflag, size = 0x4, scoped, tag = 'scoped memory for lstm_module_forward.1']
    %14 = vsyncpa [#allocation5], 0
    // Predicated region
    $region2: #{lstm_module_forward.1} parent=1 // pred_check
      _
    $region3: #{lstm_module_forward.1} parent=1 // pred_check_branch
      %16 = sbr.rel (0) target = $region5
    $region4: #{lstm_module_forward.1} parent=1 // pred_region
      _
    $region5: #{lstm_module_forward.1} parent=1 // pred_fallthru
      _
    // Predicated region
    $region6: #{lstm_module_forward.1} parent=1 // pred_check
      _
    $region7: #{lstm_module_forward.1} parent=1 // pred_check_branch
      %18 = sbr.rel (0) target = $region9
    $region8: #{lstm_module_forward.1} parent=1 // pred_region
      _
    $region9: #{lstm_module_forward.1} parent=1 // pred_fallthru
      _
    // Predicated region
    $region10: #{lstm_module_forward.1} parent=1 // pred_check
      _
    $region11: #{lstm_module_forward.1} parent=1 // pred_check_branch
      %20 = sbr.rel (0) target = $region13
    $region12: #{lstm_module_forward.1} parent=1 // pred_region
      _
    $region13: #{lstm_module_forward.1} parent=1 // pred_fallthru
      _
    // Predicated region
    $region14: #{lstm_module_forward.1} parent=1 // pred_check
      _
    $region15: #{lstm_module_forward.1} parent=1 // pred_check_branch
      %22 = sbr.rel (0) target = $region17
    $region16: #{lstm_module_forward.1} parent=1 // pred_region
      _
    $region17: #{lstm_module_forward.1} parent=1 // pred_fallthru
      _
    // Predicated region
    $region18: #{lstm_module_forward.1} parent=1 // pred_check
      _
    $region19: #{lstm_module_forward.1} parent=1 // pred_check_branch
      %24 = sbr.rel (0) target = $region21
    $region20: #{lstm_module_forward.1} parent=1 // pred_region
      _
    $region21: #{lstm_module_forward.1} parent=1 // pred_fallthru
      _
    // Predicated region
    $region22: #{lstm_module_forward.1} parent=1 // pred_check
      _
    $region23: #{lstm_module_forward.1} parent=1 // pred_check_branch
      %26 = sbr.rel (0) target = $region25
    $region24: #{lstm_module_forward.1} parent=1 // pred_region
      _
    $region25: #{lstm_module_forward.1} parent=1 // pred_fallthru
      _
    // Predicated region
    $region26: #{lstm_module_forward.1} parent=1 // pred_check
      _
    $region27: #{lstm_module_forward.1} parent=1 // pred_check_branch
      %28 = sbr.rel (0) target = $region29
    $region28: #{lstm_module_forward.1} parent=1 // pred_region
      _
    $region29: #{lstm_module_forward.1} parent=1 // pred_fallthru
      _
    // Predicated region
    $region30: #{lstm_module_forward.1} parent=1 // pred_check
      _
    $region31: #{lstm_module_forward.1} parent=1 // pred_check_branch
      %30 = sbr.rel (0) target = $region33
    $region32: #{lstm_module_forward.1} parent=1 // pred_region
      _
    $region33: #{lstm_module_forward.1} parent=1 // pred_fallthru
      _
    // Predicated region
    $region34: #{lstm_module_forward.1} parent=1 // pred_check
      _
    $region35: #{lstm_module_forward.1} parent=1 // pred_check_branch
      %32 = sbr.rel (0) target = $region37
    $region36: #{lstm_module_forward.1} parent=1 // pred_region
      _
    $region37: #{lstm_module_forward.1} parent=1 // pred_fallthru
      _
    %v33 = vld [vmem:[%s0] sm:$0xff]
    %v34 = vld [vmem:[%s0 + $0x8] sm:$0xff]
    %v35 = vld [vmem:[%s0 + $0x10] sm:$0xff]
    %v36 = vld [vmem:[%s0 + $0x18] sm:$0xff]
    %v37 = vld [vmem:[%s1] sm:$0xff]
    %v38 = vld [vmem:[%s1 + $0x8] sm:$0xff]
    %v39 = vld [vmem:[%s1 + $0x10] sm:$0xff]
    %v40 = vld [vmem:[%s1 + $0x18] sm:$0xff]
    %v41 = vld [vmem:[%s1 + $0x20] sm:$0xff]
    %v42 = vld [vmem:[%s1 + $0x28] sm:$0xff]
    %v43 = vld [vmem:[%s1 + $0x30] sm:$0xff]
    %v44 = vld [vmem:[%s1 + $0x38] sm:$0xff]
    %v45 = vld [vmem:[%s3] sm:$0x3]
    %v47 = vlaneseq
    %v48 = vshrl.u32 %v47, 7
    %v49 = vsub.s32 0, %v48
    %v50 = vrot.slane %v45, %v49
    %v51 = vlaneseq
    %v52 = vshrl.u32 %v51, 7
    %v53 = vsub.s32 1, %v52
    %v54 = vrot.slane %v45, %v53
    %vm57 = vcmask 261120
    %v59 = vsel %vm57, %v33, 0
    %v62 = vsel %vm57, %v34, 0
    %v65 = vsel %vm57, %v35, 0
    %v68 = vsel %vm57, %v36, 0
    %70 = vmatprep.subr.mxu0 %v38
    %71 = vmatpush1.msra.mxu0 %v37
    %72 = vmatprep.subr.mxu0 %v40
    %73 = vmatpush1.msra.mxu0 %v39
    %74 = vmatprep.subr.mxu0 %v42
    %75 = vmatpush1.msra.mxu0 %v41
    %76 = vmatprep.subr.mxu0 %v44
    %77 = vmatpush1.msra.mxu0 %v43
    %78 = vmatprep.subr.mxu0 0.0
    %79 = vmatpush1.msra.mxu0 0.0
    %80 = vmatprep.subr.mxu0 0.0
    %81 = vmatpush1.msra.mxu0 0.0
    %82 = vmatprep.subr.mxu0 0.0
    %83 = vmatpush1.msra.mxu0 0.0
    %84 = vmatprep.subr.mxu0 0.0
    %85 = vmatpush1.msra.mxu0 0.0
    %86 = vmatprep.subr.mxu0 0.0
    %87 = vmatpush1.msra.mxu0 0.0
    %88 = vmatprep.subr.mxu0 0.0
    %89 = vmatpush1.msra.mxu0 0.0
    %90 = vmatprep.subr.mxu0 0.0
    %91 = vmatpush1.msra.mxu0 0.0
    %92 = vmatprep.subr.mxu0 0.0
    %93 = vmatpush1.msra.mxu0 0.0
    %94 = vmatprep.subr.mxu0 0.0
    %95 = vmatpush1.msra.mxu0 0.0
    %96 = vmatprep.subr.mxu0 0.0
    %97 = vmatpush1.msra.mxu0 0.0
    %98 = vmatprep.subr.mxu0 0.0
    %99 = vmatpush1.msra.mxu0 0.0
    %100 = vmatprep.subr.mxu0 0.0
    %101 = vmatpush1.msra.mxu0 0.0
    %102 = vmatprep.subr.mxu0 0.0
    %103 = vmatpush1.msra.mxu0 0.0
    %104 = vmatprep.subr.mxu0 0.0
    %105 = vmatpush1.msra.mxu0 0.0
    %106 = vmatprep.subr.mxu0 0.0
    %107 = vmatpush1.msra.mxu0 0.0
    %108 = vmatprep.subr.mxu0 0.0
    %109 = vmatpush1.msra.mxu0 0.0
    %110 = vmatprep.subr.mxu0 0.0
    %111 = vmatpush1.msra.mxu0 0.0
    %112 = vmatprep.subr.mxu0 0.0
    %113 = vmatpush1.msra.mxu0 0.0
    %114 = vmatprep.subr.mxu0 0.0
    %115 = vmatpush1.msra.mxu0 0.0
    %116 = vmatprep.subr.mxu0 0.0
    %117 = vmatpush1.msra.mxu0 0.0
    %118 = vmatprep.subr.mxu0 0.0
    %119 = vmatpush1.msra.mxu0 0.0
    %120 = vmatprep.subr.mxu0 0.0
    %121 = vmatpush1.msra.mxu0 0.0
    %122 = vmatprep.subr.mxu0 0.0
    %123 = vmatpush1.msra.mxu0 0.0
    %124 = vmatprep.subr.mxu0 0.0
    %125 = vmatpush1.msra.mxu0 0.0
    %126 = vmatprep.subr.mxu0 0.0
    %127 = vmatpush1.msra.mxu0 0.0
    %128 = vmatprep.subr.mxu0 0.0
    %129 = vmatpush1.msra.mxu0 0.0
    %130 = vmatprep.subr.mxu0 0.0
    %131 = vmatpush1.msra.mxu0 0.0
    %132 = vmatprep.subr.mxu0 0.0
    %133 = vmatpush1.msra.mxu0 0.0
    %134 = vmatprep.mubr.f32.mxu0 0.0
    %135 = vmatmul.mubr.f32.gmra.mrb[0].mxu0 %v59
    %v136 = vpop.f32.mrb[0].mxu0
    %v137 = vadd.f32 %v50, %v136
    %v138 = vpop.f32.mrb[0].mxu0
    %v139 = vadd.f32 %v54, %v138
    %140 = vmatprep.mubr.f32.mxu0 0.0
    %141 = vmatmul.mubr.f32.gmra.mrb[0].mxu0 %v62
    %v142 = vpop.f32.mrb[0].mxu0
    %v143 = vadd.f32 %v50, %v142
    %v144 = vpop.f32.mrb[0].mxu0
    %v145 = vadd.f32 %v54, %v144
    %146 = vmatprep.mubr.f32.mxu0 0.0
    %147 = vmatmul.mubr.f32.gmra.mrb[0].mxu0 %v65
    %v148 = vpop.f32.mrb[0].mxu0
    %v149 = vadd.f32 %v50, %v148
    %v150 = vpop.f32.mrb[0].mxu0
    %v151 = vadd.f32 %v54, %v150
    %152 = vmatprep.mubr.f32.mxu0 0.0
    %153 = vmatmul.mubr.f32.gmra.mrb[0].mxu0 %v68
    %v154 = vpop.f32.mrb[0].mxu0
    %v155 = vadd.f32 %v50, %v154
    %v156 = vpop.f32.mrb[0].mxu0
    %v157 = vadd.f32 %v54, %v156
    %158 = vdwg.mxu0
    %v159 = vld [vmem:[%s2] sm:$0xff]
    %v160 = vld [vmem:[%s2 + $0x8] sm:$0xff]
    %v161 = vld [vmem:[%s2 + $0x10] sm:$0xff]
    %v162 = vld [vmem:[%s2 + $0x18] sm:$0xff]
    %s163 = scalar_lea.vmem %s2, 32
    %v164 = vld [vmem:[%s163] sm:$0xff]
    %v165 = vld [vmem:[%s163 + $0x8] sm:$0xff]
    %v166 = vld [vmem:[%s163 + $0x10] sm:$0xff]
    %v167 = vld [vmem:[%s163 + $0x18] sm:$0xff]
    %v169 = vsel %vm57, 0.0, 0
    %171 = vmatprep.subr.mxu0 0.0
    %172 = vmatpush1.msra.mxu0 %v159
    %173 = vmatprep.subr.mxu0 0.0
    %174 = vmatpush1.msra.mxu0 %v160
    %175 = vmatprep.subr.mxu0 0.0
    %176 = vmatpush1.msra.mxu0 %v161
    %177 = vmatprep.subr.mxu0 0.0
    %178 = vmatpush1.msra.mxu0 %v162
    %179 = vmatprep.subr.mxu0 0.0
    %180 = vmatpush1.msra.mxu0 0.0
    %181 = vmatprep.subr.mxu0 0.0
    %182 = vmatpush1.msra.mxu0 0.0
    %183 = vmatprep.subr.mxu0 0.0
    %184 = vmatpush1.msra.mxu0 0.0
    %185 = vmatprep.subr.mxu0 0.0
    %186 = vmatpush1.msra.mxu0 0.0
    %187 = vmatprep.subr.mxu0 0.0
    %188 = vmatpush1.msra.mxu0 0.0
    %189 = vmatprep.subr.mxu0 0.0
    %190 = vmatpush1.msra.mxu0 0.0
    %191 = vmatprep.subr.mxu0 0.0
    %192 = vmatpush1.msra.mxu0 0.0
    %193 = vmatprep.subr.mxu0 0.0
    %194 = vmatpush1.msra.mxu0 0.0
    %195 = vmatprep.subr.mxu0 0.0
    %196 = vmatpush1.msra.mxu0 0.0
    %197 = vmatprep.subr.mxu0 0.0
    %198 = vmatpush1.msra.mxu0 0.0
    %199 = vmatprep.subr.mxu0 0.0
    %200 = vmatpush1.msra.mxu0 0.0
    %201 = vmatprep.subr.mxu0 0.0
    %202 = vmatpush1.msra.mxu0 0.0
    %203 = vmatprep.subr.mxu0 0.0
    %204 = vmatpush1.msra.mxu0 0.0
    %205 = vmatprep.subr.mxu0 0.0
    %206 = vmatpush1.msra.mxu0 0.0
    %207 = vmatprep.subr.mxu0 0.0
    %208 = vmatpush1.msra.mxu0 0.0
    %209 = vmatprep.subr.mxu0 0.0
    %210 = vmatpush1.msra.mxu0 0.0
    %211 = vmatprep.subr.mxu0 0.0
    %212 = vmatpush1.msra.mxu0 0.0
    %213 = vmatprep.subr.mxu0 0.0
    %214 = vmatpush1.msra.mxu0 0.0
    %215 = vmatprep.subr.mxu0 0.0
    %216 = vmatpush1.msra.mxu0 0.0
    %217 = vmatprep.subr.mxu0 0.0
    %218 = vmatpush1.msra.mxu0 0.0
    %219 = vmatprep.subr.mxu0 0.0
    %220 = vmatpush1.msra.mxu0 0.0
    %221 = vmatprep.subr.mxu0 0.0
    %222 = vmatpush1.msra.mxu0 0.0
    %223 = vmatprep.subr.mxu0 0.0
    %224 = vmatpush1.msra.mxu0 0.0
    %225 = vmatprep.subr.mxu0 0.0
    %226 = vmatpush1.msra.mxu0 0.0
    %227 = vmatprep.subr.mxu0 0.0
    %228 = vmatpush1.msra.mxu0 0.0
    %229 = vmatprep.subr.mxu0 0.0
    %230 = vmatpush1.msra.mxu0 0.0
    %231 = vmatprep.subr.mxu0 0.0
    %232 = vmatpush1.msra.mxu0 0.0
    %233 = vmatprep.subr.mxu0 0.0
    %234 = vmatpush1.msra.mxu0 0.0
    %235 = vmatprep.mubr.f32.mxu0 0.0
    %236 = vmatmul.mubr.f32.gmra.mrb[0].mxu0 %v169
    %v237 = vpop.f32.mrb[0].mxu0
    %v238 = vadd.f32 0.0, %v237
    %v239 = vpop.f32.mrb[0].mxu0
    %240 = vdwg.mxu0
    %v241 = vadd.f32 %v137, %v238
    %242 = vmatprep.subr.mxu0 0.0
    %243 = vmatpush1.msra.mxu0 %v164
    %244 = vmatprep.subr.mxu0 0.0
    %245 = vmatpush1.msra.mxu0 %v165
    %246 = vmatprep.subr.mxu0 0.0
    %247 = vmatpush1.msra.mxu0 %v166
    %248 = vmatprep.subr.mxu0 0.0
    %249 = vmatpush1.msra.mxu0 %v167
    %250 = vmatprep.subr.mxu0 0.0
    %251 = vmatpush1.msra.mxu0 0.0
    %252 = vmatprep.subr.mxu0 0.0
    %253 = vmatpush1.msra.mxu0 0.0
    %254 = vmatprep.subr.mxu0 0.0
    %255 = vmatpush1.msra.mxu0 0.0
    %256 = vmatprep.subr.mxu0 0.0
    %257 = vmatpush1.msra.mxu0 0.0
    %258 = vmatprep.subr.mxu0 0.0
    %259 = vmatpush1.msra.mxu0 0.0
    %260 = vmatprep.subr.mxu0 0.0
    %261 = vmatpush1.msra.mxu0 0.0
    %262 = vmatprep.subr.mxu0 0.0
    %263 = vmatpush1.msra.mxu0 0.0
    %264 = vmatprep.subr.mxu0 0.0
    %265 = vmatpush1.msra.mxu0 0.0
    %266 = vmatprep.subr.mxu0 0.0
    %267 = vmatpush1.msra.mxu0 0.0
    %268 = vmatprep.subr.mxu0 0.0
    %269 = vmatpush1.msra.mxu0 0.0
    %270 = vmatprep.subr.mxu0 0.0
    %271 = vmatpush1.msra.mxu0 0.0
    %272 = vmatprep.subr.mxu0 0.0
    %273 = vmatpush1.msra.mxu0 0.0
    %274 = vmatprep.subr.mxu0 0.0
    %275 = vmatpush1.msra.mxu0 0.0
    %276 = vmatprep.subr.mxu0 0.0
    %277 = vmatpush1.msra.mxu0 0.0
    %278 = vmatprep.subr.mxu0 0.0
    %279 = vmatpush1.msra.mxu0 0.0
    %280 = vmatprep.subr.mxu0 0.0
    %281 = vmatpush1.msra.mxu0 0.0
    %282 = vmatprep.subr.mxu0 0.0
    %283 = vmatpush1.msra.mxu0 0.0
    %284 = vmatprep.subr.mxu0 0.0
    %285 = vmatpush1.msra.mxu0 0.0
    %286 = vmatprep.subr.mxu0 0.0
    %287 = vmatpush1.msra.mxu0 0.0
    %288 = vmatprep.subr.mxu0 0.0
    %289 = vmatpush1.msra.mxu0 0.0
    %290 = vmatprep.subr.mxu0 0.0
    %291 = vmatpush1.msra.mxu0 0.0
    %292 = vmatprep.subr.mxu0 0.0
    %293 = vmatpush1.msra.mxu0 0.0
    %294 = vmatprep.subr.mxu0 0.0
    %295 = vmatpush1.msra.mxu0 0.0
    %296 = vmatprep.subr.mxu0 0.0
    %297 = vmatpush1.msra.mxu0 0.0
    %298 = vmatprep.subr.mxu0 0.0
    %299 = vmatpush1.msra.mxu0 0.0
    %300 = vmatprep.subr.mxu0 0.0
    %301 = vmatpush1.msra.mxu0 0.0
    %302 = vmatprep.subr.mxu0 0.0
    %303 = vmatpush1.msra.mxu0 0.0
    %304 = vmatprep.subr.mxu0 0.0
    %305 = vmatpush1.msra.mxu0 0.0
    %306 = vmatprep.mubr.f32.mxu0 0.0
    %307 = vmatmul.mubr.f32.gmra.mrb[0].mxu0 %v169
    %v308 = vpop.f32.mrb[0].mxu0
    %v309 = vadd.f32 0.0, %v308
    %v310 = vpop.f32.mrb[0].mxu0
    %311 = vdwg.mxu0
    %v313 = vrot.slane %v309, 4
    %v315 = vadd.f32 %v157, %v313
    %v316 = vxor.u32 %v241, 2147483648
    %v317 = vmul.f32 %v316, 1.442695
    %v318 = vpow.pop %v317
    %v319 = vadd.f32 %v318, 1.0
    %v320 = vrcp.pop %v319
    %v321 = vmul.f32 1.0, %v320
    %v322 = vtanh.pop %v241
    %v323 = vmul.f32 %v321, 0.0
    %325 = vrot.lane.b32.xlu0 %v322, 64
    %v326 = vpop.permute.xlu0 %325
    %v328 = vmul.f32 %v321, %v326
    %330 = vrot.lane.b32.xlu0 %v328, 32
    %v331 = vpop.permute.xlu0 %330
    %v333 = vadd.f32 %v323, %v331
    %v334 = vtanh.pop %v333
    %336 = vrot.lane.b32.xlu0 %v334, 64
    %v337 = vpop.permute.xlu0 %336
    %v339 = vmul.f32 %v321, %v337
    %v340 = vxor.u32 %v315, 2147483648
    %v341 = vmul.f32 %v340, 1.442695
    %v342 = vpow.pop %v341
    %v343 = vadd.f32 %v342, 1.0
    %v344 = vrcp.pop %v343
    %v345 = vmul.f32 1.0, %v344
    %v346 = vtanh.pop %v315
    %v347 = vmul.f32 %v345, 0.0
    %349 = vrot.lane.b32.xlu0 %v346, 64
    %v350 = vpop.permute.xlu0 %349
    %v352 = vmul.f32 %v345, %v350
    %354 = vrot.lane.b32.xlu0 %v352, 32
    %v355 = vpop.permute.xlu0 %354
    %v357 = vadd.f32 %v347, %v355
    %v358 = vtanh.pop %v357
    %360 = vrot.lane.b32.xlu0 %v358, 64
    %v361 = vpop.permute.xlu0 %360
    %v363 = vmul.f32 %v345, %v361
    %365 = vrot.lane.b32.xlu0 %v339, 32
    %v366 = vpop.permute.xlu0 %365
    %vm368 = vcmask 257024
    %369 = vst.msk [vmem:[#allocation2] sm:$0xf] %vm368, %v366
    %371 = vrot.lane.b32.xlu0 %v363, 32
    %v372 = vpop.permute.xlu0 %371
    %vm374 = vcmask 261124
    %375 = vst.msk [vmem:[#allocation3 + $0x18] sm:$0xf0] %vm374, %v372
    %v376 = vsel %vm57, %v366, 0
    %378 = vmatprep.subr.mxu0 0.0
    %379 = vmatpush1.msra.mxu0 %v159
    %380 = vmatprep.subr.mxu0 0.0
    %381 = vmatpush1.msra.mxu0 %v160
    %382 = vmatprep.subr.mxu0 0.0
    %383 = vmatpush1.msra.mxu0 %v161
    %384 = vmatprep.subr.mxu0 0.0
    %385 = vmatpush1.msra.mxu0 %v162
    %386 = vmatprep.subr.mxu0 0.0
    %387 = vmatpush1.msra.mxu0 0.0
    %388 = vmatprep.subr.mxu0 0.0
    %389 = vmatpush1.msra.mxu0 0.0
    %390 = vmatprep.subr.mxu0 0.0
    %391 = vmatpush1.msra.mxu0 0.0
    %392 = vmatprep.subr.mxu0 0.0
    %393 = vmatpush1.msra.mxu0 0.0
    %394 = vmatprep.subr.mxu0 0.0
    %395 = vmatpush1.msra.mxu0 0.0
    %396 = vmatprep.subr.mxu0 0.0
    %397 = vmatpush1.msra.mxu0 0.0
    %398 = vmatprep.subr.mxu0 0.0
    %399 = vmatpush1.msra.mxu0 0.0
    %400 = vmatprep.subr.mxu0 0.0
    %401 = vmatpush1.msra.mxu0 0.0
    %402 = vmatprep.subr.mxu0 0.0
    %403 = vmatpush1.msra.mxu0 0.0
    %404 = vmatprep.subr.mxu0 0.0
    %405 = vmatpush1.msra.mxu0 0.0
    %406 = vmatprep.subr.mxu0 0.0
    %407 = vmatpush1.msra.mxu0 0.0
    %408 = vmatprep.subr.mxu0 0.0
    %409 = vmatpush1.msra.mxu0 0.0
    %410 = vmatprep.subr.mxu0 0.0
    %411 = vmatpush1.msra.mxu0 0.0
    %412 = vmatprep.subr.mxu0 0.0
    %413 = vmatpush1.msra.mxu0 0.0
    %414 = vmatprep.subr.mxu0 0.0
    %415 = vmatpush1.msra.mxu0 0.0
    %416 = vmatprep.subr.mxu0 0.0
    %417 = vmatpush1.msra.mxu0 0.0
    %418 = vmatprep.subr.mxu0 0.0
    %419 = vmatpush1.msra.mxu0 0.0
    %420 = vmatprep.subr.mxu0 0.0
    %421 = vmatpush1.msra.mxu0 0.0
    %422 = vmatprep.subr.mxu0 0.0
    %423 = vmatpush1.msra.mxu0 0.0
    %424 = vmatprep.subr.mxu0 0.0
    %425 = vmatpush1.msra.mxu0 0.0
    %426 = vmatprep.subr.mxu0 0.0
    %427 = vmatpush1.msra.mxu0 0.0
    %428 = vmatprep.subr.mxu0 0.0
    %429 = vmatpush1.msra.mxu0 0.0
    %430 = vmatprep.subr.mxu0 0.0
    %431 = vmatpush1.msra.mxu0 0.0
    %432 = vmatprep.subr.mxu0 0.0
    %433 = vmatpush1.msra.mxu0 0.0
    %434 = vmatprep.subr.mxu0 0.0
    %435 = vmatpush1.msra.mxu0 0.0
    %436 = vmatprep.subr.mxu0 0.0
    %437 = vmatpush1.msra.mxu0 0.0
    %438 = vmatprep.subr.mxu0 0.0
    %439 = vmatpush1.msra.mxu0 0.0
    %440 = vmatprep.subr.mxu0 0.0
    %441 = vmatpush1.msra.mxu0 0.0
    %442 = vmatprep.mubr.f32.mxu0 0.0
    %443 = vmatmul.mubr.f32.gmra.mrb[0].mxu0 %v376
    %v444 = vpop.f32.mrb[0].mxu0
    %v445 = vadd.f32 0.0, %v444
    %v446 = vpop.f32.mrb[0].mxu0
    %447 = vdwg.mxu0
    %v449 = vrot.slane %v445, 4
    %v451 = vadd.f32 %v137, %v449
    %v452 = vrot.slane %v363, 4
    %453 = vrot.lane.b32.xlu0 %v452, 32
    %v454 = vpop.permute.xlu0 %453
    %v455 = vsel %vm57, %v454, 0
    %457 = vmatprep.subr.mxu0 0.0
    %458 = vmatpush1.msra.mxu0 %v164
    %459 = vmatprep.subr.mxu0 0.0
    %460 = vmatpush1.msra.mxu0 %v165
    %461 = vmatprep.subr.mxu0 0.0
    %462 = vmatpush1.msra.mxu0 %v166
    %463 = vmatprep.subr.mxu0 0.0
    %464 = vmatpush1.msra.mxu0 %v167
    %465 = vmatprep.subr.mxu0 0.0
    %466 = vmatpush1.msra.mxu0 0.0
    %467 = vmatprep.subr.mxu0 0.0
    %468 = vmatpush1.msra.mxu0 0.0
    %469 = vmatprep.subr.mxu0 0.0
    %470 = vmatpush1.msra.mxu0 0.0
    %471 = vmatprep.subr.mxu0 0.0
    %472 = vmatpush1.msra.mxu0 0.0
    %473 = vmatprep.subr.mxu0 0.0
    %474 = vmatpush1.msra.mxu0 0.0
    %475 = vmatprep.subr.mxu0 0.0
    %476 = vmatpush1.msra.mxu0 0.0
    %477 = vmatprep.subr.mxu0 0.0
    %478 = vmatpush1.msra.mxu0 0.0
    %479 = vmatprep.subr.mxu0 0.0
    %480 = vmatpush1.msra.mxu0 0.0
    %481 = vmatprep.subr.mxu0 0.0
    %482 = vmatpush1.msra.mxu0 0.0
    %483 = vmatprep.subr.mxu0 0.0
    %484 = vmatpush1.msra.mxu0 0.0
    %485 = vmatprep.subr.mxu0 0.0
    %486 = vmatpush1.msra.mxu0 0.0
    %487 = vmatprep.subr.mxu0 0.0
    %488 = vmatpush1.msra.mxu0 0.0
    %489 = vmatprep.subr.mxu0 0.0
    %490 = vmatpush1.msra.mxu0 0.0
    %491 = vmatprep.subr.mxu0 0.0
    %492 = vmatpush1.msra.mxu0 0.0
    %493 = vmatprep.subr.mxu0 0.0
    %494 = vmatpush1.msra.mxu0 0.0
    %495 = vmatprep.subr.mxu0 0.0
    %496 = vmatpush1.msra.mxu0 0.0
    %497 = vmatprep.subr.mxu0 0.0
    %498 = vmatpush1.msra.mxu0 0.0
    %499 = vmatprep.subr.mxu0 0.0
    %500 = vmatpush1.msra.mxu0 0.0
    %501 = vmatprep.subr.mxu0 0.0
    %502 = vmatpush1.msra.mxu0 0.0
    %503 = vmatprep.subr.mxu0 0.0
    %504 = vmatpush1.msra.mxu0 0.0
    %505 = vmatprep.subr.mxu0 0.0
    %506 = vmatpush1.msra.mxu0 0.0
    %507 = vmatprep.subr.mxu0 0.0
    %508 = vmatpush1.msra.mxu0 0.0
    %509 = vmatprep.subr.mxu0 0.0
    %510 = vmatpush1.msra.mxu0 0.0
    %511 = vmatprep.subr.mxu0 0.0
    %512 = vmatpush1.msra.mxu0 0.0
    %513 = vmatprep.subr.mxu0 0.0
    %514 = vmatpush1.msra.mxu0 0.0
    %515 = vmatprep.subr.mxu0 0.0
    %516 = vmatpush1.msra.mxu0 0.0
    %517 = vmatprep.subr.mxu0 0.0
    %518 = vmatpush1.msra.mxu0 0.0
    %519 = vmatprep.subr.mxu0 0.0
    %520 = vmatpush1.msra.mxu0 0.0
    %521 = vmatprep.mubr.f32.mxu0 0.0
    %522 = vmatmul.mubr.f32.gmra.mrb[0].mxu0 %v455
    %v523 = vpop.f32.mrb[0].mxu0
    %v524 = vadd.f32 0.0, %v523
    %v525 = vpop.f32.mrb[0].mxu0
    %526 = vdwg.mxu0
    %v527 = vadd.f32 %v157, %v524
    %v528 = vxor.u32 %v451, 2147483648
    %v529 = vmul.f32 %v528, 1.442695
    %v530 = vpow.pop %v529
    %v531 = vadd.f32 %v530, 1.0
    %v532 = vrcp.pop %v531
    %v533 = vmul.f32 1.0, %v532
    %v534 = vtanh.pop %v451
    %v536 = vrot.slane %v333, 4
    %v538 = vmul.f32 %v533, %v536
    %540 = vrot.lane.b32.xlu0 %v534, 64
    %v541 = vpop.permute.xlu0 %540
    %v543 = vmul.f32 %v533, %v541
    %545 = vrot.lane.b32.xlu0 %v543, 32
    %v546 = vpop.permute.xlu0 %545
    %v548 = vadd.f32 %v538, %v546
    %v549 = vtanh.pop %v548
    %551 = vrot.lane.b32.xlu0 %v549, 64
    %v552 = vpop.permute.xlu0 %551
    %v554 = vmul.f32 %v533, %v552
    %v555 = vxor.u32 %v527, 2147483648
    %v556 = vmul.f32 %v555, 1.442695
    %v557 = vpow.pop %v556
    %v558 = vadd.f32 %v557, 1.0
    %v559 = vrcp.pop %v558
    %v560 = vmul.f32 1.0, %v559
    %v561 = vtanh.pop %v527
    %v563 = vrot.slane %v357, 4
    %v565 = vmul.f32 %v560, %v563
    %567 = vrot.lane.b32.xlu0 %v561, 64
    %v568 = vpop.permute.xlu0 %567
    %v570 = vmul.f32 %v560, %v568
    %572 = vrot.lane.b32.xlu0 %v570, 32
    %v573 = vpop.permute.xlu0 %572
    %v575 = vadd.f32 %v565, %v573
    %v576 = vtanh.pop %v575
    %578 = vrot.lane.b32.xlu0 %v576, 64
    %v579 = vpop.permute.xlu0 %578
    %v581 = vmul.f32 %v560, %v579
    %583 = vrot.lane.b32.xlu0 %v554, 32
    %v584 = vpop.permute.xlu0 %583
    %586 = vst.msk [vmem:[#allocation2] sm:$0xf0] %vm374, %v584
    %588 = vrot.lane.b32.xlu0 %v581, 32
    %v589 = vpop.permute.xlu0 %588
    %591 = vst.msk [vmem:[#allocation3 + $0x18] sm:$0xf] %vm368, %v589
    %v592 = vrot.slane %v554, 4
    %593 = vrot.lane.b32.xlu0 %v592, 32
    %v594 = vpop.permute.xlu0 %593
    %v595 = vsel %vm57, %v594, 0
    %597 = vmatprep.subr.mxu0 0.0
    %598 = vmatpush1.msra.mxu0 %v159
    %599 = vmatprep.subr.mxu0 0.0
    %600 = vmatpush1.msra.mxu0 %v160
    %601 = vmatprep.subr.mxu0 0.0
    %602 = vmatpush1.msra.mxu0 %v161
    %603 = vmatprep.subr.mxu0 0.0
    %604 = vmatpush1.msra.mxu0 %v162
    %605 = vmatprep.subr.mxu0 0.0
    %606 = vmatpush1.msra.mxu0 0.0
    %607 = vmatprep.subr.mxu0 0.0
    %608 = vmatpush1.msra.mxu0 0.0
    %609 = vmatprep.subr.mxu0 0.0
    %610 = vmatpush1.msra.mxu0 0.0
    %611 = vmatprep.subr.mxu0 0.0
    %612 = vmatpush1.msra.mxu0 0.0
    %613 = vmatprep.subr.mxu0 0.0
    %614 = vmatpush1.msra.mxu0 0.0
    %615 = vmatprep.subr.mxu0 0.0
    %616 = vmatpush1.msra.mxu0 0.0
    %617 = vmatprep.subr.mxu0 0.0
    %618 = vmatpush1.msra.mxu0 0.0
    %619 = vmatprep.subr.mxu0 0.0
    %620 = vmatpush1.msra.mxu0 0.0
    %621 = vmatprep.subr.mxu0 0.0
    %622 = vmatpush1.msra.mxu0 0.0
    %623 = vmatprep.subr.mxu0 0.0
    %624 = vmatpush1.msra.mxu0 0.0
    %625 = vmatprep.subr.mxu0 0.0
    %626 = vmatpush1.msra.mxu0 0.0
    %627 = vmatprep.subr.mxu0 0.0
    %628 = vmatpush1.msra.mxu0 0.0
    %629 = vmatprep.subr.mxu0 0.0
    %630 = vmatpush1.msra.mxu0 0.0
    %631 = vmatprep.subr.mxu0 0.0
    %632 = vmatpush1.msra.mxu0 0.0
    %633 = vmatprep.subr.mxu0 0.0
    %634 = vmatpush1.msra.mxu0 0.0
    %635 = vmatprep.subr.mxu0 0.0
    %636 = vmatpush1.msra.mxu0 0.0
    %637 = vmatprep.subr.mxu0 0.0
    %638 = vmatpush1.msra.mxu0 0.0
    %639 = vmatprep.subr.mxu0 0.0
    %640 = vmatpush1.msra.mxu0 0.0
    %641 = vmatprep.subr.mxu0 0.0
    %642 = vmatpush1.msra.mxu0 0.0
    %643 = vmatprep.subr.mxu0 0.0
    %644 = vmatpush1.msra.mxu0 0.0
    %645 = vmatprep.subr.mxu0 0.0
    %646 = vmatpush1.msra.mxu0 0.0
    %647 = vmatprep.subr.mxu0 0.0
    %648 = vmatpush1.msra.mxu0 0.0
    %649 = vmatprep.subr.mxu0 0.0
    %650 = vmatpush1.msra.mxu0 0.0
    %651 = vmatprep.subr.mxu0 0.0
    %652 = vmatpush1.msra.mxu0 0.0
    %653 = vmatprep.subr.mxu0 0.0
    %654 = vmatpush1.msra.mxu0 0.0
    %655 = vmatprep.subr.mxu0 0.0
    %656 = vmatpush1.msra.mxu0 0.0
    %657 = vmatprep.subr.mxu0 0.0
    %658 = vmatpush1.msra.mxu0 0.0
    %659 = vmatprep.subr.mxu0 0.0
    %660 = vmatpush1.msra.mxu0 0.0
    %661 = vmatprep.mubr.f32.mxu0 0.0
    %662 = vmatmul.mubr.f32.gmra.mrb[0].mxu0 %v595
    %v663 = vpop.f32.mrb[0].mxu0
    %v664 = vadd.f32 0.0, %v663
    %v665 = vpop.f32.mrb[0].mxu0
    %666 = vdwg.mxu0
    %v667 = vadd.f32 %v143, %v664
    %v668 = vsel %vm57, %v589, 0
    %670 = vmatprep.subr.mxu0 0.0
    %671 = vmatpush1.msra.mxu0 %v164
    %672 = vmatprep.subr.mxu0 0.0
    %673 = vmatpush1.msra.mxu0 %v165
    %674 = vmatprep.subr.mxu0 0.0
    %675 = vmatpush1.msra.mxu0 %v166
    %676 = vmatprep.subr.mxu0 0.0
    %677 = vmatpush1.msra.mxu0 %v167
    %678 = vmatprep.subr.mxu0 0.0
    %679 = vmatpush1.msra.mxu0 0.0
    %680 = vmatprep.subr.mxu0 0.0
    %681 = vmatpush1.msra.mxu0 0.0
    %682 = vmatprep.subr.mxu0 0.0
    %683 = vmatpush1.msra.mxu0 0.0
    %684 = vmatprep.subr.mxu0 0.0
    %685 = vmatpush1.msra.mxu0 0.0
    %686 = vmatprep.subr.mxu0 0.0
    %687 = vmatpush1.msra.mxu0 0.0
    %688 = vmatprep.subr.mxu0 0.0
    %689 = vmatpush1.msra.mxu0 0.0
    %690 = vmatprep.subr.mxu0 0.0
    %691 = vmatpush1.msra.mxu0 0.0
    %692 = vmatprep.subr.mxu0 0.0
    %693 = vmatpush1.msra.mxu0 0.0
    %694 = vmatprep.subr.mxu0 0.0
    %695 = vmatpush1.msra.mxu0 0.0
    %696 = vmatprep.subr.mxu0 0.0
    %697 = vmatpush1.msra.mxu0 0.0
    %698 = vmatprep.subr.mxu0 0.0
    %699 = vmatpush1.msra.mxu0 0.0
    %700 = vmatprep.subr.mxu0 0.0
    %701 = vmatpush1.msra.mxu0 0.0
    %702 = vmatprep.subr.mxu0 0.0
    %703 = vmatpush1.msra.mxu0 0.0
    %704 = vmatprep.subr.mxu0 0.0
    %705 = vmatpush1.msra.mxu0 0.0
    %706 = vmatprep.subr.mxu0 0.0
    %707 = vmatpush1.msra.mxu0 0.0
    %708 = vmatprep.subr.mxu0 0.0
    %709 = vmatpush1.msra.mxu0 0.0
    %710 = vmatprep.subr.mxu0 0.0
    %711 = vmatpush1.msra.mxu0 0.0
    %712 = vmatprep.subr.mxu0 0.0
    %713 = vmatpush1.msra.mxu0 0.0
    %714 = vmatprep.subr.mxu0 0.0
    %715 = vmatpush1.msra.mxu0 0.0
    %716 = vmatprep.subr.mxu0 0.0
    %717 = vmatpush1.msra.mxu0 0.0
    %718 = vmatprep.subr.mxu0 0.0
    %719 = vmatpush1.msra.mxu0 0.0
    %720 = vmatprep.subr.mxu0 0.0
    %721 = vmatpush1.msra.mxu0 0.0
    %722 = vmatprep.subr.mxu0 0.0
    %723 = vmatpush1.msra.mxu0 0.0
    %724 = vmatprep.subr.mxu0 0.0
    %725 = vmatpush1.msra.mxu0 0.0
    %726 = vmatprep.subr.mxu0 0.0
    %727 = vmatpush1.msra.mxu0 0.0
    %728 = vmatprep.subr.mxu0 0.0
    %729 = vmatpush1.msra.mxu0 0.0
    %730 = vmatprep.subr.mxu0 0.0
    %731 = vmatpush1.msra.mxu0 0.0
    %732 = vmatprep.subr.mxu0 0.0
    %733 = vmatpush1.msra.mxu0 0.0
    %734 = vmatprep.mubr.f32.mxu0 0.0
    %735 = vmatmul.mubr.f32.gmra.mrb[0].mxu0 %v668
    %v736 = vpop.f32.mrb[0].mxu0
    %v737 = vadd.f32 0.0, %v736
    %v738 = vpop.f32.mrb[0].mxu0
    %739 = vdwg.mxu0
    %v741 = vrot.slane %v737, 4
    %v743 = vadd.f32 %v151, %v741
    %v744 = vxor.u32 %v667, 2147483648
    %v745 = vmul.f32 %v744, 1.442695
    %v746 = vpow.pop %v745
    %v747 = vadd.f32 %v746, 1.0
    %v748 = vrcp.pop %v747
    %v749 = vmul.f32 1.0, %v748
    %v750 = vtanh.pop %v667
    %v752 = vrot.slane %v548, 4
    %v754 = vmul.f32 %v749, %v752
    %756 = vrot.lane.b32.xlu0 %v750, 64
    %v757 = vpop.permute.xlu0 %756
    %v759 = vmul.f32 %v749, %v757
    %761 = vrot.lane.b32.xlu0 %v759, 32
    %v762 = vpop.permute.xlu0 %761
    %v764 = vadd.f32 %v754, %v762
    %v765 = vtanh.pop %v764
    %767 = vrot.lane.b32.xlu0 %v765, 64
    %v768 = vpop.permute.xlu0 %767
    %v770 = vmul.f32 %v749, %v768
    %v771 = vxor.u32 %v743, 2147483648
    %v772 = vmul.f32 %v771, 1.442695
    %v773 = vpow.pop %v772
    %v774 = vadd.f32 %v773, 1.0
    %v775 = vrcp.pop %v774
    %v776 = vmul.f32 1.0, %v775
    %v777 = vtanh.pop %v743
    %v779 = vrot.slane %v575, 4
    %v781 = vmul.f32 %v776, %v779
    %783 = vrot.lane.b32.xlu0 %v777, 64
    %v784 = vpop.permute.xlu0 %783
    %v786 = vmul.f32 %v776, %v784
    %788 = vrot.lane.b32.xlu0 %v786, 32
    %v789 = vpop.permute.xlu0 %788
    %v791 = vadd.f32 %v781, %v789
    %v792 = vtanh.pop %v791
    %794 = vrot.lane.b32.xlu0 %v792, 64
    %v795 = vpop.permute.xlu0 %794
    %v797 = vmul.f32 %v776, %v795
    %799 = vrot.lane.b32.xlu0 %v770, 32
    %v800 = vpop.permute.xlu0 %799
    %802 = vst.msk [vmem:[#allocation2 + $0x8] sm:$0xf] %vm368, %v800
    %804 = vrot.lane.b32.xlu0 %v797, 32
    %v805 = vpop.permute.xlu0 %804
    %807 = vst.msk [vmem:[#allocation3 + $0x10] sm:$0xf0] %vm374, %v805
    %v808 = vsel %vm57, %v800, 0
    %810 = vmatprep.subr.mxu0 0.0
    %811 = vmatpush1.msra.mxu0 %v159
    %812 = vmatprep.subr.mxu0 0.0
    %813 = vmatpush1.msra.mxu0 %v160
    %814 = vmatprep.subr.mxu0 0.0
    %815 = vmatpush1.msra.mxu0 %v161
    %816 = vmatprep.subr.mxu0 0.0
    %817 = vmatpush1.msra.mxu0 %v162
    %818 = vmatprep.subr.mxu0 0.0
    %819 = vmatpush1.msra.mxu0 0.0
    %820 = vmatprep.subr.mxu0 0.0
    %821 = vmatpush1.msra.mxu0 0.0
    %822 = vmatprep.subr.mxu0 0.0
    %823 = vmatpush1.msra.mxu0 0.0
    %824 = vmatprep.subr.mxu0 0.0
    %825 = vmatpush1.msra.mxu0 0.0
    %826 = vmatprep.subr.mxu0 0.0
    %827 = vmatpush1.msra.mxu0 0.0
    %828 = vmatprep.subr.mxu0 0.0
    %829 = vmatpush1.msra.mxu0 0.0
    %830 = vmatprep.subr.mxu0 0.0
    %831 = vmatpush1.msra.mxu0 0.0
    %832 = vmatprep.subr.mxu0 0.0
    %833 = vmatpush1.msra.mxu0 0.0
    %834 = vmatprep.subr.mxu0 0.0
    %835 = vmatpush1.msra.mxu0 0.0
    %836 = vmatprep.subr.mxu0 0.0
    %837 = vmatpush1.msra.mxu0 0.0
    %838 = vmatprep.subr.mxu0 0.0
    %839 = vmatpush1.msra.mxu0 0.0
    %840 = vmatprep.subr.mxu0 0.0
    %841 = vmatpush1.msra.mxu0 0.0
    %842 = vmatprep.subr.mxu0 0.0
    %843 = vmatpush1.msra.mxu0 0.0
    %844 = vmatprep.subr.mxu0 0.0
    %845 = vmatpush1.msra.mxu0 0.0
    %846 = vmatprep.subr.mxu0 0.0
    %847 = vmatpush1.msra.mxu0 0.0
    %848 = vmatprep.subr.mxu0 0.0
    %849 = vmatpush1.msra.mxu0 0.0
    %850 = vmatprep.subr.mxu0 0.0
    %851 = vmatpush1.msra.mxu0 0.0
    %852 = vmatprep.subr.mxu0 0.0
    %853 = vmatpush1.msra.mxu0 0.0
    %854 = vmatprep.subr.mxu0 0.0
    %855 = vmatpush1.msra.mxu0 0.0
    %856 = vmatprep.subr.mxu0 0.0
    %857 = vmatpush1.msra.mxu0 0.0
    %858 = vmatprep.subr.mxu0 0.0
    %859 = vmatpush1.msra.mxu0 0.0
    %860 = vmatprep.subr.mxu0 0.0
    %861 = vmatpush1.msra.mxu0 0.0
    %862 = vmatprep.subr.mxu0 0.0
    %863 = vmatpush1.msra.mxu0 0.0
    %864 = vmatprep.subr.mxu0 0.0
    %865 = vmatpush1.msra.mxu0 0.0
    %866 = vmatprep.subr.mxu0 0.0
    %867 = vmatpush1.msra.mxu0 0.0
    %868 = vmatprep.subr.mxu0 0.0
    %869 = vmatpush1.msra.mxu0 0.0
    %870 = vmatprep.subr.mxu0 0.0
    %871 = vmatpush1.msra.mxu0 0.0
    %872 = vmatprep.subr.mxu0 0.0
    %873 = vmatpush1.msra.mxu0 0.0
    %874 = vmatprep.mubr.f32.mxu0 0.0
    %875 = vmatmul.mubr.f32.gmra.mrb[0].mxu0 %v808
    %v876 = vpop.f32.mrb[0].mxu0
    %v877 = vadd.f32 0.0, %v876
    %v878 = vpop.f32.mrb[0].mxu0
    %879 = vdwg.mxu0
    %v881 = vrot.slane %v877, 4
    %v883 = vadd.f32 %v143, %v881
    %v884 = vrot.slane %v797, 4
    %885 = vrot.lane.b32.xlu0 %v884, 32
    %v886 = vpop.permute.xlu0 %885
    %v887 = vsel %vm57, %v886, 0
    %889 = vmatprep.subr.mxu0 0.0
    %890 = vmatpush1.msra.mxu0 %v164
    %891 = vmatprep.subr.mxu0 0.0
    %892 = vmatpush1.msra.mxu0 %v165
    %893 = vmatprep.subr.mxu0 0.0
    %894 = vmatpush1.msra.mxu0 %v166
    %895 = vmatprep.subr.mxu0 0.0
    %896 = vmatpush1.msra.mxu0 %v167
    %897 = vmatprep.subr.mxu0 0.0
    %898 = vmatpush1.msra.mxu0 0.0
    %899 = vmatprep.subr.mxu0 0.0
    %900 = vmatpush1.msra.mxu0 0.0
    %901 = vmatprep.subr.mxu0 0.0
    %902 = vmatpush1.msra.mxu0 0.0
    %903 = vmatprep.subr.mxu0 0.0
    %904 = vmatpush1.msra.mxu0 0.0
    %905 = vmatprep.subr.mxu0 0.0
    %906 = vmatpush1.msra.mxu0 0.0
    %907 = vmatprep.subr.mxu0 0.0
    %908 = vmatpush1.msra.mxu0 0.0
    %909 = vmatprep.subr.mxu0 0.0
    %910 = vmatpush1.msra.mxu0 0.0
    %911 = vmatprep.subr.mxu0 0.0
    %912 = vmatpush1.msra.mxu0 0.0
    %913 = vmatprep.subr.mxu0 0.0
    %914 = vmatpush1.msra.mxu0 0.0
    %915 = vmatprep.subr.mxu0 0.0
    %916 = vmatpush1.msra.mxu0 0.0
    %917 = vmatprep.subr.mxu0 0.0
    %918 = vmatpush1.msra.mxu0 0.0
    %919 = vmatprep.subr.mxu0 0.0
    %920 = vmatpush1.msra.mxu0 0.0
    %921 = vmatprep.subr.mxu0 0.0
    %922 = vmatpush1.msra.mxu0 0.0
    %923 = vmatprep.subr.mxu0 0.0
    %924 = vmatpush1.msra.mxu0 0.0
    %925 = vmatprep.subr.mxu0 0.0
    %926 = vmatpush1.msra.mxu0 0.0
    %927 = vmatprep.subr.mxu0 0.0
    %928 = vmatpush1.msra.mxu0 0.0
    %929 = vmatprep.subr.mxu0 0.0
    %930 = vmatpush1.msra.mxu0 0.0
    %931 = vmatprep.subr.mxu0 0.0
    %932 = vmatpush1.msra.mxu0 0.0
    %933 = vmatprep.subr.mxu0 0.0
    %934 = vmatpush1.msra.mxu0 0.0
    %935 = vmatprep.subr.mxu0 0.0
    %936 = vmatpush1.msra.mxu0 0.0
    %937 = vmatprep.subr.mxu0 0.0
    %938 = vmatpush1.msra.mxu0 0.0
    %939 = vmatprep.subr.mxu0 0.0
    %940 = vmatpush1.msra.mxu0 0.0
    %941 = vmatprep.subr.mxu0 0.0
    %942 = vmatpush1.msra.mxu0 0.0
    %943 = vmatprep.subr.mxu0 0.0
    %944 = vmatpush1.msra.mxu0 0.0
    %945 = vmatprep.subr.mxu0 0.0
    %946 = vmatpush1.msra.mxu0 0.0
    %947 = vmatprep.subr.mxu0 0.0
    %948 = vmatpush1.msra.mxu0 0.0
    %949 = vmatprep.subr.mxu0 0.0
    %950 = vmatpush1.msra.mxu0 0.0
    %951 = vmatprep.subr.mxu0 0.0
    %952 = vmatpush1.msra.mxu0 0.0
    %953 = vmatprep.mubr.f32.mxu0 0.0
    %954 = vmatmul.mubr.f32.gmra.mrb[0].mxu0 %v887
    %v955 = vpop.f32.mrb[0].mxu0
    %v956 = vadd.f32 0.0, %v955
    %v957 = vpop.f32.mrb[0].mxu0
    %958 = vdwg.mxu0
    %v959 = vadd.f32 %v151, %v956
    %v960 = vxor.u32 %v883, 2147483648
    %v961 = vmul.f32 %v960, 1.442695
    %v962 = vpow.pop %v961
    %v963 = vadd.f32 %v962, 1.0
    %v964 = vrcp.pop %v963
    %v965 = vmul.f32 1.0, %v964
    %v966 = vtanh.pop %v883
    %v968 = vrot.slane %v764, 4
    %v970 = vmul.f32 %v965, %v968
    %972 = vrot.lane.b32.xlu0 %v966, 64
    %v973 = vpop.permute.xlu0 %972
    %v975 = vmul.f32 %v965, %v973
    %977 = vrot.lane.b32.xlu0 %v975, 32
    %v978 = vpop.permute.xlu0 %977
    %v980 = vadd.f32 %v970, %v978
    %v981 = vtanh.pop %v980
    %983 = vrot.lane.b32.xlu0 %v981, 64
    %v984 = vpop.permute.xlu0 %983
    %v986 = vmul.f32 %v965, %v984
    %v987 = vxor.u32 %v959, 2147483648
    %v988 = vmul.f32 %v987, 1.442695
    %v989 = vpow.pop %v988
    %v990 = vadd.f32 %v989, 1.0
    %v991 = vrcp.pop %v990
    %v992 = vmul.f32 1.0, %v991
    %v993 = vtanh.pop %v959
    %v995 = vrot.slane %v791, 4
    %v997 = vmul.f32 %v992, %v995
    %999 = vrot.lane.b32.xlu0 %v993, 64
    %v1000 = vpop.permute.xlu0 %999
    %v1002 = vmul.f32 %v992, %v1000
    %1004 = vrot.lane.b32.xlu0 %v1002, 32
    %v1005 = vpop.permute.xlu0 %1004
    %v1007 = vadd.f32 %v997, %v1005
    %v1008 = vtanh.pop %v1007
    %1010 = vrot.lane.b32.xlu0 %v1008, 64
    %v1011 = vpop.permute.xlu0 %1010
    %v1013 = vmul.f32 %v992, %v1011
    %1015 = vrot.lane.b32.xlu0 %v986, 32
    %v1016 = vpop.permute.xlu0 %1015
    %1018 = vst.msk [vmem:[#allocation2 + $0x8] sm:$0xf0] %vm374, %v1016
    %1020 = vrot.lane.b32.xlu0 %v1013, 32
    %v1021 = vpop.permute.xlu0 %1020
    %1023 = vst.msk [vmem:[#allocation3 + $0x10] sm:$0xf] %vm368, %v1021
    %v1024 = vrot.slane %v986, 4
    %1025 = vrot.lane.b32.xlu0 %v1024, 32
    %v1026 = vpop.permute.xlu0 %1025
    %v1027 = vsel %vm57, %v1026, 0
    %1029 = vmatprep.subr.mxu0 0.0
    %1030 = vmatpush1.msra.mxu0 %v159
    %1031 = vmatprep.subr.mxu0 0.0
    %1032 = vmatpush1.msra.mxu0 %v160
    %1033 = vmatprep.subr.mxu0 0.0
    %1034 = vmatpush1.msra.mxu0 %v161
    %1035 = vmatprep.subr.mxu0 0.0
    %1036 = vmatpush1.msra.mxu0 %v162
    %1037 = vmatprep.subr.mxu0 0.0
    %1038 = vmatpush1.msra.mxu0 0.0
    %1039 = vmatprep.subr.mxu0 0.0
    %1040 = vmatpush1.msra.mxu0 0.0
    %1041 = vmatprep.subr.mxu0 0.0
    %1042 = vmatpush1.msra.mxu0 0.0
    %1043 = vmatprep.subr.mxu0 0.0
    %1044 = vmatpush1.msra.mxu0 0.0
    %1045 = vmatprep.subr.mxu0 0.0
    %1046 = vmatpush1.msra.mxu0 0.0
    %1047 = vmatprep.subr.mxu0 0.0
    %1048 = vmatpush1.msra.mxu0 0.0
    %1049 = vmatprep.subr.mxu0 0.0
    %1050 = vmatpush1.msra.mxu0 0.0
    %1051 = vmatprep.subr.mxu0 0.0
    %1052 = vmatpush1.msra.mxu0 0.0
    %1053 = vmatprep.subr.mxu0 0.0
    %1054 = vmatpush1.msra.mxu0 0.0
    %1055 = vmatprep.subr.mxu0 0.0
    %1056 = vmatpush1.msra.mxu0 0.0
    %1057 = vmatprep.subr.mxu0 0.0
    %1058 = vmatpush1.msra.mxu0 0.0
    %1059 = vmatprep.subr.mxu0 0.0
    %1060 = vmatpush1.msra.mxu0 0.0
    %1061 = vmatprep.subr.mxu0 0.0
    %1062 = vmatpush1.msra.mxu0 0.0
    %1063 = vmatprep.subr.mxu0 0.0
    %1064 = vmatpush1.msra.mxu0 0.0
    %1065 = vmatprep.subr.mxu0 0.0
    %1066 = vmatpush1.msra.mxu0 0.0
    %1067 = vmatprep.subr.mxu0 0.0
    %1068 = vmatpush1.msra.mxu0 0.0
    %1069 = vmatprep.subr.mxu0 0.0
    %1070 = vmatpush1.msra.mxu0 0.0
    %1071 = vmatprep.subr.mxu0 0.0
    %1072 = vmatpush1.msra.mxu0 0.0
    %1073 = vmatprep.subr.mxu0 0.0
    %1074 = vmatpush1.msra.mxu0 0.0
    %1075 = vmatprep.subr.mxu0 0.0
    %1076 = vmatpush1.msra.mxu0 0.0
    %1077 = vmatprep.subr.mxu0 0.0
    %1078 = vmatpush1.msra.mxu0 0.0
    %1079 = vmatprep.subr.mxu0 0.0
    %1080 = vmatpush1.msra.mxu0 0.0
    %1081 = vmatprep.subr.mxu0 0.0
    %1082 = vmatpush1.msra.mxu0 0.0
    %1083 = vmatprep.subr.mxu0 0.0
    %1084 = vmatpush1.msra.mxu0 0.0
    %1085 = vmatprep.subr.mxu0 0.0
    %1086 = vmatpush1.msra.mxu0 0.0
    %1087 = vmatprep.subr.mxu0 0.0
    %1088 = vmatpush1.msra.mxu0 0.0
    %1089 = vmatprep.subr.mxu0 0.0
    %1090 = vmatpush1.msra.mxu0 0.0
    %1091 = vmatprep.subr.mxu0 0.0
    %1092 = vmatpush1.msra.mxu0 0.0
    %1093 = vmatprep.mubr.f32.mxu0 0.0
    %1094 = vmatmul.mubr.f32.gmra.mrb[0].mxu0 %v1027
    %v1095 = vpop.f32.mrb[0].mxu0
    %v1096 = vadd.f32 0.0, %v1095
    %v1097 = vpop.f32.mrb[0].mxu0
    %1098 = vdwg.mxu0
    %v1099 = vadd.f32 %v149, %v1096
    %v1100 = vsel %vm57, %v1021, 0
    %1102 = vmatprep.subr.mxu0 0.0
    %1103 = vmatpush1.msra.mxu0 %v164
    %1104 = vmatprep.subr.mxu0 0.0
    %1105 = vmatpush1.msra.mxu0 %v165
    %1106 = vmatprep.subr.mxu0 0.0
    %1107 = vmatpush1.msra.mxu0 %v166
    %1108 = vmatprep.subr.mxu0 0.0
    %1109 = vmatpush1.msra.mxu0 %v167
    %1110 = vmatprep.subr.mxu0 0.0
    %1111 = vmatpush1.msra.mxu0 0.0
    %1112 = vmatprep.subr.mxu0 0.0
    %1113 = vmatpush1.msra.mxu0 0.0
    %1114 = vmatprep.subr.mxu0 0.0
    %1115 = vmatpush1.msra.mxu0 0.0
    %1116 = vmatprep.subr.mxu0 0.0
    %1117 = vmatpush1.msra.mxu0 0.0
    %1118 = vmatprep.subr.mxu0 0.0
    %1119 = vmatpush1.msra.mxu0 0.0
    %1120 = vmatprep.subr.mxu0 0.0
    %1121 = vmatpush1.msra.mxu0 0.0
    %1122 = vmatprep.subr.mxu0 0.0
    %1123 = vmatpush1.msra.mxu0 0.0
    %1124 = vmatprep.subr.mxu0 0.0
    %1125 = vmatpush1.msra.mxu0 0.0
    %1126 = vmatprep.subr.mxu0 0.0
    %1127 = vmatpush1.msra.mxu0 0.0
    %1128 = vmatprep.subr.mxu0 0.0
    %1129 = vmatpush1.msra.mxu0 0.0
    %1130 = vmatprep.subr.mxu0 0.0
    %1131 = vmatpush1.msra.mxu0 0.0
    %1132 = vmatprep.subr.mxu0 0.0
    %1133 = vmatpush1.msra.mxu0 0.0
    %1134 = vmatprep.subr.mxu0 0.0
    %1135 = vmatpush1.msra.mxu0 0.0
    %1136 = vmatprep.subr.mxu0 0.0
    %1137 = vmatpush1.msra.mxu0 0.0
    %1138 = vmatprep.subr.mxu0 0.0
    %1139 = vmatpush1.msra.mxu0 0.0
    %1140 = vmatprep.subr.mxu0 0.0
    %1141 = vmatpush1.msra.mxu0 0.0
    %1142 = vmatprep.subr.mxu0 0.0
    %1143 = vmatpush1.msra.mxu0 0.0
    %1144 = vmatprep.subr.mxu0 0.0
    %1145 = vmatpush1.msra.mxu0 0.0
    %1146 = vmatprep.subr.mxu0 0.0
    %1147 = vmatpush1.msra.mxu0 0.0
    %1148 = vmatprep.subr.mxu0 0.0
    %1149 = vmatpush1.msra.mxu0 0.0
    %1150 = vmatprep.subr.mxu0 0.0
    %1151 = vmatpush1.msra.mxu0 0.0
    %1152 = vmatprep.subr.mxu0 0.0
    %1153 = vmatpush1.msra.mxu0 0.0
    %1154 = vmatprep.subr.mxu0 0.0
    %1155 = vmatpush1.msra.mxu0 0.0
    %1156 = vmatprep.subr.mxu0 0.0
    %1157 = vmatpush1.msra.mxu0 0.0
    %1158 = vmatprep.subr.mxu0 0.0
    %1159 = vmatpush1.msra.mxu0 0.0
    %1160 = vmatprep.subr.mxu0 0.0
    %1161 = vmatpush1.msra.mxu0 0.0
    %1162 = vmatprep.subr.mxu0 0.0
    %1163 = vmatpush1.msra.mxu0 0.0
    %1164 = vmatprep.subr.mxu0 0.0
    %1165 = vmatpush1.msra.mxu0 0.0
    %1166 = vmatprep.mubr.f32.mxu0 0.0
    %1167 = vmatmul.mubr.f32.gmra.mrb[0].mxu0 %v1100
    %v1168 = vpop.f32.mrb[0].mxu0
    %v1169 = vadd.f32 0.0, %v1168
    %v1170 = vpop.f32.mrb[0].mxu0
    %1171 = vdwg.mxu0
    %v1173 = vrot.slane %v1169, 4
    %v1175 = vadd.f32 %v145, %v1173
    %v1176 = vxor.u32 %v1099, 2147483648
    %v1177 = vmul.f32 %v1176, 1.442695
    %v1178 = vpow.pop %v1177
    %v1179 = vadd.f32 %v1178, 1.0
    %v1180 = vrcp.pop %v1179
    %v1181 = vmul.f32 1.0, %v1180
    %v1182 = vtanh.pop %v1099
    %v1184 = vrot.slane %v980, 4
    %v1186 = vmul.f32 %v1181, %v1184
    %1188 = vrot.lane.b32.xlu0 %v1182, 64
    %v1189 = vpop.permute.xlu0 %1188
    %v1191 = vmul.f32 %v1181, %v1189
    %1193 = vrot.lane.b32.xlu0 %v1191, 32
    %v1194 = vpop.permute.xlu0 %1193
    %v1196 = vadd.f32 %v1186, %v1194
    %v1197 = vtanh.pop %v1196
    %1199 = vrot.lane.b32.xlu0 %v1197, 64
    %v1200 = vpop.permute.xlu0 %1199
    %v1202 = vmul.f32 %v1181, %v1200
    %v1203 = vxor.u32 %v1175, 2147483648
    %v1204 = vmul.f32 %v1203, 1.442695
    %v1205 = vpow.pop %v1204
    %v1206 = vadd.f32 %v1205, 1.0
    %v1207 = vrcp.pop %v1206
    %v1208 = vmul.f32 1.0, %v1207
    %v1209 = vtanh.pop %v1175
    %v1211 = vrot.slane %v1007, 4
    %v1213 = vmul.f32 %v1208, %v1211
    %1215 = vrot.lane.b32.xlu0 %v1209, 64
    %v1216 = vpop.permute.xlu0 %1215
    %v1218 = vmul.f32 %v1208, %v1216
    %1220 = vrot.lane.b32.xlu0 %v1218, 32
    %v1221 = vpop.permute.xlu0 %1220
    %v1223 = vadd.f32 %v1213, %v1221
    %v1224 = vtanh.pop %v1223
    %1226 = vrot.lane.b32.xlu0 %v1224, 64
    %v1227 = vpop.permute.xlu0 %1226
    %v1229 = vmul.f32 %v1208, %v1227
    %1231 = vrot.lane.b32.xlu0 %v1202, 32
    %v1232 = vpop.permute.xlu0 %1231
    %1234 = vst.msk [vmem:[#allocation2 + $0x10] sm:$0xf] %vm368, %v1232
    %1236 = vrot.lane.b32.xlu0 %v1229, 32
    %v1237 = vpop.permute.xlu0 %1236
    %1239 = vst.msk [vmem:[#allocation3 + $0x8] sm:$0xf0] %vm374, %v1237
    %v1240 = vsel %vm57, %v1232, 0
    %1242 = vmatprep.subr.mxu0 0.0
    %1243 = vmatpush1.msra.mxu0 %v159
    %1244 = vmatprep.subr.mxu0 0.0
    %1245 = vmatpush1.msra.mxu0 %v160
    %1246 = vmatprep.subr.mxu0 0.0
    %1247 = vmatpush1.msra.mxu0 %v161
    %1248 = vmatprep.subr.mxu0 0.0
    %1249 = vmatpush1.msra.mxu0 %v162
    %1250 = vmatprep.subr.mxu0 0.0
    %1251 = vmatpush1.msra.mxu0 0.0
    %1252 = vmatprep.subr.mxu0 0.0
    %1253 = vmatpush1.msra.mxu0 0.0
    %1254 = vmatprep.subr.mxu0 0.0
    %1255 = vmatpush1.msra.mxu0 0.0
    %1256 = vmatprep.subr.mxu0 0.0
    %1257 = vmatpush1.msra.mxu0 0.0
    %1258 = vmatprep.subr.mxu0 0.0
    %1259 = vmatpush1.msra.mxu0 0.0
    %1260 = vmatprep.subr.mxu0 0.0
    %1261 = vmatpush1.msra.mxu0 0.0
    %1262 = vmatprep.subr.mxu0 0.0
    %1263 = vmatpush1.msra.mxu0 0.0
    %1264 = vmatprep.subr.mxu0 0.0
    %1265 = vmatpush1.msra.mxu0 0.0
    %1266 = vmatprep.subr.mxu0 0.0
    %1267 = vmatpush1.msra.mxu0 0.0
    %1268 = vmatprep.subr.mxu0 0.0
    %1269 = vmatpush1.msra.mxu0 0.0
    %1270 = vmatprep.subr.mxu0 0.0
    %1271 = vmatpush1.msra.mxu0 0.0
    %1272 = vmatprep.subr.mxu0 0.0
    %1273 = vmatpush1.msra.mxu0 0.0
    %1274 = vmatprep.subr.mxu0 0.0
    %1275 = vmatpush1.msra.mxu0 0.0
    %1276 = vmatprep.subr.mxu0 0.0
    %1277 = vmatpush1.msra.mxu0 0.0
    %1278 = vmatprep.subr.mxu0 0.0
    %1279 = vmatpush1.msra.mxu0 0.0
    %1280 = vmatprep.subr.mxu0 0.0
    %1281 = vmatpush1.msra.mxu0 0.0
    %1282 = vmatprep.subr.mxu0 0.0
    %1283 = vmatpush1.msra.mxu0 0.0
    %1284 = vmatprep.subr.mxu0 0.0
    %1285 = vmatpush1.msra.mxu0 0.0
    %1286 = vmatprep.subr.mxu0 0.0
    %1287 = vmatpush1.msra.mxu0 0.0
    %1288 = vmatprep.subr.mxu0 0.0
    %1289 = vmatpush1.msra.mxu0 0.0
    %1290 = vmatprep.subr.mxu0 0.0
    %1291 = vmatpush1.msra.mxu0 0.0
    %1292 = vmatprep.subr.mxu0 0.0
    %1293 = vmatpush1.msra.mxu0 0.0
    %1294 = vmatprep.subr.mxu0 0.0
    %1295 = vmatpush1.msra.mxu0 0.0
    %1296 = vmatprep.subr.mxu0 0.0
    %1297 = vmatpush1.msra.mxu0 0.0
    %1298 = vmatprep.subr.mxu0 0.0
    %1299 = vmatpush1.msra.mxu0 0.0
    %1300 = vmatprep.subr.mxu0 0.0
    %1301 = vmatpush1.msra.mxu0 0.0
    %1302 = vmatprep.subr.mxu0 0.0
    %1303 = vmatpush1.msra.mxu0 0.0
    %1304 = vmatprep.subr.mxu0 0.0
    %1305 = vmatpush1.msra.mxu0 0.0
    %1306 = vmatprep.mubr.f32.mxu0 0.0
    %1307 = vmatmul.mubr.f32.gmra.mrb[0].mxu0 %v1240
    %v1308 = vpop.f32.mrb[0].mxu0
    %v1309 = vadd.f32 0.0, %v1308
    %v1310 = vpop.f32.mrb[0].mxu0
    %1311 = vdwg.mxu0
    %v1313 = vrot.slane %v1309, 4
    %v1315 = vadd.f32 %v149, %v1313
    %v1316 = vrot.slane %v1229, 4
    %1317 = vrot.lane.b32.xlu0 %v1316, 32
    %v1318 = vpop.permute.xlu0 %1317
    %v1319 = vsel %vm57, %v1318, 0
    %1321 = vmatprep.subr.mxu0 0.0
    %1322 = vmatpush1.msra.mxu0 %v164
    %1323 = vmatprep.subr.mxu0 0.0
    %1324 = vmatpush1.msra.mxu0 %v165
    %1325 = vmatprep.subr.mxu0 0.0
    %1326 = vmatpush1.msra.mxu0 %v166
    %1327 = vmatprep.subr.mxu0 0.0
    %1328 = vmatpush1.msra.mxu0 %v167
    %1329 = vmatprep.subr.mxu0 0.0
    %1330 = vmatpush1.msra.mxu0 0.0
    %1331 = vmatprep.subr.mxu0 0.0
    %1332 = vmatpush1.msra.mxu0 0.0
    %1333 = vmatprep.subr.mxu0 0.0
    %1334 = vmatpush1.msra.mxu0 0.0
    %1335 = vmatprep.subr.mxu0 0.0
    %1336 = vmatpush1.msra.mxu0 0.0
    %1337 = vmatprep.subr.mxu0 0.0
    %1338 = vmatpush1.msra.mxu0 0.0
    %1339 = vmatprep.subr.mxu0 0.0
    %1340 = vmatpush1.msra.mxu0 0.0
    %1341 = vmatprep.subr.mxu0 0.0
    %1342 = vmatpush1.msra.mxu0 0.0
    %1343 = vmatprep.subr.mxu0 0.0
    %1344 = vmatpush1.msra.mxu0 0.0
    %1345 = vmatprep.subr.mxu0 0.0
    %1346 = vmatpush1.msra.mxu0 0.0
    %1347 = vmatprep.subr.mxu0 0.0
    %1348 = vmatpush1.msra.mxu0 0.0
    %1349 = vmatprep.subr.mxu0 0.0
    %1350 = vmatpush1.msra.mxu0 0.0
    %1351 = vmatprep.subr.mxu0 0.0
    %1352 = vmatpush1.msra.mxu0 0.0
    %1353 = vmatprep.subr.mxu0 0.0
    %1354 = vmatpush1.msra.mxu0 0.0
    %1355 = vmatprep.subr.mxu0 0.0
    %1356 = vmatpush1.msra.mxu0 0.0
    %1357 = vmatprep.subr.mxu0 0.0
    %1358 = vmatpush1.msra.mxu0 0.0
    %1359 = vmatprep.subr.mxu0 0.0
    %1360 = vmatpush1.msra.mxu0 0.0
    %1361 = vmatprep.subr.mxu0 0.0
    %1362 = vmatpush1.msra.mxu0 0.0
    %1363 = vmatprep.subr.mxu0 0.0
    %1364 = vmatpush1.msra.mxu0 0.0
    %1365 = vmatprep.subr.mxu0 0.0
    %1366 = vmatpush1.msra.mxu0 0.0
    %1367 = vmatprep.subr.mxu0 0.0
    %1368 = vmatpush1.msra.mxu0 0.0
    %1369 = vmatprep.subr.mxu0 0.0
    %1370 = vmatpush1.msra.mxu0 0.0
    %1371 = vmatprep.subr.mxu0 0.0
    %1372 = vmatpush1.msra.mxu0 0.0
    %1373 = vmatprep.subr.mxu0 0.0
    %1374 = vmatpush1.msra.mxu0 0.0
    %1375 = vmatprep.subr.mxu0 0.0
    %1376 = vmatpush1.msra.mxu0 0.0
    %1377 = vmatprep.subr.mxu0 0.0
    %1378 = vmatpush1.msra.mxu0 0.0
    %1379 = vmatprep.subr.mxu0 0.0
    %1380 = vmatpush1.msra.mxu0 0.0
    %1381 = vmatprep.subr.mxu0 0.0
    %1382 = vmatpush1.msra.mxu0 0.0
    %1383 = vmatprep.subr.mxu0 0.0
    %1384 = vmatpush1.msra.mxu0 0.0
    %1385 = vmatprep.mubr.f32.mxu0 0.0
    %1386 = vmatmul.mubr.f32.gmra.mrb[0].mxu0 %v1319
    %v1387 = vpop.f32.mrb[0].mxu0
    %v1388 = vadd.f32 0.0, %v1387
    %v1389 = vpop.f32.mrb[0].mxu0
    %1390 = vdwg.mxu0
    %v1391 = vadd.f32 %v145, %v1388
    %v1392 = vxor.u32 %v1315, 2147483648
    %v1393 = vmul.f32 %v1392, 1.442695
    %v1394 = vpow.pop %v1393
    %v1395 = vadd.f32 %v1394, 1.0
    %v1396 = vrcp.pop %v1395
    %v1397 = vmul.f32 1.0, %v1396
    %v1398 = vtanh.pop %v1315
    %v1400 = vrot.slane %v1196, 4
    %v1402 = vmul.f32 %v1397, %v1400
    %1404 = vrot.lane.b32.xlu0 %v1398, 64
    %v1405 = vpop.permute.xlu0 %1404
    %v1407 = vmul.f32 %v1397, %v1405
    %1409 = vrot.lane.b32.xlu0 %v1407, 32
    %v1410 = vpop.permute.xlu0 %1409
    %v1412 = vadd.f32 %v1402, %v1410
    %v1413 = vtanh.pop %v1412
    %1415 = vrot.lane.b32.xlu0 %v1413, 64
    %v1416 = vpop.permute.xlu0 %1415
    %v1418 = vmul.f32 %v1397, %v1416
    %v1419 = vxor.u32 %v1391, 2147483648
    %v1420 = vmul.f32 %v1419, 1.442695
    %v1421 = vpow.pop %v1420
    %v1422 = vadd.f32 %v1421, 1.0
    %v1423 = vrcp.pop %v1422
    %v1424 = vmul.f32 1.0, %v1423
    %v1425 = vtanh.pop %v1391
    %v1427 = vrot.slane %v1223, 4
    %v1429 = vmul.f32 %v1424, %v1427
    %1431 = vrot.lane.b32.xlu0 %v1425, 64
    %v1432 = vpop.permute.xlu0 %1431
    %v1434 = vmul.f32 %v1424, %v1432
    %1436 = vrot.lane.b32.xlu0 %v1434, 32
    %v1437 = vpop.permute.xlu0 %1436
    %v1439 = vadd.f32 %v1429, %v1437
    %v1440 = vtanh.pop %v1439
    %1442 = vrot.lane.b32.xlu0 %v1440, 64
    %v1443 = vpop.permute.xlu0 %1442
    %v1445 = vmul.f32 %v1424, %v1443
    %1447 = vrot.lane.b32.xlu0 %v1418, 32
    %v1448 = vpop.permute.xlu0 %1447
    %1450 = vst.msk [vmem:[#allocation2 + $0x10] sm:$0xf0] %vm374, %v1448
    %1452 = vrot.lane.b32.xlu0 %v1445, 32
    %v1453 = vpop.permute.xlu0 %1452
    %1455 = vst.msk [vmem:[#allocation3 + $0x8] sm:$0xf] %vm368, %v1453
    %v1456 = vrot.slane %v1418, 4
    %1457 = vrot.lane.b32.xlu0 %v1456, 32
    %v1458 = vpop.permute.xlu0 %1457
    %v1459 = vsel %vm57, %v1458, 0
    %1461 = vmatprep.subr.mxu0 0.0
    %1462 = vmatpush1.msra.mxu0 %v159
    %1463 = vmatprep.subr.mxu0 0.0
    %1464 = vmatpush1.msra.mxu0 %v160
    %1465 = vmatprep.subr.mxu0 0.0
    %1466 = vmatpush1.msra.mxu0 %v161
    %1467 = vmatprep.subr.mxu0 0.0
    %1468 = vmatpush1.msra.mxu0 %v162
    %1469 = vmatprep.subr.mxu0 0.0
    %1470 = vmatpush1.msra.mxu0 0.0
    %1471 = vmatprep.subr.mxu0 0.0
    %1472 = vmatpush1.msra.mxu0 0.0
    %1473 = vmatprep.subr.mxu0 0.0
    %1474 = vmatpush1.msra.mxu0 0.0
    %1475 = vmatprep.subr.mxu0 0.0
    %1476 = vmatpush1.msra.mxu0 0.0
    %1477 = vmatprep.subr.mxu0 0.0
    %1478 = vmatpush1.msra.mxu0 0.0
    %1479 = vmatprep.subr.mxu0 0.0
    %1480 = vmatpush1.msra.mxu0 0.0
    %1481 = vmatprep.subr.mxu0 0.0
    %1482 = vmatpush1.msra.mxu0 0.0
    %1483 = vmatprep.subr.mxu0 0.0
    %1484 = vmatpush1.msra.mxu0 0.0
    %1485 = vmatprep.subr.mxu0 0.0
    %1486 = vmatpush1.msra.mxu0 0.0
    %1487 = vmatprep.subr.mxu0 0.0
    %1488 = vmatpush1.msra.mxu0 0.0
    %1489 = vmatprep.subr.mxu0 0.0
    %1490 = vmatpush1.msra.mxu0 0.0
    %1491 = vmatprep.subr.mxu0 0.0
    %1492 = vmatpush1.msra.mxu0 0.0
    %1493 = vmatprep.subr.mxu0 0.0
    %1494 = vmatpush1.msra.mxu0 0.0
    %1495 = vmatprep.subr.mxu0 0.0
    %1496 = vmatpush1.msra.mxu0 0.0
    %1497 = vmatprep.subr.mxu0 0.0
    %1498 = vmatpush1.msra.mxu0 0.0
    %1499 = vmatprep.subr.mxu0 0.0
    %1500 = vmatpush1.msra.mxu0 0.0
    %1501 = vmatprep.subr.mxu0 0.0
    %1502 = vmatpush1.msra.mxu0 0.0
    %1503 = vmatprep.subr.mxu0 0.0
    %1504 = vmatpush1.msra.mxu0 0.0
    %1505 = vmatprep.subr.mxu0 0.0
    %1506 = vmatpush1.msra.mxu0 0.0
    %1507 = vmatprep.subr.mxu0 0.0
    %1508 = vmatpush1.msra.mxu0 0.0
    %1509 = vmatprep.subr.mxu0 0.0
    %1510 = vmatpush1.msra.mxu0 0.0
    %1511 = vmatprep.subr.mxu0 0.0
    %1512 = vmatpush1.msra.mxu0 0.0
    %1513 = vmatprep.subr.mxu0 0.0
    %1514 = vmatpush1.msra.mxu0 0.0
    %1515 = vmatprep.subr.mxu0 0.0
    %1516 = vmatpush1.msra.mxu0 0.0
    %1517 = vmatprep.subr.mxu0 0.0
    %1518 = vmatpush1.msra.mxu0 0.0
    %1519 = vmatprep.subr.mxu0 0.0
    %1520 = vmatpush1.msra.mxu0 0.0
    %1521 = vmatprep.subr.mxu0 0.0
    %1522 = vmatpush1.msra.mxu0 0.0
    %1523 = vmatprep.subr.mxu0 0.0
    %1524 = vmatpush1.msra.mxu0 0.0
    %1525 = vmatprep.mubr.f32.mxu0 0.0
    %1526 = vmatmul.mubr.f32.gmra.mrb[0].mxu0 %v1459
    %v1527 = vpop.f32.mrb[0].mxu0
    %v1528 = vadd.f32 0.0, %v1527
    %v1529 = vpop.f32.mrb[0].mxu0
    %1530 = vdwg.mxu0
    %v1531 = vadd.f32 %v155, %v1528
    %v1532 = vsel %vm57, %v1453, 0
    %1534 = vmatprep.subr.mxu0 0.0
    %1535 = vmatpush1.msra.mxu0 %v164
    %1536 = vmatprep.subr.mxu0 0.0
    %1537 = vmatpush1.msra.mxu0 %v165
    %1538 = vmatprep.subr.mxu0 0.0
    %1539 = vmatpush1.msra.mxu0 %v166
    %1540 = vmatprep.subr.mxu0 0.0
    %1541 = vmatpush1.msra.mxu0 %v167
    %1542 = vmatprep.subr.mxu0 0.0
    %1543 = vmatpush1.msra.mxu0 0.0
    %1544 = vmatprep.subr.mxu0 0.0
    %1545 = vmatpush1.msra.mxu0 0.0
    %1546 = vmatprep.subr.mxu0 0.0
    %1547 = vmatpush1.msra.mxu0 0.0
    %1548 = vmatprep.subr.mxu0 0.0
    %1549 = vmatpush1.msra.mxu0 0.0
    %1550 = vmatprep.subr.mxu0 0.0
    %1551 = vmatpush1.msra.mxu0 0.0
    %1552 = vmatprep.subr.mxu0 0.0
    %1553 = vmatpush1.msra.mxu0 0.0
    %1554 = vmatprep.subr.mxu0 0.0
    %1555 = vmatpush1.msra.mxu0 0.0
    %1556 = vmatprep.subr.mxu0 0.0
    %1557 = vmatpush1.msra.mxu0 0.0
    %1558 = vmatprep.subr.mxu0 0.0
    %1559 = vmatpush1.msra.mxu0 0.0
    %1560 = vmatprep.subr.mxu0 0.0
    %1561 = vmatpush1.msra.mxu0 0.0
    %1562 = vmatprep.subr.mxu0 0.0
    %1563 = vmatpush1.msra.mxu0 0.0
    %1564 = vmatprep.subr.mxu0 0.0
    %1565 = vmatpush1.msra.mxu0 0.0
    %1566 = vmatprep.subr.mxu0 0.0
    %1567 = vmatpush1.msra.mxu0 0.0
    %1568 = vmatprep.subr.mxu0 0.0
    %1569 = vmatpush1.msra.mxu0 0.0
    %1570 = vmatprep.subr.mxu0 0.0
    %1571 = vmatpush1.msra.mxu0 0.0
    %1572 = vmatprep.subr.mxu0 0.0
    %1573 = vmatpush1.msra.mxu0 0.0
    %1574 = vmatprep.subr.mxu0 0.0
    %1575 = vmatpush1.msra.mxu0 0.0
    %1576 = vmatprep.subr.mxu0 0.0
    %1577 = vmatpush1.msra.mxu0 0.0
    %1578 = vmatprep.subr.mxu0 0.0
    %1579 = vmatpush1.msra.mxu0 0.0
    %1580 = vmatprep.subr.mxu0 0.0
    %1581 = vmatpush1.msra.mxu0 0.0
    %1582 = vmatprep.subr.mxu0 0.0
    %1583 = vmatpush1.msra.mxu0 0.0
    %1584 = vmatprep.subr.mxu0 0.0
    %1585 = vmatpush1.msra.mxu0 0.0
    %1586 = vmatprep.subr.mxu0 0.0
    %1587 = vmatpush1.msra.mxu0 0.0
    %1588 = vmatprep.subr.mxu0 0.0
    %1589 = vmatpush1.msra.mxu0 0.0
    %1590 = vmatprep.subr.mxu0 0.0
    %1591 = vmatpush1.msra.mxu0 0.0
    %1592 = vmatprep.subr.mxu0 0.0
    %1593 = vmatpush1.msra.mxu0 0.0
    %1594 = vmatprep.subr.mxu0 0.0
    %1595 = vmatpush1.msra.mxu0 0.0
    %1596 = vmatprep.subr.mxu0 0.0
    %1597 = vmatpush1.msra.mxu0 0.0
    %1598 = vmatprep.mubr.f32.mxu0 0.0
    %1599 = vmatmul.mubr.f32.gmra.mrb[0].mxu0 %v1532
    %v1600 = vpop.f32.mrb[0].mxu0
    %v1601 = vadd.f32 0.0, %v1600
    %v1602 = vpop.f32.mrb[0].mxu0
    %1603 = vdwg.mxu0
    %v1605 = vrot.slane %v1601, 4
    %v1607 = vadd.f32 %v139, %v1605
    %v1608 = vxor.u32 %v1531, 2147483648
    %v1609 = vmul.f32 %v1608, 1.442695
    %v1610 = vpow.pop %v1609
    %v1611 = vadd.f32 %v1610, 1.0
    %v1612 = vrcp.pop %v1611
    %v1613 = vmul.f32 1.0, %v1612
    %v1614 = vtanh.pop %v1531
    %v1616 = vrot.slane %v1412, 4
    %v1618 = vmul.f32 %v1613, %v1616
    %1620 = vrot.lane.b32.xlu0 %v1614, 64
    %v1621 = vpop.permute.xlu0 %1620
    %v1623 = vmul.f32 %v1613, %v1621
    %1625 = vrot.lane.b32.xlu0 %v1623, 32
    %v1626 = vpop.permute.xlu0 %1625
    %v1628 = vadd.f32 %v1618, %v1626
    %v1629 = vtanh.pop %v1628
    %1631 = vrot.lane.b32.xlu0 %v1629, 64
    %v1632 = vpop.permute.xlu0 %1631
    %v1634 = vmul.f32 %v1613, %v1632
    %v1635 = vxor.u32 %v1607, 2147483648
    %v1636 = vmul.f32 %v1635, 1.442695
    %v1637 = vpow.pop %v1636
    %v1638 = vadd.f32 %v1637, 1.0
    %v1639 = vrcp.pop %v1638
    %v1640 = vmul.f32 1.0, %v1639
    %v1641 = vtanh.pop %v1607
    %v1643 = vrot.slane %v1439, 4
    %v1645 = vmul.f32 %v1640, %v1643
    %1647 = vrot.lane.b32.xlu0 %v1641, 64
    %v1648 = vpop.permute.xlu0 %1647
    %v1650 = vmul.f32 %v1640, %v1648
    %1652 = vrot.lane.b32.xlu0 %v1650, 32
    %v1653 = vpop.permute.xlu0 %1652
    %v1655 = vadd.f32 %v1645, %v1653
    %v1656 = vtanh.pop %v1655
    %1658 = vrot.lane.b32.xlu0 %v1656, 64
    %v1659 = vpop.permute.xlu0 %1658
    %v1661 = vmul.f32 %v1640, %v1659
    %1663 = vrot.lane.b32.xlu0 %v1634, 32
    %v1664 = vpop.permute.xlu0 %1663
    %1666 = vst.msk [vmem:[#allocation2 + $0x18] sm:$0xf] %vm368, %v1664
    %1668 = vrot.lane.b32.xlu0 %v1661, 32
    %v1669 = vpop.permute.xlu0 %1668
    %1671 = vst.msk [vmem:[#allocation3] sm:$0xf0] %vm374, %v1669
    %v1672 = vsel %vm57, %v1664, 0
    %1674 = vmatprep.subr.mxu0 0.0
    %1675 = vmatpush1.msra.mxu0 %v159
    %1676 = vmatprep.subr.mxu0 0.0
    %1677 = vmatpush1.msra.mxu0 %v160
    %1678 = vmatprep.subr.mxu0 0.0
    %1679 = vmatpush1.msra.mxu0 %v161
    %1680 = vmatprep.subr.mxu0 0.0
    %1681 = vmatpush1.msra.mxu0 %v162
    %1682 = vmatprep.subr.mxu0 0.0
    %1683 = vmatpush1.msra.mxu0 0.0
    %1684 = vmatprep.subr.mxu0 0.0
    %1685 = vmatpush1.msra.mxu0 0.0
    %1686 = vmatprep.subr.mxu0 0.0
    %1687 = vmatpush1.msra.mxu0 0.0
    %1688 = vmatprep.subr.mxu0 0.0
    %1689 = vmatpush1.msra.mxu0 0.0
    %1690 = vmatprep.subr.mxu0 0.0
    %1691 = vmatpush1.msra.mxu0 0.0
    %1692 = vmatprep.subr.mxu0 0.0
    %1693 = vmatpush1.msra.mxu0 0.0
    %1694 = vmatprep.subr.mxu0 0.0
    %1695 = vmatpush1.msra.mxu0 0.0
    %1696 = vmatprep.subr.mxu0 0.0
    %1697 = vmatpush1.msra.mxu0 0.0
    %1698 = vmatprep.subr.mxu0 0.0
    %1699 = vmatpush1.msra.mxu0 0.0
    %1700 = vmatprep.subr.mxu0 0.0
    %1701 = vmatpush1.msra.mxu0 0.0
    %1702 = vmatprep.subr.mxu0 0.0
    %1703 = vmatpush1.msra.mxu0 0.0
    %1704 = vmatprep.subr.mxu0 0.0
    %1705 = vmatpush1.msra.mxu0 0.0
    %1706 = vmatprep.subr.mxu0 0.0
    %1707 = vmatpush1.msra.mxu0 0.0
    %1708 = vmatprep.subr.mxu0 0.0
    %1709 = vmatpush1.msra.mxu0 0.0
    %1710 = vmatprep.subr.mxu0 0.0
    %1711 = vmatpush1.msra.mxu0 0.0
    %1712 = vmatprep.subr.mxu0 0.0
    %1713 = vmatpush1.msra.mxu0 0.0
    %1714 = vmatprep.subr.mxu0 0.0
    %1715 = vmatpush1.msra.mxu0 0.0
    %1716 = vmatprep.subr.mxu0 0.0
    %1717 = vmatpush1.msra.mxu0 0.0
    %1718 = vmatprep.subr.mxu0 0.0
    %1719 = vmatpush1.msra.mxu0 0.0
    %1720 = vmatprep.subr.mxu0 0.0
    %1721 = vmatpush1.msra.mxu0 0.0
    %1722 = vmatprep.subr.mxu0 0.0
    %1723 = vmatpush1.msra.mxu0 0.0
    %1724 = vmatprep.subr.mxu0 0.0
    %1725 = vmatpush1.msra.mxu0 0.0
    %1726 = vmatprep.subr.mxu0 0.0
    %1727 = vmatpush1.msra.mxu0 0.0
    %1728 = vmatprep.subr.mxu0 0.0
    %1729 = vmatpush1.msra.mxu0 0.0
    %1730 = vmatprep.subr.mxu0 0.0
    %1731 = vmatpush1.msra.mxu0 0.0
    %1732 = vmatprep.subr.mxu0 0.0
    %1733 = vmatpush1.msra.mxu0 0.0
    %1734 = vmatprep.subr.mxu0 0.0
    %1735 = vmatpush1.msra.mxu0 0.0
    %1736 = vmatprep.subr.mxu0 0.0
    %1737 = vmatpush1.msra.mxu0 0.0
    %1738 = vmatprep.mubr.f32.mxu0 0.0
    %1739 = vmatmul.mubr.f32.gmra.mrb[0].mxu0 %v1672
    %v1740 = vpop.f32.mrb[0].mxu0
    %v1741 = vadd.f32 0.0, %v1740
    %v1742 = vpop.f32.mrb[0].mxu0
    %1743 = vdwg.mxu0
    %v1745 = vrot.slane %v1741, 4
    %v1747 = vadd.f32 %v155, %v1745
    %v1748 = vrot.slane %v1661, 4
    %1749 = vrot.lane.b32.xlu0 %v1748, 32
    %v1750 = vpop.permute.xlu0 %1749
    %v1751 = vsel %vm57, %v1750, 0
    %1753 = vmatprep.subr.mxu0 0.0
    %1754 = vmatpush1.msra.mxu0 %v164
    %1755 = vmatprep.subr.mxu0 0.0
    %1756 = vmatpush1.msra.mxu0 %v165
    %1757 = vmatprep.subr.mxu0 0.0
    %1758 = vmatpush1.msra.mxu0 %v166
    %1759 = vmatprep.subr.mxu0 0.0
    %1760 = vmatpush1.msra.mxu0 %v167
    %1761 = vmatprep.subr.mxu0 0.0
    %1762 = vmatpush1.msra.mxu0 0.0
    %1763 = vmatprep.subr.mxu0 0.0
    %1764 = vmatpush1.msra.mxu0 0.0
    %1765 = vmatprep.subr.mxu0 0.0
    %1766 = vmatpush1.msra.mxu0 0.0
    %1767 = vmatprep.subr.mxu0 0.0
    %1768 = vmatpush1.msra.mxu0 0.0
    %1769 = vmatprep.subr.mxu0 0.0
    %1770 = vmatpush1.msra.mxu0 0.0
    %1771 = vmatprep.subr.mxu0 0.0
    %1772 = vmatpush1.msra.mxu0 0.0
    %1773 = vmatprep.subr.mxu0 0.0
    %1774 = vmatpush1.msra.mxu0 0.0
    %1775 = vmatprep.subr.mxu0 0.0
    %1776 = vmatpush1.msra.mxu0 0.0
    %1777 = vmatprep.subr.mxu0 0.0
    %1778 = vmatpush1.msra.mxu0 0.0
    %1779 = vmatprep.subr.mxu0 0.0
    %1780 = vmatpush1.msra.mxu0 0.0
    %1781 = vmatprep.subr.mxu0 0.0
    %1782 = vmatpush1.msra.mxu0 0.0
    %1783 = vmatprep.subr.mxu0 0.0
    %1784 = vmatpush1.msra.mxu0 0.0
    %1785 = vmatprep.subr.mxu0 0.0
    %1786 = vmatpush1.msra.mxu0 0.0
    %1787 = vmatprep.subr.mxu0 0.0
    %1788 = vmatpush1.msra.mxu0 0.0
    %1789 = vmatprep.subr.mxu0 0.0
    %1790 = vmatpush1.msra.mxu0 0.0
    %1791 = vmatprep.subr.mxu0 0.0
    %1792 = vmatpush1.msra.mxu0 0.0
    %1793 = vmatprep.subr.mxu0 0.0
    %1794 = vmatpush1.msra.mxu0 0.0
    %1795 = vmatprep.subr.mxu0 0.0
    %1796 = vmatpush1.msra.mxu0 0.0
    %1797 = vmatprep.subr.mxu0 0.0
    %1798 = vmatpush1.msra.mxu0 0.0
    %1799 = vmatprep.subr.mxu0 0.0
    %1800 = vmatpush1.msra.mxu0 0.0
    %1801 = vmatprep.subr.mxu0 0.0
    %1802 = vmatpush1.msra.mxu0 0.0
    %1803 = vmatprep.subr.mxu0 0.0
    %1804 = vmatpush1.msra.mxu0 0.0
    %1805 = vmatprep.subr.mxu0 0.0
    %1806 = vmatpush1.msra.mxu0 0.0
    %1807 = vmatprep.subr.mxu0 0.0
    %1808 = vmatpush1.msra.mxu0 0.0
    %1809 = vmatprep.subr.mxu0 0.0
    %1810 = vmatpush1.msra.mxu0 0.0
    %1811 = vmatprep.subr.mxu0 0.0
    %1812 = vmatpush1.msra.mxu0 0.0
    %1813 = vmatprep.subr.mxu0 0.0
    %1814 = vmatpush1.msra.mxu0 0.0
    %1815 = vmatprep.subr.mxu0 0.0
    %1816 = vmatpush1.msra.mxu0 0.0
    %1817 = vmatprep.mubr.f32.mxu0 0.0
    %1818 = vmatmul.mubr.f32.gmra.mrb[0].mxu0 %v1751
    %v1819 = vpop.f32.mrb[0].mxu0
    %v1820 = vadd.f32 0.0, %v1819
    %v1821 = vpop.f32.mrb[0].mxu0
    %1822 = vdwg.mxu0
    %v1823 = vadd.f32 %v139, %v1820
    %v1824 = vxor.u32 %v1747, 2147483648
    %v1825 = vmul.f32 %v1824, 1.442695
    %v1826 = vpow.pop %v1825
    %v1827 = vadd.f32 %v1826, 1.0
    %v1828 = vrcp.pop %v1827
    %v1829 = vmul.f32 1.0, %v1828
    %v1830 = vtanh.pop %v1747
    %v1832 = vrot.slane %v1628, 4
    %v1834 = vmul.f32 %v1829, %v1832
    %1836 = vrot.lane.b32.xlu0 %v1830, 64
    %v1837 = vpop.permute.xlu0 %1836
    %v1839 = vmul.f32 %v1829, %v1837
    %1841 = vrot.lane.b32.xlu0 %v1839, 32
    %v1842 = vpop.permute.xlu0 %1841
    %v1844 = vadd.f32 %v1834, %v1842
    %v1845 = vtanh.pop %v1844
    %1847 = vrot.lane.b32.xlu0 %v1845, 64
    %v1848 = vpop.permute.xlu0 %1847
    %v1850 = vmul.f32 %v1829, %v1848
    %v1851 = vxor.u32 %v1823, 2147483648
    %v1852 = vmul.f32 %v1851, 1.442695
    %v1853 = vpow.pop %v1852
    %v1854 = vadd.f32 %v1853, 1.0
    %v1855 = vrcp.pop %v1854
    %v1856 = vmul.f32 1.0, %v1855
    %v1857 = vtanh.pop %v1823
    %v1859 = vrot.slane %v1655, 4
    %v1861 = vmul.f32 %v1856, %v1859
    %1863 = vrot.lane.b32.xlu0 %v1857, 64
    %v1864 = vpop.permute.xlu0 %1863
    %v1866 = vmul.f32 %v1856, %v1864
    %1868 = vrot.lane.b32.xlu0 %v1866, 32
    %v1869 = vpop.permute.xlu0 %1868
    %v1871 = vadd.f32 %v1861, %v1869
    %v1872 = vtanh.pop %v1871
    %1874 = vrot.lane.b32.xlu0 %v1872, 64
    %v1875 = vpop.permute.xlu0 %1874
    %v1877 = vmul.f32 %v1856, %v1875
    %1879 = vrot.lane.b32.xlu0 %v1850, 32
    %v1880 = vpop.permute.xlu0 %1879
    %1882 = vst.msk [vmem:[#allocation2 + $0x18] sm:$0xf0] %vm374, %v1880
    %1884 = vrot.lane.b32.xlu0 %v1877, 32
    %v1885 = vpop.permute.xlu0 %1884
    %1887 = vst.msk [vmem:[#allocation3] sm:$0xf] %vm368, %v1885
    %v1888 = vld [vmem:[#allocation2] sm:$0xff]
    %v1889 = vld [vmem:[#allocation2 + $0x8] sm:$0xff]
    %v1890 = vld [vmem:[#allocation2 + $0x10] sm:$0xff]
    %v1891 = vld [vmem:[#allocation2 + $0x18] sm:$0xff]
    %v1892 = vld [vmem:[%s4] sm:$0xff]
    %v1893 = vld [vmem:[%s4 + $0x8] sm:$0xff]
    %v1894 = vld [vmem:[%s4 + $0x10] sm:$0xff]
    %v1895 = vld [vmem:[%s4 + $0x18] sm:$0xff]
    %v1896 = vld [vmem:[%s4 + $0x20] sm:$0xff]
    %v1897 = vld [vmem:[%s4 + $0x28] sm:$0xff]
    %v1898 = vld [vmem:[%s4 + $0x30] sm:$0xff]
    %v1899 = vld [vmem:[%s4 + $0x38] sm:$0xff]
    %v1900 = vld [vmem:[#allocation3] sm:$0xff]
    %v1901 = vld [vmem:[#allocation3 + $0x8] sm:$0xff]
    %v1902 = vld [vmem:[#allocation3 + $0x10] sm:$0xff]
    %v1903 = vld [vmem:[#allocation3 + $0x18] sm:$0xff]
    %s1904 = scalar_lea.vmem %s4, 64
    %v1905 = vld [vmem:[%s1904] sm:$0xff]
    %v1906 = vld [vmem:[%s1904 + $0x8] sm:$0xff]
    %v1907 = vld [vmem:[%s1904 + $0x10] sm:$0xff]
    %v1908 = vld [vmem:[%s1904 + $0x18] sm:$0xff]
    %v1909 = vld [vmem:[%s1904 + $0x20] sm:$0xff]
    %v1910 = vld [vmem:[%s1904 + $0x28] sm:$0xff]
    %v1911 = vld [vmem:[%s1904 + $0x30] sm:$0xff]
    %v1912 = vld [vmem:[%s1904 + $0x38] sm:$0xff]
    %v1914 = vsel %vm57, %v1900, 0
    %v1917 = vsel %vm57, %v1901, 0
    %v1920 = vsel %vm57, %v1902, 0
    %v1923 = vsel %vm57, %v1903, 0
    %1925 = vmatprep.subr.mxu0 %v1906
    %1926 = vmatpush1.msra.mxu0 %v1905
    %1927 = vmatprep.subr.mxu0 %v1908
    %1928 = vmatpush1.msra.mxu0 %v1907
    %1929 = vmatprep.subr.mxu0 %v1910
    %1930 = vmatpush1.msra.mxu0 %v1909
    %1931 = vmatprep.subr.mxu0 %v1912
    %1932 = vmatpush1.msra.mxu0 %v1911
    %1933 = vmatprep.subr.mxu0 0.0
    %1934 = vmatpush1.msra.mxu0 0.0
    %1935 = vmatprep.subr.mxu0 0.0
    %1936 = vmatpush1.msra.mxu0 0.0
    %1937 = vmatprep.subr.mxu0 0.0
    %1938 = vmatpush1.msra.mxu0 0.0
    %1939 = vmatprep.subr.mxu0 0.0
    %1940 = vmatpush1.msra.mxu0 0.0
    %1941 = vmatprep.subr.mxu0 0.0
    %1942 = vmatpush1.msra.mxu0 0.0
    %1943 = vmatprep.subr.mxu0 0.0
    %1944 = vmatpush1.msra.mxu0 0.0
    %1945 = vmatprep.subr.mxu0 0.0
    %1946 = vmatpush1.msra.mxu0 0.0
    %1947 = vmatprep.subr.mxu0 0.0
    %1948 = vmatpush1.msra.mxu0 0.0
    %1949 = vmatprep.subr.mxu0 0.0
    %1950 = vmatpush1.msra.mxu0 0.0
    %1951 = vmatprep.subr.mxu0 0.0
    %1952 = vmatpush1.msra.mxu0 0.0
    %1953 = vmatprep.subr.mxu0 0.0
    %1954 = vmatpush1.msra.mxu0 0.0
    %1955 = vmatprep.subr.mxu0 0.0
    %1956 = vmatpush1.msra.mxu0 0.0
    %1957 = vmatprep.subr.mxu0 0.0
    %1958 = vmatpush1.msra.mxu0 0.0
    %1959 = vmatprep.subr.mxu0 0.0
    %1960 = vmatpush1.msra.mxu0 0.0
    %1961 = vmatprep.subr.mxu0 0.0
    %1962 = vmatpush1.msra.mxu0 0.0
    %1963 = vmatprep.subr.mxu0 0.0
    %1964 = vmatpush1.msra.mxu0 0.0
    %1965 = vmatprep.subr.mxu0 0.0
    %1966 = vmatpush1.msra.mxu0 0.0
    %1967 = vmatprep.subr.mxu0 0.0
    %1968 = vmatpush1.msra.mxu0 0.0
    %1969 = vmatprep.subr.mxu0 0.0
    %1970 = vmatpush1.msra.mxu0 0.0
    %1971 = vmatprep.subr.mxu0 0.0
    %1972 = vmatpush1.msra.mxu0 0.0
    %1973 = vmatprep.subr.mxu0 0.0
    %1974 = vmatpush1.msra.mxu0 0.0
    %1975 = vmatprep.subr.mxu0 0.0
    %1976 = vmatpush1.msra.mxu0 0.0
    %1977 = vmatprep.subr.mxu0 0.0
    %1978 = vmatpush1.msra.mxu0 0.0
    %1979 = vmatprep.subr.mxu0 0.0
    %1980 = vmatpush1.msra.mxu0 0.0
    %1981 = vmatprep.subr.mxu0 0.0
    %1982 = vmatpush1.msra.mxu0 0.0
    %1983 = vmatprep.subr.mxu0 0.0
    %1984 = vmatpush1.msra.mxu0 0.0
    %1985 = vmatprep.subr.mxu0 0.0
    %1986 = vmatpush1.msra.mxu0 0.0
    %1987 = vmatprep.subr.mxu0 0.0
    %1988 = vmatpush1.msra.mxu0 0.0
    %1989 = vmatprep.mubr.f32.mxu0 0.0
    %1990 = vmatmul.mubr.f32.gmra.mrb[0].mxu0 %v1914
    %v1991 = vpop.f32.mrb[0].mxu0
    %v1992 = vadd.f32 0.0, %v1991
    %v1993 = vpop.f32.mrb[0].mxu0
    %v1994 = vadd.f32 0.0, %v1993
    %1995 = vmatprep.mubr.f32.mxu0 0.0
    %1996 = vmatmul.mubr.f32.gmra.mrb[0].mxu0 %v1917
    %v1997 = vpop.f32.mrb[0].mxu0
    %v1998 = vadd.f32 0.0, %v1997
    %v1999 = vpop.f32.mrb[0].mxu0
    %v2000 = vadd.f32 0.0, %v1999
    %2001 = vmatprep.mubr.f32.mxu0 0.0
    %2002 = vmatmul.mubr.f32.gmra.mrb[0].mxu0 %v1920
    %v2003 = vpop.f32.mrb[0].mxu0
    %v2004 = vadd.f32 0.0, %v2003
    %v2005 = vpop.f32.mrb[0].mxu0
    %v2006 = vadd.f32 0.0, %v2005
    %2007 = vmatprep.mubr.f32.mxu0 0.0
    %2008 = vmatmul.mubr.f32.gmra.mrb[0].mxu0 %v1923
    %v2009 = vpop.f32.mrb[0].mxu0
    %v2010 = vadd.f32 0.0, %v2009
    %v2011 = vpop.f32.mrb[0].mxu0
    %v2012 = vadd.f32 0.0, %v2011
    %2013 = vdwg.mxu0
    %v2015 = vsel %vm57, %v1888, 0
    %v2018 = vsel %vm57, %v1889, 0
    %v2021 = vsel %vm57, %v1890, 0
    %v2024 = vsel %vm57, %v1891, 0
    %2026 = vmatprep.subr.mxu0 %v1893
    %2027 = vmatpush1.msra.mxu0 %v1892
    %2028 = vmatprep.subr.mxu0 %v1895
    %2029 = vmatpush1.msra.mxu0 %v1894
    %2030 = vmatprep.subr.mxu0 %v1897
    %2031 = vmatpush1.msra.mxu0 %v1896
    %2032 = vmatprep.subr.mxu0 %v1899
    %2033 = vmatpush1.msra.mxu0 %v1898
    %2034 = vmatprep.subr.mxu0 0.0
    %2035 = vmatpush1.msra.mxu0 0.0
    %2036 = vmatprep.subr.mxu0 0.0
    %2037 = vmatpush1.msra.mxu0 0.0
    %2038 = vmatprep.subr.mxu0 0.0
    %2039 = vmatpush1.msra.mxu0 0.0
    %2040 = vmatprep.subr.mxu0 0.0
    %2041 = vmatpush1.msra.mxu0 0.0
    %2042 = vmatprep.subr.mxu0 0.0
    %2043 = vmatpush1.msra.mxu0 0.0
    %2044 = vmatprep.subr.mxu0 0.0
    %2045 = vmatpush1.msra.mxu0 0.0
    %2046 = vmatprep.subr.mxu0 0.0
    %2047 = vmatpush1.msra.mxu0 0.0
    %2048 = vmatprep.subr.mxu0 0.0
    %2049 = vmatpush1.msra.mxu0 0.0
    %2050 = vmatprep.subr.mxu0 0.0
    %2051 = vmatpush1.msra.mxu0 0.0
    %2052 = vmatprep.subr.mxu0 0.0
    %2053 = vmatpush1.msra.mxu0 0.0
    %2054 = vmatprep.subr.mxu0 0.0
    %2055 = vmatpush1.msra.mxu0 0.0
    %2056 = vmatprep.subr.mxu0 0.0
    %2057 = vmatpush1.msra.mxu0 0.0
    %2058 = vmatprep.subr.mxu0 0.0
    %2059 = vmatpush1.msra.mxu0 0.0
    %2060 = vmatprep.subr.mxu0 0.0
    %2061 = vmatpush1.msra.mxu0 0.0
    %2062 = vmatprep.subr.mxu0 0.0
    %2063 = vmatpush1.msra.mxu0 0.0
    %2064 = vmatprep.subr.mxu0 0.0
    %2065 = vmatpush1.msra.mxu0 0.0
    %2066 = vmatprep.subr.mxu0 0.0
    %2067 = vmatpush1.msra.mxu0 0.0
    %2068 = vmatprep.subr.mxu0 0.0
    %2069 = vmatpush1.msra.mxu0 0.0
    %2070 = vmatprep.subr.mxu0 0.0
    %2071 = vmatpush1.msra.mxu0 0.0
    %2072 = vmatprep.subr.mxu0 0.0
    %2073 = vmatpush1.msra.mxu0 0.0
    %2074 = vmatprep.subr.mxu0 0.0
    %2075 = vmatpush1.msra.mxu0 0.0
    %2076 = vmatprep.subr.mxu0 0.0
    %2077 = vmatpush1.msra.mxu0 0.0
    %2078 = vmatprep.subr.mxu0 0.0
    %2079 = vmatpush1.msra.mxu0 0.0
    %2080 = vmatprep.subr.mxu0 0.0
    %2081 = vmatpush1.msra.mxu0 0.0
    %2082 = vmatprep.subr.mxu0 0.0
    %2083 = vmatpush1.msra.mxu0 0.0
    %2084 = vmatprep.subr.mxu0 0.0
    %2085 = vmatpush1.msra.mxu0 0.0
    %2086 = vmatprep.subr.mxu0 0.0
    %2087 = vmatpush1.msra.mxu0 0.0
    %2088 = vmatprep.subr.mxu0 0.0
    %2089 = vmatpush1.msra.mxu0 0.0
    %2090 = vmatprep.mubr.f32.mxu0 0.0
    %2091 = vmatmul.mubr.f32.gmra.mrb[0].mxu0 %v2015
    %v2092 = vpop.f32.mrb[0].mxu0
    %v2093 = vadd.f32 %v1992, %v2092
    %v2094 = vpop.f32.mrb[0].mxu0
    %v2095 = vadd.f32 %v1994, %v2094
    %2096 = vmatprep.mubr.f32.mxu0 0.0
    %2097 = vmatmul.mubr.f32.gmra.mrb[0].mxu0 %v2018
    %v2098 = vpop.f32.mrb[0].mxu0
    %v2099 = vadd.f32 %v1998, %v2098
    %v2100 = vpop.f32.mrb[0].mxu0
    %v2101 = vadd.f32 %v2000, %v2100
    %2102 = vmatprep.mubr.f32.mxu0 0.0
    %2103 = vmatmul.mubr.f32.gmra.mrb[0].mxu0 %v2021
    %v2104 = vpop.f32.mrb[0].mxu0
    %v2105 = vadd.f32 %v2004, %v2104
    %v2106 = vpop.f32.mrb[0].mxu0
    %v2107 = vadd.f32 %v2006, %v2106
    %2108 = vmatprep.mubr.f32.mxu0 0.0
    %2109 = vmatmul.mubr.f32.gmra.mrb[0].mxu0 %v2024
    %v2110 = vpop.f32.mrb[0].mxu0
    %v2111 = vadd.f32 %v2010, %v2110
    %v2112 = vpop.f32.mrb[0].mxu0
    %v2113 = vadd.f32 %v2012, %v2112
    %2114 = vdwg.mxu0
    %v2115 = vld [vmem:[%s6] sm:$0x3]
    %v2117 = vlaneseq
    %v2118 = vshrl.u32 %v2117, 7
    %v2119 = vsub.s32 0, %v2118
    %v2120 = vrot.slane %v2115, %v2119
    %v2121 = vlaneseq
    %v2122 = vshrl.u32 %v2121, 7
    %v2123 = vsub.s32 1, %v2122
    %v2124 = vrot.slane %v2115, %v2123
    %v2127 = vadd.f32 %v2093, %v2120
    %v2128 = vadd.f32 %v2095, %v2124
    %v2129 = vadd.f32 %v2099, %v2120
    %v2130 = vadd.f32 %v2101, %v2124
    %v2131 = vadd.f32 %v2105, %v2120
    %v2132 = vadd.f32 %v2107, %v2124
    %v2133 = vadd.f32 %v2111, %v2120
    %v2134 = vadd.f32 %v2113, %v2124
    %v2135 = vld [vmem:[%s5] sm:$0xff]
    %v2136 = vld [vmem:[%s5 + $0x8] sm:$0xff]
    %v2137 = vld [vmem:[%s5 + $0x10] sm:$0xff]
    %v2138 = vld [vmem:[%s5 + $0x18] sm:$0xff]
    %s2139 = scalar_lea.vmem %s5, 32
    %v2140 = vld [vmem:[%s2139] sm:$0xff]
    %v2141 = vld [vmem:[%s2139 + $0x8] sm:$0xff]
    %v2142 = vld [vmem:[%s2139 + $0x10] sm:$0xff]
    %v2143 = vld [vmem:[%s2139 + $0x18] sm:$0xff]
    %2144 = vmatprep.subr.mxu0 0.0
    %2145 = vmatpush1.msra.mxu0 %v2135
    %2146 = vmatprep.subr.mxu0 0.0
    %2147 = vmatpush1.msra.mxu0 %v2136
    %2148 = vmatprep.subr.mxu0 0.0
    %2149 = vmatpush1.msra.mxu0 %v2137
    %2150 = vmatprep.subr.mxu0 0.0
    %2151 = vmatpush1.msra.mxu0 %v2138
    %2152 = vmatprep.subr.mxu0 0.0
    %2153 = vmatpush1.msra.mxu0 0.0
    %2154 = vmatprep.subr.mxu0 0.0
    %2155 = vmatpush1.msra.mxu0 0.0
    %2156 = vmatprep.subr.mxu0 0.0
    %2157 = vmatpush1.msra.mxu0 0.0
    %2158 = vmatprep.subr.mxu0 0.0
    %2159 = vmatpush1.msra.mxu0 0.0
    %2160 = vmatprep.subr.mxu0 0.0
    %2161 = vmatpush1.msra.mxu0 0.0
    %2162 = vmatprep.subr.mxu0 0.0
    %2163 = vmatpush1.msra.mxu0 0.0
    %2164 = vmatprep.subr.mxu0 0.0
    %2165 = vmatpush1.msra.mxu0 0.0
    %2166 = vmatprep.subr.mxu0 0.0
    %2167 = vmatpush1.msra.mxu0 0.0
    %2168 = vmatprep.subr.mxu0 0.0
    %2169 = vmatpush1.msra.mxu0 0.0
    %2170 = vmatprep.subr.mxu0 0.0
    %2171 = vmatpush1.msra.mxu0 0.0
    %2172 = vmatprep.subr.mxu0 0.0
    %2173 = vmatpush1.msra.mxu0 0.0
    %2174 = vmatprep.subr.mxu0 0.0
    %2175 = vmatpush1.msra.mxu0 0.0
    %2176 = vmatprep.subr.mxu0 0.0
    %2177 = vmatpush1.msra.mxu0 0.0
    %2178 = vmatprep.subr.mxu0 0.0
    %2179 = vmatpush1.msra.mxu0 0.0
    %2180 = vmatprep.subr.mxu0 0.0
    %2181 = vmatpush1.msra.mxu0 0.0
    %2182 = vmatprep.subr.mxu0 0.0
    %2183 = vmatpush1.msra.mxu0 0.0
    %2184 = vmatprep.subr.mxu0 0.0
    %2185 = vmatpush1.msra.mxu0 0.0
    %2186 = vmatprep.subr.mxu0 0.0
    %2187 = vmatpush1.msra.mxu0 0.0
    %2188 = vmatprep.subr.mxu0 0.0
    %2189 = vmatpush1.msra.mxu0 0.0
    %2190 = vmatprep.subr.mxu0 0.0
    %2191 = vmatpush1.msra.mxu0 0.0
    %2192 = vmatprep.subr.mxu0 0.0
    %2193 = vmatpush1.msra.mxu0 0.0
    %2194 = vmatprep.subr.mxu0 0.0
    %2195 = vmatpush1.msra.mxu0 0.0
    %2196 = vmatprep.subr.mxu0 0.0
    %2197 = vmatpush1.msra.mxu0 0.0
    %2198 = vmatprep.subr.mxu0 0.0
    %2199 = vmatpush1.msra.mxu0 0.0
    %2200 = vmatprep.subr.mxu0 0.0
    %2201 = vmatpush1.msra.mxu0 0.0
    %2202 = vmatprep.subr.mxu0 0.0
    %2203 = vmatpush1.msra.mxu0 0.0
    %2204 = vmatprep.subr.mxu0 0.0
    %2205 = vmatpush1.msra.mxu0 0.0
    %2206 = vmatprep.subr.mxu0 0.0
    %2207 = vmatpush1.msra.mxu0 0.0
    %2208 = vmatprep.mubr.f32.mxu0 0.0
    %2209 = vmatmul.mubr.f32.gmra.mrb[0].mxu0 %v169
    %v2210 = vpop.f32.mrb[0].mxu0
    %v2211 = vadd.f32 0.0, %v2210
    %v2212 = vpop.f32.mrb[0].mxu0
    %2213 = vdwg.mxu0
    %v2214 = vadd.f32 %v2127, %v2211
    %2215 = vmatprep.subr.mxu0 0.0
    %2216 = vmatpush1.msra.mxu0 %v2140
    %2217 = vmatprep.subr.mxu0 0.0
    %2218 = vmatpush1.msra.mxu0 %v2141
    %2219 = vmatprep.subr.mxu0 0.0
    %2220 = vmatpush1.msra.mxu0 %v2142
    %2221 = vmatprep.subr.mxu0 0.0
    %2222 = vmatpush1.msra.mxu0 %v2143
    %2223 = vmatprep.subr.mxu0 0.0
    %2224 = vmatpush1.msra.mxu0 0.0
    %2225 = vmatprep.subr.mxu0 0.0
    %2226 = vmatpush1.msra.mxu0 0.0
    %2227 = vmatprep.subr.mxu0 0.0
    %2228 = vmatpush1.msra.mxu0 0.0
    %2229 = vmatprep.subr.mxu0 0.0
    %2230 = vmatpush1.msra.mxu0 0.0
    %2231 = vmatprep.subr.mxu0 0.0
    %2232 = vmatpush1.msra.mxu0 0.0
    %2233 = vmatprep.subr.mxu0 0.0
    %2234 = vmatpush1.msra.mxu0 0.0
    %2235 = vmatprep.subr.mxu0 0.0
    %2236 = vmatpush1.msra.mxu0 0.0
    %2237 = vmatprep.subr.mxu0 0.0
    %2238 = vmatpush1.msra.mxu0 0.0
    %2239 = vmatprep.subr.mxu0 0.0
    %2240 = vmatpush1.msra.mxu0 0.0
    %2241 = vmatprep.subr.mxu0 0.0
    %2242 = vmatpush1.msra.mxu0 0.0
    %2243 = vmatprep.subr.mxu0 0.0
    %2244 = vmatpush1.msra.mxu0 0.0
    %2245 = vmatprep.subr.mxu0 0.0
    %2246 = vmatpush1.msra.mxu0 0.0
    %2247 = vmatprep.subr.mxu0 0.0
    %2248 = vmatpush1.msra.mxu0 0.0
    %2249 = vmatprep.subr.mxu0 0.0
    %2250 = vmatpush1.msra.mxu0 0.0
    %2251 = vmatprep.subr.mxu0 0.0
    %2252 = vmatpush1.msra.mxu0 0.0
    %2253 = vmatprep.subr.mxu0 0.0
    %2254 = vmatpush1.msra.mxu0 0.0
    %2255 = vmatprep.subr.mxu0 0.0
    %2256 = vmatpush1.msra.mxu0 0.0
    %2257 = vmatprep.subr.mxu0 0.0
    %2258 = vmatpush1.msra.mxu0 0.0
    %2259 = vmatprep.subr.mxu0 0.0
    %2260 = vmatpush1.msra.mxu0 0.0
    %2261 = vmatprep.subr.mxu0 0.0
    %2262 = vmatpush1.msra.mxu0 0.0
    %2263 = vmatprep.subr.mxu0 0.0
    %2264 = vmatpush1.msra.mxu0 0.0
    %2265 = vmatprep.subr.mxu0 0.0
    %2266 = vmatpush1.msra.mxu0 0.0
    %2267 = vmatprep.subr.mxu0 0.0
    %2268 = vmatpush1.msra.mxu0 0.0
    %2269 = vmatprep.subr.mxu0 0.0
    %2270 = vmatpush1.msra.mxu0 0.0
    %2271 = vmatprep.subr.mxu0 0.0
    %2272 = vmatpush1.msra.mxu0 0.0
    %2273 = vmatprep.subr.mxu0 0.0
    %2274 = vmatpush1.msra.mxu0 0.0
    %2275 = vmatprep.subr.mxu0 0.0
    %2276 = vmatpush1.msra.mxu0 0.0
    %2277 = vmatprep.subr.mxu0 0.0
    %2278 = vmatpush1.msra.mxu0 0.0
    %2279 = vmatprep.mubr.f32.mxu0 0.0
    %2280 = vmatmul.mubr.f32.gmra.mrb[0].mxu0 %v169
    %v2281 = vpop.f32.mrb[0].mxu0
    %v2282 = vadd.f32 0.0, %v2281
    %v2283 = vpop.f32.mrb[0].mxu0
    %2284 = vdwg.mxu0
    %v2286 = vrot.slane %v2282, 4
    %v2288 = vadd.f32 %v2134, %v2286
    %v2289 = vxor.u32 %v2214, 2147483648
    %v2290 = vmul.f32 %v2289, 1.442695
    %v2291 = vpow.pop %v2290
    %v2292 = vadd.f32 %v2291, 1.0
    %v2293 = vrcp.pop %v2292
    %v2294 = vmul.f32 1.0, %v2293
    %v2295 = vtanh.pop %v2214
    %v2296 = vmul.f32 %v2294, 0.0
    %2298 = vrot.lane.b32.xlu0 %v2295, 64
    %v2299 = vpop.permute.xlu0 %2298
    %v2301 = vmul.f32 %v2294, %v2299
    %2303 = vrot.lane.b32.xlu0 %v2301, 32
    %v2304 = vpop.permute.xlu0 %2303
    %v2306 = vadd.f32 %v2296, %v2304
    %v2307 = vtanh.pop %v2306
    %2309 = vrot.lane.b32.xlu0 %v2307, 64
    %v2310 = vpop.permute.xlu0 %2309
    %v2312 = vmul.f32 %v2294, %v2310
    %v2313 = vxor.u32 %v2288, 2147483648
    %v2314 = vmul.f32 %v2313, 1.442695
    %v2315 = vpow.pop %v2314
    %v2316 = vadd.f32 %v2315, 1.0
    %v2317 = vrcp.pop %v2316
    %v2318 = vmul.f32 1.0, %v2317
    %v2319 = vtanh.pop %v2288
    %v2320 = vmul.f32 %v2318, 0.0
    %2322 = vrot.lane.b32.xlu0 %v2319, 64
    %v2323 = vpop.permute.xlu0 %2322
    %v2325 = vmul.f32 %v2318, %v2323
    %2327 = vrot.lane.b32.xlu0 %v2325, 32
    %v2328 = vpop.permute.xlu0 %2327
    %v2330 = vadd.f32 %v2320, %v2328
    %v2331 = vtanh.pop %v2330
    %2333 = vrot.lane.b32.xlu0 %v2331, 64
    %v2334 = vpop.permute.xlu0 %2333
    %v2336 = vmul.f32 %v2318, %v2334
    %2338 = vrot.lane.b32.xlu0 %v2312, 32
    %v2339 = vpop.permute.xlu0 %2338
    %v2340 = vsel %vm57, %v2339, 0
    %2342 = vmatprep.subr.mxu0 0.0
    %2343 = vmatpush1.msra.mxu0 %v2135
    %2344 = vmatprep.subr.mxu0 0.0
    %2345 = vmatpush1.msra.mxu0 %v2136
    %2346 = vmatprep.subr.mxu0 0.0
    %2347 = vmatpush1.msra.mxu0 %v2137
    %2348 = vmatprep.subr.mxu0 0.0
    %2349 = vmatpush1.msra.mxu0 %v2138
    %2350 = vmatprep.subr.mxu0 0.0
    %2351 = vmatpush1.msra.mxu0 0.0
    %2352 = vmatprep.subr.mxu0 0.0
    %2353 = vmatpush1.msra.mxu0 0.0
    %2354 = vmatprep.subr.mxu0 0.0
    %2355 = vmatpush1.msra.mxu0 0.0
    %2356 = vmatprep.subr.mxu0 0.0
    %2357 = vmatpush1.msra.mxu0 0.0
    %2358 = vmatprep.subr.mxu0 0.0
    %2359 = vmatpush1.msra.mxu0 0.0
    %2360 = vmatprep.subr.mxu0 0.0
    %2361 = vmatpush1.msra.mxu0 0.0
    %2362 = vmatprep.subr.mxu0 0.0
    %2363 = vmatpush1.msra.mxu0 0.0
    %2364 = vmatprep.subr.mxu0 0.0
    %2365 = vmatpush1.msra.mxu0 0.0
    %2366 = vmatprep.subr.mxu0 0.0
    %2367 = vmatpush1.msra.mxu0 0.0
    %2368 = vmatprep.subr.mxu0 0.0
    %2369 = vmatpush1.msra.mxu0 0.0
    %2370 = vmatprep.subr.mxu0 0.0
    %2371 = vmatpush1.msra.mxu0 0.0
    %2372 = vmatprep.subr.mxu0 0.0
    %2373 = vmatpush1.msra.mxu0 0.0
    %2374 = vmatprep.subr.mxu0 0.0
    %2375 = vmatpush1.msra.mxu0 0.0
    %2376 = vmatprep.subr.mxu0 0.0
    %2377 = vmatpush1.msra.mxu0 0.0
    %2378 = vmatprep.subr.mxu0 0.0
    %2379 = vmatpush1.msra.mxu0 0.0
    %2380 = vmatprep.subr.mxu0 0.0
    %2381 = vmatpush1.msra.mxu0 0.0
    %2382 = vmatprep.subr.mxu0 0.0
    %2383 = vmatpush1.msra.mxu0 0.0
    %2384 = vmatprep.subr.mxu0 0.0
    %2385 = vmatpush1.msra.mxu0 0.0
    %2386 = vmatprep.subr.mxu0 0.0
    %2387 = vmatpush1.msra.mxu0 0.0
    %2388 = vmatprep.subr.mxu0 0.0
    %2389 = vmatpush1.msra.mxu0 0.0
    %2390 = vmatprep.subr.mxu0 0.0
    %2391 = vmatpush1.msra.mxu0 0.0
    %2392 = vmatprep.subr.mxu0 0.0
    %2393 = vmatpush1.msra.mxu0 0.0
    %2394 = vmatprep.subr.mxu0 0.0
    %2395 = vmatpush1.msra.mxu0 0.0
    %2396 = vmatprep.subr.mxu0 0.0
    %2397 = vmatpush1.msra.mxu0 0.0
    %2398 = vmatprep.subr.mxu0 0.0
    %2399 = vmatpush1.msra.mxu0 0.0
    %2400 = vmatprep.subr.mxu0 0.0
    %2401 = vmatpush1.msra.mxu0 0.0
    %2402 = vmatprep.subr.mxu0 0.0
    %2403 = vmatpush1.msra.mxu0 0.0
    %2404 = vmatprep.subr.mxu0 0.0
    %2405 = vmatpush1.msra.mxu0 0.0
    %2406 = vmatprep.mubr.f32.mxu0 0.0
    %2407 = vmatmul.mubr.f32.gmra.mrb[0].mxu0 %v2340
    %v2408 = vpop.f32.mrb[0].mxu0
    %v2409 = vadd.f32 0.0, %v2408
    %v2410 = vpop.f32.mrb[0].mxu0
    %2411 = vdwg.mxu0
    %v2413 = vrot.slane %v2409, 4
    %v2415 = vadd.f32 %v2127, %v2413
    %v2417 = vrot.slane %v2336, 4
    %2418 = vrot.lane.b32.xlu0 %v2417, 32
    %v2419 = vpop.permute.xlu0 %2418
    %v2420 = vsel %vm57, %v2419, 0
    %2422 = vmatprep.subr.mxu0 0.0
    %2423 = vmatpush1.msra.mxu0 %v2140
    %2424 = vmatprep.subr.mxu0 0.0
    %2425 = vmatpush1.msra.mxu0 %v2141
    %2426 = vmatprep.subr.mxu0 0.0
    %2427 = vmatpush1.msra.mxu0 %v2142
    %2428 = vmatprep.subr.mxu0 0.0
    %2429 = vmatpush1.msra.mxu0 %v2143
    %2430 = vmatprep.subr.mxu0 0.0
    %2431 = vmatpush1.msra.mxu0 0.0
    %2432 = vmatprep.subr.mxu0 0.0
    %2433 = vmatpush1.msra.mxu0 0.0
    %2434 = vmatprep.subr.mxu0 0.0
    %2435 = vmatpush1.msra.mxu0 0.0
    %2436 = vmatprep.subr.mxu0 0.0
    %2437 = vmatpush1.msra.mxu0 0.0
    %2438 = vmatprep.subr.mxu0 0.0
    %2439 = vmatpush1.msra.mxu0 0.0
    %2440 = vmatprep.subr.mxu0 0.0
    %2441 = vmatpush1.msra.mxu0 0.0
    %2442 = vmatprep.subr.mxu0 0.0
    %2443 = vmatpush1.msra.mxu0 0.0
    %2444 = vmatprep.subr.mxu0 0.0
    %2445 = vmatpush1.msra.mxu0 0.0
    %2446 = vmatprep.subr.mxu0 0.0
    %2447 = vmatpush1.msra.mxu0 0.0
    %2448 = vmatprep.subr.mxu0 0.0
    %2449 = vmatpush1.msra.mxu0 0.0
    %2450 = vmatprep.subr.mxu0 0.0
    %2451 = vmatpush1.msra.mxu0 0.0
    %2452 = vmatprep.subr.mxu0 0.0
    %2453 = vmatpush1.msra.mxu0 0.0
    %2454 = vmatprep.subr.mxu0 0.0
    %2455 = vmatpush1.msra.mxu0 0.0
    %2456 = vmatprep.subr.mxu0 0.0
    %2457 = vmatpush1.msra.mxu0 0.0
    %2458 = vmatprep.subr.mxu0 0.0
    %2459 = vmatpush1.msra.mxu0 0.0
    %2460 = vmatprep.subr.mxu0 0.0
    %2461 = vmatpush1.msra.mxu0 0.0
    %2462 = vmatprep.subr.mxu0 0.0
    %2463 = vmatpush1.msra.mxu0 0.0
    %2464 = vmatprep.subr.mxu0 0.0
    %2465 = vmatpush1.msra.mxu0 0.0
    %2466 = vmatprep.subr.mxu0 0.0
    %2467 = vmatpush1.msra.mxu0 0.0
    %2468 = vmatprep.subr.mxu0 0.0
    %2469 = vmatpush1.msra.mxu0 0.0
    %2470 = vmatprep.subr.mxu0 0.0
    %2471 = vmatpush1.msra.mxu0 0.0
    %2472 = vmatprep.subr.mxu0 0.0
    %2473 = vmatpush1.msra.mxu0 0.0
    %2474 = vmatprep.subr.mxu0 0.0
    %2475 = vmatpush1.msra.mxu0 0.0
    %2476 = vmatprep.subr.mxu0 0.0
    %2477 = vmatpush1.msra.mxu0 0.0
    %2478 = vmatprep.subr.mxu0 0.0
    %2479 = vmatpush1.msra.mxu0 0.0
    %2480 = vmatprep.subr.mxu0 0.0
    %2481 = vmatpush1.msra.mxu0 0.0
    %2482 = vmatprep.subr.mxu0 0.0
    %2483 = vmatpush1.msra.mxu0 0.0
    %2484 = vmatprep.subr.mxu0 0.0
    %2485 = vmatpush1.msra.mxu0 0.0
    %2486 = vmatprep.mubr.f32.mxu0 0.0
    %2487 = vmatmul.mubr.f32.gmra.mrb[0].mxu0 %v2420
    %v2488 = vpop.f32.mrb[0].mxu0
    %v2489 = vadd.f32 0.0, %v2488
    %v2490 = vpop.f32.mrb[0].mxu0
    %2491 = vdwg.mxu0
    %v2492 = vadd.f32 %v2134, %v2489
    %v2493 = vxor.u32 %v2415, 2147483648
    %v2494 = vmul.f32 %v2493, 1.442695
    %v2495 = vpow.pop %v2494
    %v2496 = vadd.f32 %v2495, 1.0
    %v2497 = vrcp.pop %v2496
    %v2498 = vmul.f32 1.0, %v2497
    %v2499 = vtanh.pop %v2415
    %v2501 = vrot.slane %v2306, 4
    %v2503 = vmul.f32 %v2498, %v2501
    %2505 = vrot.lane.b32.xlu0 %v2499, 64
    %v2506 = vpop.permute.xlu0 %2505
    %v2508 = vmul.f32 %v2498, %v2506
    %2510 = vrot.lane.b32.xlu0 %v2508, 32
    %v2511 = vpop.permute.xlu0 %2510
    %v2513 = vadd.f32 %v2503, %v2511
    %v2514 = vtanh.pop %v2513
    %2516 = vrot.lane.b32.xlu0 %v2514, 64
    %v2517 = vpop.permute.xlu0 %2516
    %v2519 = vmul.f32 %v2498, %v2517
    %v2520 = vxor.u32 %v2492, 2147483648
    %v2521 = vmul.f32 %v2520, 1.442695
    %v2522 = vpow.pop %v2521
    %v2523 = vadd.f32 %v2522, 1.0
    %v2524 = vrcp.pop %v2523
    %v2525 = vmul.f32 1.0, %v2524
    %v2526 = vtanh.pop %v2492
    %v2528 = vrot.slane %v2330, 4
    %v2530 = vmul.f32 %v2525, %v2528
    %2532 = vrot.lane.b32.xlu0 %v2526, 64
    %v2533 = vpop.permute.xlu0 %2532
    %v2535 = vmul.f32 %v2525, %v2533
    %2537 = vrot.lane.b32.xlu0 %v2535, 32
    %v2538 = vpop.permute.xlu0 %2537
    %v2540 = vadd.f32 %v2530, %v2538
    %v2541 = vtanh.pop %v2540
    %2543 = vrot.lane.b32.xlu0 %v2541, 64
    %v2544 = vpop.permute.xlu0 %2543
    %v2546 = vmul.f32 %v2525, %v2544
    %v2548 = vrot.slane %v2519, 4
    %2549 = vrot.lane.b32.xlu0 %v2548, 32
    %v2550 = vpop.permute.xlu0 %2549
    %v2551 = vsel %vm57, %v2550, 0
    %2553 = vmatprep.subr.mxu0 0.0
    %2554 = vmatpush1.msra.mxu0 %v2135
    %2555 = vmatprep.subr.mxu0 0.0
    %2556 = vmatpush1.msra.mxu0 %v2136
    %2557 = vmatprep.subr.mxu0 0.0
    %2558 = vmatpush1.msra.mxu0 %v2137
    %2559 = vmatprep.subr.mxu0 0.0
    %2560 = vmatpush1.msra.mxu0 %v2138
    %2561 = vmatprep.subr.mxu0 0.0
    %2562 = vmatpush1.msra.mxu0 0.0
    %2563 = vmatprep.subr.mxu0 0.0
    %2564 = vmatpush1.msra.mxu0 0.0
    %2565 = vmatprep.subr.mxu0 0.0
    %2566 = vmatpush1.msra.mxu0 0.0
    %2567 = vmatprep.subr.mxu0 0.0
    %2568 = vmatpush1.msra.mxu0 0.0
    %2569 = vmatprep.subr.mxu0 0.0
    %2570 = vmatpush1.msra.mxu0 0.0
    %2571 = vmatprep.subr.mxu0 0.0
    %2572 = vmatpush1.msra.mxu0 0.0
    %2573 = vmatprep.subr.mxu0 0.0
    %2574 = vmatpush1.msra.mxu0 0.0
    %2575 = vmatprep.subr.mxu0 0.0
    %2576 = vmatpush1.msra.mxu0 0.0
    %2577 = vmatprep.subr.mxu0 0.0
    %2578 = vmatpush1.msra.mxu0 0.0
    %2579 = vmatprep.subr.mxu0 0.0
    %2580 = vmatpush1.msra.mxu0 0.0
    %2581 = vmatprep.subr.mxu0 0.0
    %2582 = vmatpush1.msra.mxu0 0.0
    %2583 = vmatprep.subr.mxu0 0.0
    %2584 = vmatpush1.msra.mxu0 0.0
    %2585 = vmatprep.subr.mxu0 0.0
    %2586 = vmatpush1.msra.mxu0 0.0
    %2587 = vmatprep.subr.mxu0 0.0
    %2588 = vmatpush1.msra.mxu0 0.0
    %2589 = vmatprep.subr.mxu0 0.0
    %2590 = vmatpush1.msra.mxu0 0.0
    %2591 = vmatprep.subr.mxu0 0.0
    %2592 = vmatpush1.msra.mxu0 0.0
    %2593 = vmatprep.subr.mxu0 0.0
    %2594 = vmatpush1.msra.mxu0 0.0
    %2595 = vmatprep.subr.mxu0 0.0
    %2596 = vmatpush1.msra.mxu0 0.0
    %2597 = vmatprep.subr.mxu0 0.0
    %2598 = vmatpush1.msra.mxu0 0.0
    %2599 = vmatprep.subr.mxu0 0.0
    %2600 = vmatpush1.msra.mxu0 0.0
    %2601 = vmatprep.subr.mxu0 0.0
    %2602 = vmatpush1.msra.mxu0 0.0
    %2603 = vmatprep.subr.mxu0 0.0
    %2604 = vmatpush1.msra.mxu0 0.0
    %2605 = vmatprep.subr.mxu0 0.0
    %2606 = vmatpush1.msra.mxu0 0.0
    %2607 = vmatprep.subr.mxu0 0.0
    %2608 = vmatpush1.msra.mxu0 0.0
    %2609 = vmatprep.subr.mxu0 0.0
    %2610 = vmatpush1.msra.mxu0 0.0
    %2611 = vmatprep.subr.mxu0 0.0
    %2612 = vmatpush1.msra.mxu0 0.0
    %2613 = vmatprep.subr.mxu0 0.0
    %2614 = vmatpush1.msra.mxu0 0.0
    %2615 = vmatprep.subr.mxu0 0.0
    %2616 = vmatpush1.msra.mxu0 0.0
    %2617 = vmatprep.mubr.f32.mxu0 0.0
    %2618 = vmatmul.mubr.f32.gmra.mrb[0].mxu0 %v2551
    %v2619 = vpop.f32.mrb[0].mxu0
    %v2620 = vadd.f32 0.0, %v2619
    %v2621 = vpop.f32.mrb[0].mxu0
    %2622 = vdwg.mxu0
    %v2623 = vadd.f32 %v2129, %v2620
    %2625 = vrot.lane.b32.xlu0 %v2546, 32
    %v2626 = vpop.permute.xlu0 %2625
    %v2627 = vsel %vm57, %v2626, 0
    %2629 = vmatprep.subr.mxu0 0.0
    %2630 = vmatpush1.msra.mxu0 %v2140
    %2631 = vmatprep.subr.mxu0 0.0
    %2632 = vmatpush1.msra.mxu0 %v2141
    %2633 = vmatprep.subr.mxu0 0.0
    %2634 = vmatpush1.msra.mxu0 %v2142
    %2635 = vmatprep.subr.mxu0 0.0
    %2636 = vmatpush1.msra.mxu0 %v2143
    %2637 = vmatprep.subr.mxu0 0.0
    %2638 = vmatpush1.msra.mxu0 0.0
    %2639 = vmatprep.subr.mxu0 0.0
    %2640 = vmatpush1.msra.mxu0 0.0
    %2641 = vmatprep.subr.mxu0 0.0
    %2642 = vmatpush1.msra.mxu0 0.0
    %2643 = vmatprep.subr.mxu0 0.0
    %2644 = vmatpush1.msra.mxu0 0.0
    %2645 = vmatprep.subr.mxu0 0.0
    %2646 = vmatpush1.msra.mxu0 0.0
    %2647 = vmatprep.subr.mxu0 0.0
    %2648 = vmatpush1.msra.mxu0 0.0
    %2649 = vmatprep.subr.mxu0 0.0
    %2650 = vmatpush1.msra.mxu0 0.0
    %2651 = vmatprep.subr.mxu0 0.0
    %2652 = vmatpush1.msra.mxu0 0.0
    %2653 = vmatprep.subr.mxu0 0.0
    %2654 = vmatpush1.msra.mxu0 0.0
    %2655 = vmatprep.subr.mxu0 0.0
    %2656 = vmatpush1.msra.mxu0 0.0
    %2657 = vmatprep.subr.mxu0 0.0
    %2658 = vmatpush1.msra.mxu0 0.0
    %2659 = vmatprep.subr.mxu0 0.0
    %2660 = vmatpush1.msra.mxu0 0.0
    %2661 = vmatprep.subr.mxu0 0.0
    %2662 = vmatpush1.msra.mxu0 0.0
    %2663 = vmatprep.subr.mxu0 0.0
    %2664 = vmatpush1.msra.mxu0 0.0
    %2665 = vmatprep.subr.mxu0 0.0
    %2666 = vmatpush1.msra.mxu0 0.0
    %2667 = vmatprep.subr.mxu0 0.0
    %2668 = vmatpush1.msra.mxu0 0.0
    %2669 = vmatprep.subr.mxu0 0.0
    %2670 = vmatpush1.msra.mxu0 0.0
    %2671 = vmatprep.subr.mxu0 0.0
    %2672 = vmatpush1.msra.mxu0 0.0
    %2673 = vmatprep.subr.mxu0 0.0
    %2674 = vmatpush1.msra.mxu0 0.0
    %2675 = vmatprep.subr.mxu0 0.0
    %2676 = vmatpush1.msra.mxu0 0.0
    %2677 = vmatprep.subr.mxu0 0.0
    %2678 = vmatpush1.msra.mxu0 0.0
    %2679 = vmatprep.subr.mxu0 0.0
    %2680 = vmatpush1.msra.mxu0 0.0
    %2681 = vmatprep.subr.mxu0 0.0
    %2682 = vmatpush1.msra.mxu0 0.0
    %2683 = vmatprep.subr.mxu0 0.0
    %2684 = vmatpush1.msra.mxu0 0.0
    %2685 = vmatprep.subr.mxu0 0.0
    %2686 = vmatpush1.msra.mxu0 0.0
    %2687 = vmatprep.subr.mxu0 0.0
    %2688 = vmatpush1.msra.mxu0 0.0
    %2689 = vmatprep.subr.mxu0 0.0
    %2690 = vmatpush1.msra.mxu0 0.0
    %2691 = vmatprep.subr.mxu0 0.0
    %2692 = vmatpush1.msra.mxu0 0.0
    %2693 = vmatprep.mubr.f32.mxu0 0.0
    %2694 = vmatmul.mubr.f32.gmra.mrb[0].mxu0 %v2627
    %v2695 = vpop.f32.mrb[0].mxu0
    %v2696 = vadd.f32 0.0, %v2695
    %v2697 = vpop.f32.mrb[0].mxu0
    %2698 = vdwg.mxu0
    %v2700 = vrot.slane %v2696, 4
    %v2702 = vadd.f32 %v2132, %v2700
    %v2703 = vxor.u32 %v2623, 2147483648
    %v2704 = vmul.f32 %v2703, 1.442695
    %v2705 = vpow.pop %v2704
    %v2706 = vadd.f32 %v2705, 1.0
    %v2707 = vrcp.pop %v2706
    %v2708 = vmul.f32 1.0, %v2707
    %v2709 = vtanh.pop %v2623
    %v2711 = vrot.slane %v2513, 4
    %v2713 = vmul.f32 %v2708, %v2711
    %2715 = vrot.lane.b32.xlu0 %v2709, 64
    %v2716 = vpop.permute.xlu0 %2715
    %v2718 = vmul.f32 %v2708, %v2716
    %2720 = vrot.lane.b32.xlu0 %v2718, 32
    %v2721 = vpop.permute.xlu0 %2720
    %v2723 = vadd.f32 %v2713, %v2721
    %v2724 = vtanh.pop %v2723
    %2726 = vrot.lane.b32.xlu0 %v2724, 64
    %v2727 = vpop.permute.xlu0 %2726
    %v2729 = vmul.f32 %v2708, %v2727
    %v2730 = vxor.u32 %v2702, 2147483648
    %v2731 = vmul.f32 %v2730, 1.442695
    %v2732 = vpow.pop %v2731
    %v2733 = vadd.f32 %v2732, 1.0
    %v2734 = vrcp.pop %v2733
    %v2735 = vmul.f32 1.0, %v2734
    %v2736 = vtanh.pop %v2702
    %v2738 = vrot.slane %v2540, 4
    %v2740 = vmul.f32 %v2735, %v2738
    %2742 = vrot.lane.b32.xlu0 %v2736, 64
    %v2743 = vpop.permute.xlu0 %2742
    %v2745 = vmul.f32 %v2735, %v2743
    %2747 = vrot.lane.b32.xlu0 %v2745, 32
    %v2748 = vpop.permute.xlu0 %2747
    %v2750 = vadd.f32 %v2740, %v2748
    %v2751 = vtanh.pop %v2750
    %2753 = vrot.lane.b32.xlu0 %v2751, 64
    %v2754 = vpop.permute.xlu0 %2753
    %v2756 = vmul.f32 %v2735, %v2754
    %2758 = vrot.lane.b32.xlu0 %v2729, 32
    %v2759 = vpop.permute.xlu0 %2758
    %v2760 = vsel %vm57, %v2759, 0
    %2762 = vmatprep.subr.mxu0 0.0
    %2763 = vmatpush1.msra.mxu0 %v2135
    %2764 = vmatprep.subr.mxu0 0.0
    %2765 = vmatpush1.msra.mxu0 %v2136
    %2766 = vmatprep.subr.mxu0 0.0
    %2767 = vmatpush1.msra.mxu0 %v2137
    %2768 = vmatprep.subr.mxu0 0.0
    %2769 = vmatpush1.msra.mxu0 %v2138
    %2770 = vmatprep.subr.mxu0 0.0
    %2771 = vmatpush1.msra.mxu0 0.0
    %2772 = vmatprep.subr.mxu0 0.0
    %2773 = vmatpush1.msra.mxu0 0.0
    %2774 = vmatprep.subr.mxu0 0.0
    %2775 = vmatpush1.msra.mxu0 0.0
    %2776 = vmatprep.subr.mxu0 0.0
    %2777 = vmatpush1.msra.mxu0 0.0
    %2778 = vmatprep.subr.mxu0 0.0
    %2779 = vmatpush1.msra.mxu0 0.0
    %2780 = vmatprep.subr.mxu0 0.0
    %2781 = vmatpush1.msra.mxu0 0.0
    %2782 = vmatprep.subr.mxu0 0.0
    %2783 = vmatpush1.msra.mxu0 0.0
    %2784 = vmatprep.subr.mxu0 0.0
    %2785 = vmatpush1.msra.mxu0 0.0
    %2786 = vmatprep.subr.mxu0 0.0
    %2787 = vmatpush1.msra.mxu0 0.0
    %2788 = vmatprep.subr.mxu0 0.0
    %2789 = vmatpush1.msra.mxu0 0.0
    %2790 = vmatprep.subr.mxu0 0.0
    %2791 = vmatpush1.msra.mxu0 0.0
    %2792 = vmatprep.subr.mxu0 0.0
    %2793 = vmatpush1.msra.mxu0 0.0
    %2794 = vmatprep.subr.mxu0 0.0
    %2795 = vmatpush1.msra.mxu0 0.0
    %2796 = vmatprep.subr.mxu0 0.0
    %2797 = vmatpush1.msra.mxu0 0.0
    %2798 = vmatprep.subr.mxu0 0.0
    %2799 = vmatpush1.msra.mxu0 0.0
    %2800 = vmatprep.subr.mxu0 0.0
    %2801 = vmatpush1.msra.mxu0 0.0
    %2802 = vmatprep.subr.mxu0 0.0
    %2803 = vmatpush1.msra.mxu0 0.0
    %2804 = vmatprep.subr.mxu0 0.0
    %2805 = vmatpush1.msra.mxu0 0.0
    %2806 = vmatprep.subr.mxu0 0.0
    %2807 = vmatpush1.msra.mxu0 0.0
    %2808 = vmatprep.subr.mxu0 0.0
    %2809 = vmatpush1.msra.mxu0 0.0
    %2810 = vmatprep.subr.mxu0 0.0
    %2811 = vmatpush1.msra.mxu0 0.0
    %2812 = vmatprep.subr.mxu0 0.0
    %2813 = vmatpush1.msra.mxu0 0.0
    %2814 = vmatprep.subr.mxu0 0.0
    %2815 = vmatpush1.msra.mxu0 0.0
    %2816 = vmatprep.subr.mxu0 0.0
    %2817 = vmatpush1.msra.mxu0 0.0
    %2818 = vmatprep.subr.mxu0 0.0
    %2819 = vmatpush1.msra.mxu0 0.0
    %2820 = vmatprep.subr.mxu0 0.0
    %2821 = vmatpush1.msra.mxu0 0.0
    %2822 = vmatprep.subr.mxu0 0.0
    %2823 = vmatpush1.msra.mxu0 0.0
    %2824 = vmatprep.subr.mxu0 0.0
    %2825 = vmatpush1.msra.mxu0 0.0
    %2826 = vmatprep.mubr.f32.mxu0 0.0
    %2827 = vmatmul.mubr.f32.gmra.mrb[0].mxu0 %v2760
    %v2828 = vpop.f32.mrb[0].mxu0
    %v2829 = vadd.f32 0.0, %v2828
    %v2830 = vpop.f32.mrb[0].mxu0
    %2831 = vdwg.mxu0
    %v2833 = vrot.slane %v2829, 4
    %v2835 = vadd.f32 %v2129, %v2833
    %v2837 = vrot.slane %v2756, 4
    %2838 = vrot.lane.b32.xlu0 %v2837, 32
    %v2839 = vpop.permute.xlu0 %2838
    %v2840 = vsel %vm57, %v2839, 0
    %2842 = vmatprep.subr.mxu0 0.0
    %2843 = vmatpush1.msra.mxu0 %v2140
    %2844 = vmatprep.subr.mxu0 0.0
    %2845 = vmatpush1.msra.mxu0 %v2141
    %2846 = vmatprep.subr.mxu0 0.0
    %2847 = vmatpush1.msra.mxu0 %v2142
    %2848 = vmatprep.subr.mxu0 0.0
    %2849 = vmatpush1.msra.mxu0 %v2143
    %2850 = vmatprep.subr.mxu0 0.0
    %2851 = vmatpush1.msra.mxu0 0.0
    %2852 = vmatprep.subr.mxu0 0.0
    %2853 = vmatpush1.msra.mxu0 0.0
    %2854 = vmatprep.subr.mxu0 0.0
    %2855 = vmatpush1.msra.mxu0 0.0
    %2856 = vmatprep.subr.mxu0 0.0
    %2857 = vmatpush1.msra.mxu0 0.0
    %2858 = vmatprep.subr.mxu0 0.0
    %2859 = vmatpush1.msra.mxu0 0.0
    %2860 = vmatprep.subr.mxu0 0.0
    %2861 = vmatpush1.msra.mxu0 0.0
    %2862 = vmatprep.subr.mxu0 0.0
    %2863 = vmatpush1.msra.mxu0 0.0
    %2864 = vmatprep.subr.mxu0 0.0
    %2865 = vmatpush1.msra.mxu0 0.0
    %2866 = vmatprep.subr.mxu0 0.0
    %2867 = vmatpush1.msra.mxu0 0.0
    %2868 = vmatprep.subr.mxu0 0.0
    %2869 = vmatpush1.msra.mxu0 0.0
    %2870 = vmatprep.subr.mxu0 0.0
    %2871 = vmatpush1.msra.mxu0 0.0
    %2872 = vmatprep.subr.mxu0 0.0
    %2873 = vmatpush1.msra.mxu0 0.0
    %2874 = vmatprep.subr.mxu0 0.0
    %2875 = vmatpush1.msra.mxu0 0.0
    %2876 = vmatprep.subr.mxu0 0.0
    %2877 = vmatpush1.msra.mxu0 0.0
    %2878 = vmatprep.subr.mxu0 0.0
    %2879 = vmatpush1.msra.mxu0 0.0
    %2880 = vmatprep.subr.mxu0 0.0
    %2881 = vmatpush1.msra.mxu0 0.0
    %2882 = vmatprep.subr.mxu0 0.0
    %2883 = vmatpush1.msra.mxu0 0.0
    %2884 = vmatprep.subr.mxu0 0.0
    %2885 = vmatpush1.msra.mxu0 0.0
    %2886 = vmatprep.subr.mxu0 0.0
    %2887 = vmatpush1.msra.mxu0 0.0
    %2888 = vmatprep.subr.mxu0 0.0
    %2889 = vmatpush1.msra.mxu0 0.0
    %2890 = vmatprep.subr.mxu0 0.0
    %2891 = vmatpush1.msra.mxu0 0.0
    %2892 = vmatprep.subr.mxu0 0.0
    %2893 = vmatpush1.msra.mxu0 0.0
    %2894 = vmatprep.subr.mxu0 0.0
    %2895 = vmatpush1.msra.mxu0 0.0
    %2896 = vmatprep.subr.mxu0 0.0
    %2897 = vmatpush1.msra.mxu0 0.0
    %2898 = vmatprep.subr.mxu0 0.0
    %2899 = vmatpush1.msra.mxu0 0.0
    %2900 = vmatprep.subr.mxu0 0.0
    %2901 = vmatpush1.msra.mxu0 0.0
    %2902 = vmatprep.subr.mxu0 0.0
    %2903 = vmatpush1.msra.mxu0 0.0
    %2904 = vmatprep.subr.mxu0 0.0
    %2905 = vmatpush1.msra.mxu0 0.0
    %2906 = vmatprep.mubr.f32.mxu0 0.0
    %2907 = vmatmul.mubr.f32.gmra.mrb[0].mxu0 %v2840
    %v2908 = vpop.f32.mrb[0].mxu0
    %v2909 = vadd.f32 0.0, %v2908
    %v2910 = vpop.f32.mrb[0].mxu0
    %2911 = vdwg.mxu0
    %v2912 = vadd.f32 %v2132, %v2909
    %v2913 = vxor.u32 %v2835, 2147483648
    %v2914 = vmul.f32 %v2913, 1.442695
    %v2915 = vpow.pop %v2914
    %v2916 = vadd.f32 %v2915, 1.0
    %v2917 = vrcp.pop %v2916
    %v2918 = vmul.f32 1.0, %v2917
    %v2919 = vtanh.pop %v2835
    %v2921 = vrot.slane %v2723, 4
    %v2923 = vmul.f32 %v2918, %v2921
    %2925 = vrot.lane.b32.xlu0 %v2919, 64
    %v2926 = vpop.permute.xlu0 %2925
    %v2928 = vmul.f32 %v2918, %v2926
    %2930 = vrot.lane.b32.xlu0 %v2928, 32
    %v2931 = vpop.permute.xlu0 %2930
    %v2933 = vadd.f32 %v2923, %v2931
    %v2934 = vtanh.pop %v2933
    %2936 = vrot.lane.b32.xlu0 %v2934, 64
    %v2937 = vpop.permute.xlu0 %2936
    %v2939 = vmul.f32 %v2918, %v2937
    %v2940 = vxor.u32 %v2912, 2147483648
    %v2941 = vmul.f32 %v2940, 1.442695
    %v2942 = vpow.pop %v2941
    %v2943 = vadd.f32 %v2942, 1.0
    %v2944 = vrcp.pop %v2943
    %v2945 = vmul.f32 1.0, %v2944
    %v2946 = vtanh.pop %v2912
    %v2948 = vrot.slane %v2750, 4
    %v2950 = vmul.f32 %v2945, %v2948
    %2952 = vrot.lane.b32.xlu0 %v2946, 64
    %v2953 = vpop.permute.xlu0 %2952
    %v2955 = vmul.f32 %v2945, %v2953
    %2957 = vrot.lane.b32.xlu0 %v2955, 32
    %v2958 = vpop.permute.xlu0 %2957
    %v2960 = vadd.f32 %v2950, %v2958
    %v2961 = vtanh.pop %v2960
    %2963 = vrot.lane.b32.xlu0 %v2961, 64
    %v2964 = vpop.permute.xlu0 %2963
    %v2966 = vmul.f32 %v2945, %v2964
    %v2968 = vrot.slane %v2939, 4
    %2969 = vrot.lane.b32.xlu0 %v2968, 32
    %v2970 = vpop.permute.xlu0 %2969
    %v2971 = vsel %vm57, %v2970, 0
    %2973 = vmatprep.subr.mxu0 0.0
    %2974 = vmatpush1.msra.mxu0 %v2135
    %2975 = vmatprep.subr.mxu0 0.0
    %2976 = vmatpush1.msra.mxu0 %v2136
    %2977 = vmatprep.subr.mxu0 0.0
    %2978 = vmatpush1.msra.mxu0 %v2137
    %2979 = vmatprep.subr.mxu0 0.0
    %2980 = vmatpush1.msra.mxu0 %v2138
    %2981 = vmatprep.subr.mxu0 0.0
    %2982 = vmatpush1.msra.mxu0 0.0
    %2983 = vmatprep.subr.mxu0 0.0
    %2984 = vmatpush1.msra.mxu0 0.0
    %2985 = vmatprep.subr.mxu0 0.0
    %2986 = vmatpush1.msra.mxu0 0.0
    %2987 = vmatprep.subr.mxu0 0.0
    %2988 = vmatpush1.msra.mxu0 0.0
    %2989 = vmatprep.subr.mxu0 0.0
    %2990 = vmatpush1.msra.mxu0 0.0
    %2991 = vmatprep.subr.mxu0 0.0
    %2992 = vmatpush1.msra.mxu0 0.0
    %2993 = vmatprep.subr.mxu0 0.0
    %2994 = vmatpush1.msra.mxu0 0.0
    %2995 = vmatprep.subr.mxu0 0.0
    %2996 = vmatpush1.msra.mxu0 0.0
    %2997 = vmatprep.subr.mxu0 0.0
    %2998 = vmatpush1.msra.mxu0 0.0
    %2999 = vmatprep.subr.mxu0 0.0
    %3000 = vmatpush1.msra.mxu0 0.0
    %3001 = vmatprep.subr.mxu0 0.0
    %3002 = vmatpush1.msra.mxu0 0.0
    %3003 = vmatprep.subr.mxu0 0.0
    %3004 = vmatpush1.msra.mxu0 0.0
    %3005 = vmatprep.subr.mxu0 0.0
    %3006 = vmatpush1.msra.mxu0 0.0
    %3007 = vmatprep.subr.mxu0 0.0
    %3008 = vmatpush1.msra.mxu0 0.0
    %3009 = vmatprep.subr.mxu0 0.0
    %3010 = vmatpush1.msra.mxu0 0.0
    %3011 = vmatprep.subr.mxu0 0.0
    %3012 = vmatpush1.msra.mxu0 0.0
    %3013 = vmatprep.subr.mxu0 0.0
    %3014 = vmatpush1.msra.mxu0 0.0
    %3015 = vmatprep.subr.mxu0 0.0
    %3016 = vmatpush1.msra.mxu0 0.0
    %3017 = vmatprep.subr.mxu0 0.0
    %3018 = vmatpush1.msra.mxu0 0.0
    %3019 = vmatprep.subr.mxu0 0.0
    %3020 = vmatpush1.msra.mxu0 0.0
    %3021 = vmatprep.subr.mxu0 0.0
    %3022 = vmatpush1.msra.mxu0 0.0
    %3023 = vmatprep.subr.mxu0 0.0
    %3024 = vmatpush1.msra.mxu0 0.0
    %3025 = vmatprep.subr.mxu0 0.0
    %3026 = vmatpush1.msra.mxu0 0.0
    %3027 = vmatprep.subr.mxu0 0.0
    %3028 = vmatpush1.msra.mxu0 0.0
    %3029 = vmatprep.subr.mxu0 0.0
    %3030 = vmatpush1.msra.mxu0 0.0
    %3031 = vmatprep.subr.mxu0 0.0
    %3032 = vmatpush1.msra.mxu0 0.0
    %3033 = vmatprep.subr.mxu0 0.0
    %3034 = vmatpush1.msra.mxu0 0.0
    %3035 = vmatprep.subr.mxu0 0.0
    %3036 = vmatpush1.msra.mxu0 0.0
    %3037 = vmatprep.mubr.f32.mxu0 0.0
    %3038 = vmatmul.mubr.f32.gmra.mrb[0].mxu0 %v2971
    %v3039 = vpop.f32.mrb[0].mxu0
    %v3040 = vadd.f32 0.0, %v3039
    %v3041 = vpop.f32.mrb[0].mxu0
    %3042 = vdwg.mxu0
    %v3043 = vadd.f32 %v2131, %v3040
    %3045 = vrot.lane.b32.xlu0 %v2966, 32
    %v3046 = vpop.permute.xlu0 %3045
    %v3047 = vsel %vm57, %v3046, 0
    %3049 = vmatprep.subr.mxu0 0.0
    %3050 = vmatpush1.msra.mxu0 %v2140
    %3051 = vmatprep.subr.mxu0 0.0
    %3052 = vmatpush1.msra.mxu0 %v2141
    %3053 = vmatprep.subr.mxu0 0.0
    %3054 = vmatpush1.msra.mxu0 %v2142
    %3055 = vmatprep.subr.mxu0 0.0
    %3056 = vmatpush1.msra.mxu0 %v2143
    %3057 = vmatprep.subr.mxu0 0.0
    %3058 = vmatpush1.msra.mxu0 0.0
    %3059 = vmatprep.subr.mxu0 0.0
    %3060 = vmatpush1.msra.mxu0 0.0
    %3061 = vmatprep.subr.mxu0 0.0
    %3062 = vmatpush1.msra.mxu0 0.0
    %3063 = vmatprep.subr.mxu0 0.0
    %3064 = vmatpush1.msra.mxu0 0.0
    %3065 = vmatprep.subr.mxu0 0.0
    %3066 = vmatpush1.msra.mxu0 0.0
    %3067 = vmatprep.subr.mxu0 0.0
    %3068 = vmatpush1.msra.mxu0 0.0
    %3069 = vmatprep.subr.mxu0 0.0
    %3070 = vmatpush1.msra.mxu0 0.0
    %3071 = vmatprep.subr.mxu0 0.0
    %3072 = vmatpush1.msra.mxu0 0.0
    %3073 = vmatprep.subr.mxu0 0.0
    %3074 = vmatpush1.msra.mxu0 0.0
    %3075 = vmatprep.subr.mxu0 0.0
    %3076 = vmatpush1.msra.mxu0 0.0
    %3077 = vmatprep.subr.mxu0 0.0
    %3078 = vmatpush1.msra.mxu0 0.0
    %3079 = vmatprep.subr.mxu0 0.0
    %3080 = vmatpush1.msra.mxu0 0.0
    %3081 = vmatprep.subr.mxu0 0.0
    %3082 = vmatpush1.msra.mxu0 0.0
    %3083 = vmatprep.subr.mxu0 0.0
    %3084 = vmatpush1.msra.mxu0 0.0
    %3085 = vmatprep.subr.mxu0 0.0
    %3086 = vmatpush1.msra.mxu0 0.0
    %3087 = vmatprep.subr.mxu0 0.0
    %3088 = vmatpush1.msra.mxu0 0.0
    %3089 = vmatprep.subr.mxu0 0.0
    %3090 = vmatpush1.msra.mxu0 0.0
    %3091 = vmatprep.subr.mxu0 0.0
    %3092 = vmatpush1.msra.mxu0 0.0
    %3093 = vmatprep.subr.mxu0 0.0
    %3094 = vmatpush1.msra.mxu0 0.0
    %3095 = vmatprep.subr.mxu0 0.0
    %3096 = vmatpush1.msra.mxu0 0.0
    %3097 = vmatprep.subr.mxu0 0.0
    %3098 = vmatpush1.msra.mxu0 0.0
    %3099 = vmatprep.subr.mxu0 0.0
    %3100 = vmatpush1.msra.mxu0 0.0
    %3101 = vmatprep.subr.mxu0 0.0
    %3102 = vmatpush1.msra.mxu0 0.0
    %3103 = vmatprep.subr.mxu0 0.0
    %3104 = vmatpush1.msra.mxu0 0.0
    %3105 = vmatprep.subr.mxu0 0.0
    %3106 = vmatpush1.msra.mxu0 0.0
    %3107 = vmatprep.subr.mxu0 0.0
    %3108 = vmatpush1.msra.mxu0 0.0
    %3109 = vmatprep.subr.mxu0 0.0
    %3110 = vmatpush1.msra.mxu0 0.0
    %3111 = vmatprep.subr.mxu0 0.0
    %3112 = vmatpush1.msra.mxu0 0.0
    %3113 = vmatprep.mubr.f32.mxu0 0.0
    %3114 = vmatmul.mubr.f32.gmra.mrb[0].mxu0 %v3047
    %v3115 = vpop.f32.mrb[0].mxu0
    %v3116 = vadd.f32 0.0, %v3115
    %v3117 = vpop.f32.mrb[0].mxu0
    %3118 = vdwg.mxu0
    %v3120 = vrot.slane %v3116, 4
    %v3122 = vadd.f32 %v2130, %v3120
    %v3123 = vxor.u32 %v3043, 2147483648
    %v3124 = vmul.f32 %v3123, 1.442695
    %v3125 = vpow.pop %v3124
    %v3126 = vadd.f32 %v3125, 1.0
    %v3127 = vrcp.pop %v3126
    %v3128 = vmul.f32 1.0, %v3127
    %v3129 = vtanh.pop %v3043
    %v3131 = vrot.slane %v2933, 4
    %v3133 = vmul.f32 %v3128, %v3131
    %3135 = vrot.lane.b32.xlu0 %v3129, 64
    %v3136 = vpop.permute.xlu0 %3135
    %v3138 = vmul.f32 %v3128, %v3136
    %3140 = vrot.lane.b32.xlu0 %v3138, 32
    %v3141 = vpop.permute.xlu0 %3140
    %v3143 = vadd.f32 %v3133, %v3141
    %v3144 = vtanh.pop %v3143
    %3146 = vrot.lane.b32.xlu0 %v3144, 64
    %v3147 = vpop.permute.xlu0 %3146
    %v3149 = vmul.f32 %v3128, %v3147
    %v3150 = vxor.u32 %v3122, 2147483648
    %v3151 = vmul.f32 %v3150, 1.442695
    %v3152 = vpow.pop %v3151
    %v3153 = vadd.f32 %v3152, 1.0
    %v3154 = vrcp.pop %v3153
    %v3155 = vmul.f32 1.0, %v3154
    %v3156 = vtanh.pop %v3122
    %v3158 = vrot.slane %v2960, 4
    %v3160 = vmul.f32 %v3155, %v3158
    %3162 = vrot.lane.b32.xlu0 %v3156, 64
    %v3163 = vpop.permute.xlu0 %3162
    %v3165 = vmul.f32 %v3155, %v3163
    %3167 = vrot.lane.b32.xlu0 %v3165, 32
    %v3168 = vpop.permute.xlu0 %3167
    %v3170 = vadd.f32 %v3160, %v3168
    %v3171 = vtanh.pop %v3170
    %3173 = vrot.lane.b32.xlu0 %v3171, 64
    %v3174 = vpop.permute.xlu0 %3173
    %v3176 = vmul.f32 %v3155, %v3174
    %3178 = vrot.lane.b32.xlu0 %v3149, 32
    %v3179 = vpop.permute.xlu0 %3178
    %v3180 = vsel %vm57, %v3179, 0
    %3182 = vmatprep.subr.mxu0 0.0
    %3183 = vmatpush1.msra.mxu0 %v2135
    %3184 = vmatprep.subr.mxu0 0.0
    %3185 = vmatpush1.msra.mxu0 %v2136
    %3186 = vmatprep.subr.mxu0 0.0
    %3187 = vmatpush1.msra.mxu0 %v2137
    %3188 = vmatprep.subr.mxu0 0.0
    %3189 = vmatpush1.msra.mxu0 %v2138
    %3190 = vmatprep.subr.mxu0 0.0
    %3191 = vmatpush1.msra.mxu0 0.0
    %3192 = vmatprep.subr.mxu0 0.0
    %3193 = vmatpush1.msra.mxu0 0.0
    %3194 = vmatprep.subr.mxu0 0.0
    %3195 = vmatpush1.msra.mxu0 0.0
    %3196 = vmatprep.subr.mxu0 0.0
    %3197 = vmatpush1.msra.mxu0 0.0
    %3198 = vmatprep.subr.mxu0 0.0
    %3199 = vmatpush1.msra.mxu0 0.0
    %3200 = vmatprep.subr.mxu0 0.0
    %3201 = vmatpush1.msra.mxu0 0.0
    %3202 = vmatprep.subr.mxu0 0.0
    %3203 = vmatpush1.msra.mxu0 0.0
    %3204 = vmatprep.subr.mxu0 0.0
    %3205 = vmatpush1.msra.mxu0 0.0
    %3206 = vmatprep.subr.mxu0 0.0
    %3207 = vmatpush1.msra.mxu0 0.0
    %3208 = vmatprep.subr.mxu0 0.0
    %3209 = vmatpush1.msra.mxu0 0.0
    %3210 = vmatprep.subr.mxu0 0.0
    %3211 = vmatpush1.msra.mxu0 0.0
    %3212 = vmatprep.subr.mxu0 0.0
    %3213 = vmatpush1.msra.mxu0 0.0
    %3214 = vmatprep.subr.mxu0 0.0
    %3215 = vmatpush1.msra.mxu0 0.0
    %3216 = vmatprep.subr.mxu0 0.0
    %3217 = vmatpush1.msra.mxu0 0.0
    %3218 = vmatprep.subr.mxu0 0.0
    %3219 = vmatpush1.msra.mxu0 0.0
    %3220 = vmatprep.subr.mxu0 0.0
    %3221 = vmatpush1.msra.mxu0 0.0
    %3222 = vmatprep.subr.mxu0 0.0
    %3223 = vmatpush1.msra.mxu0 0.0
    %3224 = vmatprep.subr.mxu0 0.0
    %3225 = vmatpush1.msra.mxu0 0.0
    %3226 = vmatprep.subr.mxu0 0.0
    %3227 = vmatpush1.msra.mxu0 0.0
    %3228 = vmatprep.subr.mxu0 0.0
    %3229 = vmatpush1.msra.mxu0 0.0
    %3230 = vmatprep.subr.mxu0 0.0
    %3231 = vmatpush1.msra.mxu0 0.0
    %3232 = vmatprep.subr.mxu0 0.0
    %3233 = vmatpush1.msra.mxu0 0.0
    %3234 = vmatprep.subr.mxu0 0.0
    %3235 = vmatpush1.msra.mxu0 0.0
    %3236 = vmatprep.subr.mxu0 0.0
    %3237 = vmatpush1.msra.mxu0 0.0
    %3238 = vmatprep.subr.mxu0 0.0
    %3239 = vmatpush1.msra.mxu0 0.0
    %3240 = vmatprep.subr.mxu0 0.0
    %3241 = vmatpush1.msra.mxu0 0.0
    %3242 = vmatprep.subr.mxu0 0.0
    %3243 = vmatpush1.msra.mxu0 0.0
    %3244 = vmatprep.subr.mxu0 0.0
    %3245 = vmatpush1.msra.mxu0 0.0
    %3246 = vmatprep.mubr.f32.mxu0 0.0
    %3247 = vmatmul.mubr.f32.gmra.mrb[0].mxu0 %v3180
    %v3248 = vpop.f32.mrb[0].mxu0
    %v3249 = vadd.f32 0.0, %v3248
    %v3250 = vpop.f32.mrb[0].mxu0
    %3251 = vdwg.mxu0
    %v3253 = vrot.slane %v3249, 4
    %v3255 = vadd.f32 %v2131, %v3253
    %v3257 = vrot.slane %v3176, 4
    %3258 = vrot.lane.b32.xlu0 %v3257, 32
    %v3259 = vpop.permute.xlu0 %3258
    %v3260 = vsel %vm57, %v3259, 0
    %3262 = vmatprep.subr.mxu0 0.0
    %3263 = vmatpush1.msra.mxu0 %v2140
    %3264 = vmatprep.subr.mxu0 0.0
    %3265 = vmatpush1.msra.mxu0 %v2141
    %3266 = vmatprep.subr.mxu0 0.0
    %3267 = vmatpush1.msra.mxu0 %v2142
    %3268 = vmatprep.subr.mxu0 0.0
    %3269 = vmatpush1.msra.mxu0 %v2143
    %3270 = vmatprep.subr.mxu0 0.0
    %3271 = vmatpush1.msra.mxu0 0.0
    %3272 = vmatprep.subr.mxu0 0.0
    %3273 = vmatpush1.msra.mxu0 0.0
    %3274 = vmatprep.subr.mxu0 0.0
    %3275 = vmatpush1.msra.mxu0 0.0
    %3276 = vmatprep.subr.mxu0 0.0
    %3277 = vmatpush1.msra.mxu0 0.0
    %3278 = vmatprep.subr.mxu0 0.0
    %3279 = vmatpush1.msra.mxu0 0.0
    %3280 = vmatprep.subr.mxu0 0.0
    %3281 = vmatpush1.msra.mxu0 0.0
    %3282 = vmatprep.subr.mxu0 0.0
    %3283 = vmatpush1.msra.mxu0 0.0
    %3284 = vmatprep.subr.mxu0 0.0
    %3285 = vmatpush1.msra.mxu0 0.0
    %3286 = vmatprep.subr.mxu0 0.0
    %3287 = vmatpush1.msra.mxu0 0.0
    %3288 = vmatprep.subr.mxu0 0.0
    %3289 = vmatpush1.msra.mxu0 0.0
    %3290 = vmatprep.subr.mxu0 0.0
    %3291 = vmatpush1.msra.mxu0 0.0
    %3292 = vmatprep.subr.mxu0 0.0
    %3293 = vmatpush1.msra.mxu0 0.0
    %3294 = vmatprep.subr.mxu0 0.0
    %3295 = vmatpush1.msra.mxu0 0.0
    %3296 = vmatprep.subr.mxu0 0.0
    %3297 = vmatpush1.msra.mxu0 0.0
    %3298 = vmatprep.subr.mxu0 0.0
    %3299 = vmatpush1.msra.mxu0 0.0
    %3300 = vmatprep.subr.mxu0 0.0
    %3301 = vmatpush1.msra.mxu0 0.0
    %3302 = vmatprep.subr.mxu0 0.0
    %3303 = vmatpush1.msra.mxu0 0.0
    %3304 = vmatprep.subr.mxu0 0.0
    %3305 = vmatpush1.msra.mxu0 0.0
    %3306 = vmatprep.subr.mxu0 0.0
    %3307 = vmatpush1.msra.mxu0 0.0
    %3308 = vmatprep.subr.mxu0 0.0
    %3309 = vmatpush1.msra.mxu0 0.0
    %3310 = vmatprep.subr.mxu0 0.0
    %3311 = vmatpush1.msra.mxu0 0.0
    %3312 = vmatprep.subr.mxu0 0.0
    %3313 = vmatpush1.msra.mxu0 0.0
    %3314 = vmatprep.subr.mxu0 0.0
    %3315 = vmatpush1.msra.mxu0 0.0
    %3316 = vmatprep.subr.mxu0 0.0
    %3317 = vmatpush1.msra.mxu0 0.0
    %3318 = vmatprep.subr.mxu0 0.0
    %3319 = vmatpush1.msra.mxu0 0.0
    %3320 = vmatprep.subr.mxu0 0.0
    %3321 = vmatpush1.msra.mxu0 0.0
    %3322 = vmatprep.subr.mxu0 0.0
    %3323 = vmatpush1.msra.mxu0 0.0
    %3324 = vmatprep.subr.mxu0 0.0
    %3325 = vmatpush1.msra.mxu0 0.0
    %3326 = vmatprep.mubr.f32.mxu0 0.0
    %3327 = vmatmul.mubr.f32.gmra.mrb[0].mxu0 %v3260
    %v3328 = vpop.f32.mrb[0].mxu0
    %v3329 = vadd.f32 0.0, %v3328
    %v3330 = vpop.f32.mrb[0].mxu0
    %3331 = vdwg.mxu0
    %v3332 = vadd.f32 %v2130, %v3329
    %v3333 = vxor.u32 %v3255, 2147483648
    %v3334 = vmul.f32 %v3333, 1.442695
    %v3335 = vpow.pop %v3334
    %v3336 = vadd.f32 %v3335, 1.0
    %v3337 = vrcp.pop %v3336
    %v3338 = vmul.f32 1.0, %v3337
    %v3339 = vtanh.pop %v3255
    %v3341 = vrot.slane %v3143, 4
    %v3343 = vmul.f32 %v3338, %v3341
    %3345 = vrot.lane.b32.xlu0 %v3339, 64
    %v3346 = vpop.permute.xlu0 %3345
    %v3348 = vmul.f32 %v3338, %v3346
    %3350 = vrot.lane.b32.xlu0 %v3348, 32
    %v3351 = vpop.permute.xlu0 %3350
    %v3353 = vadd.f32 %v3343, %v3351
    %v3354 = vtanh.pop %v3353
    %3356 = vrot.lane.b32.xlu0 %v3354, 64
    %v3357 = vpop.permute.xlu0 %3356
    %v3359 = vmul.f32 %v3338, %v3357
    %v3360 = vxor.u32 %v3332, 2147483648
    %v3361 = vmul.f32 %v3360, 1.442695
    %v3362 = vpow.pop %v3361
    %v3363 = vadd.f32 %v3362, 1.0
    %v3364 = vrcp.pop %v3363
    %v3365 = vmul.f32 1.0, %v3364
    %v3366 = vtanh.pop %v3332
    %v3368 = vrot.slane %v3170, 4
    %v3370 = vmul.f32 %v3365, %v3368
    %3372 = vrot.lane.b32.xlu0 %v3366, 64
    %v3373 = vpop.permute.xlu0 %3372
    %v3375 = vmul.f32 %v3365, %v3373
    %3377 = vrot.lane.b32.xlu0 %v3375, 32
    %v3378 = vpop.permute.xlu0 %3377
    %v3380 = vadd.f32 %v3370, %v3378
    %v3381 = vtanh.pop %v3380
    %3383 = vrot.lane.b32.xlu0 %v3381, 64
    %v3384 = vpop.permute.xlu0 %3383
    %v3386 = vmul.f32 %v3365, %v3384
    %v3388 = vrot.slane %v3359, 4
    %3389 = vrot.lane.b32.xlu0 %v3388, 32
    %v3390 = vpop.permute.xlu0 %3389
    %v3391 = vsel %vm57, %v3390, 0
    %3393 = vmatprep.subr.mxu0 0.0
    %3394 = vmatpush1.msra.mxu0 %v2135
    %3395 = vmatprep.subr.mxu0 0.0
    %3396 = vmatpush1.msra.mxu0 %v2136
    %3397 = vmatprep.subr.mxu0 0.0
    %3398 = vmatpush1.msra.mxu0 %v2137
    %3399 = vmatprep.subr.mxu0 0.0
    %3400 = vmatpush1.msra.mxu0 %v2138
    %3401 = vmatprep.subr.mxu0 0.0
    %3402 = vmatpush1.msra.mxu0 0.0
    %3403 = vmatprep.subr.mxu0 0.0
    %3404 = vmatpush1.msra.mxu0 0.0
    %3405 = vmatprep.subr.mxu0 0.0
    %3406 = vmatpush1.msra.mxu0 0.0
    %3407 = vmatprep.subr.mxu0 0.0
    %3408 = vmatpush1.msra.mxu0 0.0
    %3409 = vmatprep.subr.mxu0 0.0
    %3410 = vmatpush1.msra.mxu0 0.0
    %3411 = vmatprep.subr.mxu0 0.0
    %3412 = vmatpush1.msra.mxu0 0.0
    %3413 = vmatprep.subr.mxu0 0.0
    %3414 = vmatpush1.msra.mxu0 0.0
    %3415 = vmatprep.subr.mxu0 0.0
    %3416 = vmatpush1.msra.mxu0 0.0
    %3417 = vmatprep.subr.mxu0 0.0
    %3418 = vmatpush1.msra.mxu0 0.0
    %3419 = vmatprep.subr.mxu0 0.0
    %3420 = vmatpush1.msra.mxu0 0.0
    %3421 = vmatprep.subr.mxu0 0.0
    %3422 = vmatpush1.msra.mxu0 0.0
    %3423 = vmatprep.subr.mxu0 0.0
    %3424 = vmatpush1.msra.mxu0 0.0
    %3425 = vmatprep.subr.mxu0 0.0
    %3426 = vmatpush1.msra.mxu0 0.0
    %3427 = vmatprep.subr.mxu0 0.0
    %3428 = vmatpush1.msra.mxu0 0.0
    %3429 = vmatprep.subr.mxu0 0.0
    %3430 = vmatpush1.msra.mxu0 0.0
    %3431 = vmatprep.subr.mxu0 0.0
    %3432 = vmatpush1.msra.mxu0 0.0
    %3433 = vmatprep.subr.mxu0 0.0
    %3434 = vmatpush1.msra.mxu0 0.0
    %3435 = vmatprep.subr.mxu0 0.0
    %3436 = vmatpush1.msra.mxu0 0.0
    %3437 = vmatprep.subr.mxu0 0.0
    %3438 = vmatpush1.msra.mxu0 0.0
    %3439 = vmatprep.subr.mxu0 0.0
    %3440 = vmatpush1.msra.mxu0 0.0
    %3441 = vmatprep.subr.mxu0 0.0
    %3442 = vmatpush1.msra.mxu0 0.0
    %3443 = vmatprep.subr.mxu0 0.0
    %3444 = vmatpush1.msra.mxu0 0.0
    %3445 = vmatprep.subr.mxu0 0.0
    %3446 = vmatpush1.msra.mxu0 0.0
    %3447 = vmatprep.subr.mxu0 0.0
    %3448 = vmatpush1.msra.mxu0 0.0
    %3449 = vmatprep.subr.mxu0 0.0
    %3450 = vmatpush1.msra.mxu0 0.0
    %3451 = vmatprep.subr.mxu0 0.0
    %3452 = vmatpush1.msra.mxu0 0.0
    %3453 = vmatprep.subr.mxu0 0.0
    %3454 = vmatpush1.msra.mxu0 0.0
    %3455 = vmatprep.subr.mxu0 0.0
    %3456 = vmatpush1.msra.mxu0 0.0
    %3457 = vmatprep.mubr.f32.mxu0 0.0
    %3458 = vmatmul.mubr.f32.gmra.mrb[0].mxu0 %v3391
    %v3459 = vpop.f32.mrb[0].mxu0
    %v3460 = vadd.f32 0.0, %v3459
    %v3461 = vpop.f32.mrb[0].mxu0
    %3462 = vdwg.mxu0
    %v3463 = vadd.f32 %v2133, %v3460
    %3465 = vrot.lane.b32.xlu0 %v3386, 32
    %v3466 = vpop.permute.xlu0 %3465
    %v3467 = vsel %vm57, %v3466, 0
    %3469 = vmatprep.subr.mxu0 0.0
    %3470 = vmatpush1.msra.mxu0 %v2140
    %3471 = vmatprep.subr.mxu0 0.0
    %3472 = vmatpush1.msra.mxu0 %v2141
    %3473 = vmatprep.subr.mxu0 0.0
    %3474 = vmatpush1.msra.mxu0 %v2142
    %3475 = vmatprep.subr.mxu0 0.0
    %3476 = vmatpush1.msra.mxu0 %v2143
    %3477 = vmatprep.subr.mxu0 0.0
    %3478 = vmatpush1.msra.mxu0 0.0
    %3479 = vmatprep.subr.mxu0 0.0
    %3480 = vmatpush1.msra.mxu0 0.0
    %3481 = vmatprep.subr.mxu0 0.0
    %3482 = vmatpush1.msra.mxu0 0.0
    %3483 = vmatprep.subr.mxu0 0.0
    %3484 = vmatpush1.msra.mxu0 0.0
    %3485 = vmatprep.subr.mxu0 0.0
    %3486 = vmatpush1.msra.mxu0 0.0
    %3487 = vmatprep.subr.mxu0 0.0
    %3488 = vmatpush1.msra.mxu0 0.0
    %3489 = vmatprep.subr.mxu0 0.0
    %3490 = vmatpush1.msra.mxu0 0.0
    %3491 = vmatprep.subr.mxu0 0.0
    %3492 = vmatpush1.msra.mxu0 0.0
    %3493 = vmatprep.subr.mxu0 0.0
    %3494 = vmatpush1.msra.mxu0 0.0
    %3495 = vmatprep.subr.mxu0 0.0
    %3496 = vmatpush1.msra.mxu0 0.0
    %3497 = vmatprep.subr.mxu0 0.0
    %3498 = vmatpush1.msra.mxu0 0.0
    %3499 = vmatprep.subr.mxu0 0.0
    %3500 = vmatpush1.msra.mxu0 0.0
    %3501 = vmatprep.subr.mxu0 0.0
    %3502 = vmatpush1.msra.mxu0 0.0
    %3503 = vmatprep.subr.mxu0 0.0
    %3504 = vmatpush1.msra.mxu0 0.0
    %3505 = vmatprep.subr.mxu0 0.0
    %3506 = vmatpush1.msra.mxu0 0.0
    %3507 = vmatprep.subr.mxu0 0.0
    %3508 = vmatpush1.msra.mxu0 0.0
    %3509 = vmatprep.subr.mxu0 0.0
    %3510 = vmatpush1.msra.mxu0 0.0
    %3511 = vmatprep.subr.mxu0 0.0
    %3512 = vmatpush1.msra.mxu0 0.0
    %3513 = vmatprep.subr.mxu0 0.0
    %3514 = vmatpush1.msra.mxu0 0.0
    %3515 = vmatprep.subr.mxu0 0.0
    %3516 = vmatpush1.msra.mxu0 0.0
    %3517 = vmatprep.subr.mxu0 0.0
    %3518 = vmatpush1.msra.mxu0 0.0
    %3519 = vmatprep.subr.mxu0 0.0
    %3520 = vmatpush1.msra.mxu0 0.0
    %3521 = vmatprep.subr.mxu0 0.0
    %3522 = vmatpush1.msra.mxu0 0.0
    %3523 = vmatprep.subr.mxu0 0.0
    %3524 = vmatpush1.msra.mxu0 0.0
    %3525 = vmatprep.subr.mxu0 0.0
    %3526 = vmatpush1.msra.mxu0 0.0
    %3527 = vmatprep.subr.mxu0 0.0
    %3528 = vmatpush1.msra.mxu0 0.0
    %3529 = vmatprep.subr.mxu0 0.0
    %3530 = vmatpush1.msra.mxu0 0.0
    %3531 = vmatprep.subr.mxu0 0.0
    %3532 = vmatpush1.msra.mxu0 0.0
    %3533 = vmatprep.mubr.f32.mxu0 0.0
    %3534 = vmatmul.mubr.f32.gmra.mrb[0].mxu0 %v3467
    %v3535 = vpop.f32.mrb[0].mxu0
    %v3536 = vadd.f32 0.0, %v3535
    %v3537 = vpop.f32.mrb[0].mxu0
    %3538 = vdwg.mxu0
    %v3540 = vrot.slane %v3536, 4
    %v3542 = vadd.f32 %v2128, %v3540
    %v3543 = vxor.u32 %v3463, 2147483648
    %v3544 = vmul.f32 %v3543, 1.442695
    %v3545 = vpow.pop %v3544
    %v3546 = vadd.f32 %v3545, 1.0
    %v3547 = vrcp.pop %v3546
    %v3548 = vmul.f32 1.0, %v3547
    %v3549 = vtanh.pop %v3463
    %v3551 = vrot.slane %v3353, 4
    %v3553 = vmul.f32 %v3548, %v3551
    %3555 = vrot.lane.b32.xlu0 %v3549, 64
    %v3556 = vpop.permute.xlu0 %3555
    %v3558 = vmul.f32 %v3548, %v3556
    %3560 = vrot.lane.b32.xlu0 %v3558, 32
    %v3561 = vpop.permute.xlu0 %3560
    %v3563 = vadd.f32 %v3553, %v3561
    %v3564 = vtanh.pop %v3563
    %3566 = vrot.lane.b32.xlu0 %v3564, 64
    %v3567 = vpop.permute.xlu0 %3566
    %v3569 = vmul.f32 %v3548, %v3567
    %v3570 = vxor.u32 %v3542, 2147483648
    %v3571 = vmul.f32 %v3570, 1.442695
    %v3572 = vpow.pop %v3571
    %v3573 = vadd.f32 %v3572, 1.0
    %v3574 = vrcp.pop %v3573
    %v3575 = vmul.f32 1.0, %v3574
    %v3576 = vtanh.pop %v3542
    %v3578 = vrot.slane %v3380, 4
    %v3580 = vmul.f32 %v3575, %v3578
    %3582 = vrot.lane.b32.xlu0 %v3576, 64
    %v3583 = vpop.permute.xlu0 %3582
    %v3585 = vmul.f32 %v3575, %v3583
    %3587 = vrot.lane.b32.xlu0 %v3585, 32
    %v3588 = vpop.permute.xlu0 %3587
    %v3590 = vadd.f32 %v3580, %v3588
    %v3591 = vtanh.pop %v3590
    %3593 = vrot.lane.b32.xlu0 %v3591, 64
    %v3594 = vpop.permute.xlu0 %3593
    %v3596 = vmul.f32 %v3575, %v3594
    %3598 = vrot.lane.b32.xlu0 %v3569, 32
    %v3599 = vpop.permute.xlu0 %3598
    %v3600 = vsel %vm57, %v3599, 0
    %3602 = vmatprep.subr.mxu0 0.0
    %3603 = vmatpush1.msra.mxu0 %v2135
    %3604 = vmatprep.subr.mxu0 0.0
    %3605 = vmatpush1.msra.mxu0 %v2136
    %3606 = vmatprep.subr.mxu0 0.0
    %3607 = vmatpush1.msra.mxu0 %v2137
    %3608 = vmatprep.subr.mxu0 0.0
    %3609 = vmatpush1.msra.mxu0 %v2138
    %3610 = vmatprep.subr.mxu0 0.0
    %3611 = vmatpush1.msra.mxu0 0.0
    %3612 = vmatprep.subr.mxu0 0.0
    %3613 = vmatpush1.msra.mxu0 0.0
    %3614 = vmatprep.subr.mxu0 0.0
    %3615 = vmatpush1.msra.mxu0 0.0
    %3616 = vmatprep.subr.mxu0 0.0
    %3617 = vmatpush1.msra.mxu0 0.0
    %3618 = vmatprep.subr.mxu0 0.0
    %3619 = vmatpush1.msra.mxu0 0.0
    %3620 = vmatprep.subr.mxu0 0.0
    %3621 = vmatpush1.msra.mxu0 0.0
    %3622 = vmatprep.subr.mxu0 0.0
    %3623 = vmatpush1.msra.mxu0 0.0
    %3624 = vmatprep.subr.mxu0 0.0
    %3625 = vmatpush1.msra.mxu0 0.0
    %3626 = vmatprep.subr.mxu0 0.0
    %3627 = vmatpush1.msra.mxu0 0.0
    %3628 = vmatprep.subr.mxu0 0.0
    %3629 = vmatpush1.msra.mxu0 0.0
    %3630 = vmatprep.subr.mxu0 0.0
    %3631 = vmatpush1.msra.mxu0 0.0
    %3632 = vmatprep.subr.mxu0 0.0
    %3633 = vmatpush1.msra.mxu0 0.0
    %3634 = vmatprep.subr.mxu0 0.0
    %3635 = vmatpush1.msra.mxu0 0.0
    %3636 = vmatprep.subr.mxu0 0.0
    %3637 = vmatpush1.msra.mxu0 0.0
    %3638 = vmatprep.subr.mxu0 0.0
    %3639 = vmatpush1.msra.mxu0 0.0
    %3640 = vmatprep.subr.mxu0 0.0
    %3641 = vmatpush1.msra.mxu0 0.0
    %3642 = vmatprep.subr.mxu0 0.0
    %3643 = vmatpush1.msra.mxu0 0.0
    %3644 = vmatprep.subr.mxu0 0.0
    %3645 = vmatpush1.msra.mxu0 0.0
    %3646 = vmatprep.subr.mxu0 0.0
    %3647 = vmatpush1.msra.mxu0 0.0
    %3648 = vmatprep.subr.mxu0 0.0
    %3649 = vmatpush1.msra.mxu0 0.0
    %3650 = vmatprep.subr.mxu0 0.0
    %3651 = vmatpush1.msra.mxu0 0.0
    %3652 = vmatprep.subr.mxu0 0.0
    %3653 = vmatpush1.msra.mxu0 0.0
    %3654 = vmatprep.subr.mxu0 0.0
    %3655 = vmatpush1.msra.mxu0 0.0
    %3656 = vmatprep.subr.mxu0 0.0
    %3657 = vmatpush1.msra.mxu0 0.0
    %3658 = vmatprep.subr.mxu0 0.0
    %3659 = vmatpush1.msra.mxu0 0.0
    %3660 = vmatprep.subr.mxu0 0.0
    %3661 = vmatpush1.msra.mxu0 0.0
    %3662 = vmatprep.subr.mxu0 0.0
    %3663 = vmatpush1.msra.mxu0 0.0
    %3664 = vmatprep.subr.mxu0 0.0
    %3665 = vmatpush1.msra.mxu0 0.0
    %3666 = vmatprep.mubr.f32.mxu0 0.0
    %3667 = vmatmul.mubr.f32.gmra.mrb[0].mxu0 %v3600
    %v3668 = vpop.f32.mrb[0].mxu0
    %v3669 = vadd.f32 0.0, %v3668
    %v3670 = vpop.f32.mrb[0].mxu0
    %3671 = vdwg.mxu0
    %v3673 = vrot.slane %v3669, 4
    %v3675 = vadd.f32 %v2133, %v3673
    %v3677 = vrot.slane %v3596, 4
    %3678 = vrot.lane.b32.xlu0 %v3677, 32
    %v3679 = vpop.permute.xlu0 %3678
    %v3680 = vsel %vm57, %v3679, 0
    %3682 = vmatprep.subr.mxu0 0.0
    %3683 = vmatpush1.msra.mxu0 %v2140
    %3684 = vmatprep.subr.mxu0 0.0
    %3685 = vmatpush1.msra.mxu0 %v2141
    %3686 = vmatprep.subr.mxu0 0.0
    %3687 = vmatpush1.msra.mxu0 %v2142
    %3688 = vmatprep.subr.mxu0 0.0
    %3689 = vmatpush1.msra.mxu0 %v2143
    %3690 = vmatprep.subr.mxu0 0.0
    %3691 = vmatpush1.msra.mxu0 0.0
    %3692 = vmatprep.subr.mxu0 0.0
    %3693 = vmatpush1.msra.mxu0 0.0
    %3694 = vmatprep.subr.mxu0 0.0
    %3695 = vmatpush1.msra.mxu0 0.0
    %3696 = vmatprep.subr.mxu0 0.0
    %3697 = vmatpush1.msra.mxu0 0.0
    %3698 = vmatprep.subr.mxu0 0.0
    %3699 = vmatpush1.msra.mxu0 0.0
    %3700 = vmatprep.subr.mxu0 0.0
    %3701 = vmatpush1.msra.mxu0 0.0
    %3702 = vmatprep.subr.mxu0 0.0
    %3703 = vmatpush1.msra.mxu0 0.0
    %3704 = vmatprep.subr.mxu0 0.0
    %3705 = vmatpush1.msra.mxu0 0.0
    %3706 = vmatprep.subr.mxu0 0.0
    %3707 = vmatpush1.msra.mxu0 0.0
    %3708 = vmatprep.subr.mxu0 0.0
    %3709 = vmatpush1.msra.mxu0 0.0
    %3710 = vmatprep.subr.mxu0 0.0
    %3711 = vmatpush1.msra.mxu0 0.0
    %3712 = vmatprep.subr.mxu0 0.0
    %3713 = vmatpush1.msra.mxu0 0.0
    %3714 = vmatprep.subr.mxu0 0.0
    %3715 = vmatpush1.msra.mxu0 0.0
    %3716 = vmatprep.subr.mxu0 0.0
    %3717 = vmatpush1.msra.mxu0 0.0
    %3718 = vmatprep.subr.mxu0 0.0
    %3719 = vmatpush1.msra.mxu0 0.0
    %3720 = vmatprep.subr.mxu0 0.0
    %3721 = vmatpush1.msra.mxu0 0.0
    %3722 = vmatprep.subr.mxu0 0.0
    %3723 = vmatpush1.msra.mxu0 0.0
    %3724 = vmatprep.subr.mxu0 0.0
    %3725 = vmatpush1.msra.mxu0 0.0
    %3726 = vmatprep.subr.mxu0 0.0
    %3727 = vmatpush1.msra.mxu0 0.0
    %3728 = vmatprep.subr.mxu0 0.0
    %3729 = vmatpush1.msra.mxu0 0.0
    %3730 = vmatprep.subr.mxu0 0.0
    %3731 = vmatpush1.msra.mxu0 0.0
    %3732 = vmatprep.subr.mxu0 0.0
    %3733 = vmatpush1.msra.mxu0 0.0
    %3734 = vmatprep.subr.mxu0 0.0
    %3735 = vmatpush1.msra.mxu0 0.0
    %3736 = vmatprep.subr.mxu0 0.0
    %3737 = vmatpush1.msra.mxu0 0.0
    %3738 = vmatprep.subr.mxu0 0.0
    %3739 = vmatpush1.msra.mxu0 0.0
    %3740 = vmatprep.subr.mxu0 0.0
    %3741 = vmatpush1.msra.mxu0 0.0
    %3742 = vmatprep.subr.mxu0 0.0
    %3743 = vmatpush1.msra.mxu0 0.0
    %3744 = vmatprep.subr.mxu0 0.0
    %3745 = vmatpush1.msra.mxu0 0.0
    %3746 = vmatprep.mubr.f32.mxu0 0.0
    %3747 = vmatmul.mubr.f32.gmra.mrb[0].mxu0 %v3680
    %v3748 = vpop.f32.mrb[0].mxu0
    %v3749 = vadd.f32 0.0, %v3748
    %v3750 = vpop.f32.mrb[0].mxu0
    %3751 = vdwg.mxu0
    %v3752 = vadd.f32 %v2128, %v3749
    %v3753 = vxor.u32 %v3675, 2147483648
    %v3754 = vmul.f32 %v3753, 1.442695
    %v3755 = vpow.pop %v3754
    %v3756 = vadd.f32 %v3755, 1.0
    %v3757 = vrcp.pop %v3756
    %v3758 = vmul.f32 1.0, %v3757
    %v3759 = vtanh.pop %v3675
    %v3761 = vrot.slane %v3563, 4
    %v3763 = vmul.f32 %v3758, %v3761
    %3765 = vrot.lane.b32.xlu0 %v3759, 64
    %v3766 = vpop.permute.xlu0 %3765
    %v3768 = vmul.f32 %v3758, %v3766
    %3770 = vrot.lane.b32.xlu0 %v3768, 32
    %v3771 = vpop.permute.xlu0 %3770
    %v3773 = vadd.f32 %v3763, %v3771
    %v3774 = vxor.u32 %v3752, 2147483648
    %v3775 = vmul.f32 %v3774, 1.442695
    %v3776 = vpow.pop %v3775
    %v3777 = vadd.f32 %v3776, 1.0
    %v3778 = vrcp.pop %v3777
    %v3779 = vmul.f32 1.0, %v3778
    %v3780 = vtanh.pop %v3752
    %v3782 = vrot.slane %v3590, 4
    %v3784 = vmul.f32 %v3779, %v3782
    %3786 = vrot.lane.b32.xlu0 %v3780, 64
    %v3787 = vpop.permute.xlu0 %3786
    %v3789 = vmul.f32 %v3779, %v3787
    %3791 = vrot.lane.b32.xlu0 %v3789, 32
    %v3792 = vpop.permute.xlu0 %3791
    %v3794 = vadd.f32 %v3784, %v3792
    %v3795 = vld [vmem:[%s7] sm:$0xff]
    %v3796 = vld [vmem:[%s7 + $0x8] sm:$0xff]
    %v3797 = vld [vmem:[%s7 + $0x10] sm:$0xff]
    %v3798 = vld [vmem:[%s7 + $0x18] sm:$0xff]
    %v3799 = vld [vmem:[%s7 + $0x80] sm:$0xff]
    %v3800 = vld [vmem:[%s7 + $0x88] sm:$0xff]
    %v3801 = vld [vmem:[%s7 + $0x90] sm:$0xff]
    %v3802 = vld [vmem:[%s7 + $0x98] sm:$0xff]
    %v3804 = vrot.slane %v1844, 6
    %3805 = vrot.lane.b32.xlu0 %v3804, 96
    %v3806 = vpop.permute.xlu0 %3805
    %v3807 = vsel %vm57, %v3806, 0
    %3809 = vmatprep.subr.mxu0 0.0
    %3810 = vmatpush1.msra.mxu0 %v3799
    %3811 = vmatprep.subr.mxu0 0.0
    %3812 = vmatpush1.msra.mxu0 %v3800
    %3813 = vmatprep.subr.mxu0 0.0
    %3814 = vmatpush1.msra.mxu0 %v3801
    %3815 = vmatprep.subr.mxu0 0.0
    %3816 = vmatpush1.msra.mxu0 %v3802
    %3817 = vmatprep.subr.mxu0 0.0
    %3818 = vmatpush1.msra.mxu0 0.0
    %3819 = vmatprep.subr.mxu0 0.0
    %3820 = vmatpush1.msra.mxu0 0.0
    %3821 = vmatprep.subr.mxu0 0.0
    %3822 = vmatpush1.msra.mxu0 0.0
    %3823 = vmatprep.subr.mxu0 0.0
    %3824 = vmatpush1.msra.mxu0 0.0
    %3825 = vmatprep.subr.mxu0 0.0
    %3826 = vmatpush1.msra.mxu0 0.0
    %3827 = vmatprep.subr.mxu0 0.0
    %3828 = vmatpush1.msra.mxu0 0.0
    %3829 = vmatprep.subr.mxu0 0.0
    %3830 = vmatpush1.msra.mxu0 0.0
    %3831 = vmatprep.subr.mxu0 0.0
    %3832 = vmatpush1.msra.mxu0 0.0
    %3833 = vmatprep.subr.mxu0 0.0
    %3834 = vmatpush1.msra.mxu0 0.0
    %3835 = vmatprep.subr.mxu0 0.0
    %3836 = vmatpush1.msra.mxu0 0.0
    %3837 = vmatprep.subr.mxu0 0.0
    %3838 = vmatpush1.msra.mxu0 0.0
    %3839 = vmatprep.subr.mxu0 0.0
    %3840 = vmatpush1.msra.mxu0 0.0
    %3841 = vmatprep.subr.mxu0 0.0
    %3842 = vmatpush1.msra.mxu0 0.0
    %3843 = vmatprep.subr.mxu0 0.0
    %3844 = vmatpush1.msra.mxu0 0.0
    %3845 = vmatprep.subr.mxu0 0.0
    %3846 = vmatpush1.msra.mxu0 0.0
    %3847 = vmatprep.subr.mxu0 0.0
    %3848 = vmatpush1.msra.mxu0 0.0
    %3849 = vmatprep.subr.mxu0 0.0
    %3850 = vmatpush1.msra.mxu0 0.0
    %3851 = vmatprep.subr.mxu0 0.0
    %3852 = vmatpush1.msra.mxu0 0.0
    %3853 = vmatprep.subr.mxu0 0.0
    %3854 = vmatpush1.msra.mxu0 0.0
    %3855 = vmatprep.subr.mxu0 0.0
    %3856 = vmatpush1.msra.mxu0 0.0
    %3857 = vmatprep.subr.mxu0 0.0
    %3858 = vmatpush1.msra.mxu0 0.0
    %3859 = vmatprep.subr.mxu0 0.0
    %3860 = vmatpush1.msra.mxu0 0.0
    %3861 = vmatprep.subr.mxu0 0.0
    %3862 = vmatpush1.msra.mxu0 0.0
    %3863 = vmatprep.subr.mxu0 0.0
    %3864 = vmatpush1.msra.mxu0 0.0
    %3865 = vmatprep.subr.mxu0 0.0
    %3866 = vmatpush1.msra.mxu0 0.0
    %3867 = vmatprep.subr.mxu0 0.0
    %3868 = vmatpush1.msra.mxu0 0.0
    %3869 = vmatprep.subr.mxu0 0.0
    %3870 = vmatpush1.msra.mxu0 0.0
    %3871 = vmatprep.subr.mxu0 0.0
    %3872 = vmatpush1.msra.mxu0 0.0
    %3873 = vmatprep.mubr.f32.mxu0 0.0
    %3874 = vmatmul.mubr.f32.gmra.mrb[0].mxu0 %v3807
    %v3875 = vpop.f32.mrb[0].mxu0
    %v3876 = vadd.f32 0.0, %v3875
    %v3877 = vpop.f32.mrb[0].mxu0
    %3878 = vdwg.mxu0
    %v3879 = vrot.slane %v1844, 4
    %3880 = vrot.lane.b32.xlu0 %v3879, 96
    %v3881 = vpop.permute.xlu0 %3880
    %v3882 = vsel %vm57, %v3881, 0
    %3884 = vmatprep.subr.mxu0 0.0
    %3885 = vmatpush1.msra.mxu0 %v3795
    %3886 = vmatprep.subr.mxu0 0.0
    %3887 = vmatpush1.msra.mxu0 %v3796
    %3888 = vmatprep.subr.mxu0 0.0
    %3889 = vmatpush1.msra.mxu0 %v3797
    %3890 = vmatprep.subr.mxu0 0.0
    %3891 = vmatpush1.msra.mxu0 %v3798
    %3892 = vmatprep.subr.mxu0 0.0
    %3893 = vmatpush1.msra.mxu0 0.0
    %3894 = vmatprep.subr.mxu0 0.0
    %3895 = vmatpush1.msra.mxu0 0.0
    %3896 = vmatprep.subr.mxu0 0.0
    %3897 = vmatpush1.msra.mxu0 0.0
    %3898 = vmatprep.subr.mxu0 0.0
    %3899 = vmatpush1.msra.mxu0 0.0
    %3900 = vmatprep.subr.mxu0 0.0
    %3901 = vmatpush1.msra.mxu0 0.0
    %3902 = vmatprep.subr.mxu0 0.0
    %3903 = vmatpush1.msra.mxu0 0.0
    %3904 = vmatprep.subr.mxu0 0.0
    %3905 = vmatpush1.msra.mxu0 0.0
    %3906 = vmatprep.subr.mxu0 0.0
    %3907 = vmatpush1.msra.mxu0 0.0
    %3908 = vmatprep.subr.mxu0 0.0
    %3909 = vmatpush1.msra.mxu0 0.0
    %3910 = vmatprep.subr.mxu0 0.0
    %3911 = vmatpush1.msra.mxu0 0.0
    %3912 = vmatprep.subr.mxu0 0.0
    %3913 = vmatpush1.msra.mxu0 0.0
    %3914 = vmatprep.subr.mxu0 0.0
    %3915 = vmatpush1.msra.mxu0 0.0
    %3916 = vmatprep.subr.mxu0 0.0
    %3917 = vmatpush1.msra.mxu0 0.0
    %3918 = vmatprep.subr.mxu0 0.0
    %3919 = vmatpush1.msra.mxu0 0.0
    %3920 = vmatprep.subr.mxu0 0.0
    %3921 = vmatpush1.msra.mxu0 0.0
    %3922 = vmatprep.subr.mxu0 0.0
    %3923 = vmatpush1.msra.mxu0 0.0
    %3924 = vmatprep.subr.mxu0 0.0
    %3925 = vmatpush1.msra.mxu0 0.0
    %3926 = vmatprep.subr.mxu0 0.0
    %3927 = vmatpush1.msra.mxu0 0.0
    %3928 = vmatprep.subr.mxu0 0.0
    %3929 = vmatpush1.msra.mxu0 0.0
    %3930 = vmatprep.subr.mxu0 0.0
    %3931 = vmatpush1.msra.mxu0 0.0
    %3932 = vmatprep.subr.mxu0 0.0
    %3933 = vmatpush1.msra.mxu0 0.0
    %3934 = vmatprep.subr.mxu0 0.0
    %3935 = vmatpush1.msra.mxu0 0.0
    %3936 = vmatprep.subr.mxu0 0.0
    %3937 = vmatpush1.msra.mxu0 0.0
    %3938 = vmatprep.subr.mxu0 0.0
    %3939 = vmatpush1.msra.mxu0 0.0
    %3940 = vmatprep.subr.mxu0 0.0
    %3941 = vmatpush1.msra.mxu0 0.0
    %3942 = vmatprep.subr.mxu0 0.0
    %3943 = vmatpush1.msra.mxu0 0.0
    %3944 = vmatprep.subr.mxu0 0.0
    %3945 = vmatpush1.msra.mxu0 0.0
    %3946 = vmatprep.subr.mxu0 0.0
    %3947 = vmatpush1.msra.mxu0 0.0
    %3948 = vmatprep.mubr.f32.mxu0 0.0
    %3949 = vmatmul.mubr.f32.gmra.mrb[0].mxu0 %v3882
    %v3950 = vpop.f32.mrb[0].mxu0
    %v3951 = vadd.f32 %v3876, %v3950
    %v3952 = vpop.f32.mrb[0].mxu0
    %3953 = vdwg.mxu0
    %v3954 = vld [vmem:[%s7 + $0x20] sm:$0xff]
    %v3955 = vld [vmem:[%s7 + $0x28] sm:$0xff]
    %v3956 = vld [vmem:[%s7 + $0x30] sm:$0xff]
    %v3957 = vld [vmem:[%s7 + $0x38] sm:$0xff]
    %3959 = vrot.lane.b32.xlu0 %v1871, 96
    %v3960 = vpop.permute.xlu0 %3959
    %v3961 = vsel %vm57, %v3960, 0
    %3963 = vmatprep.subr.mxu0 0.0
    %3964 = vmatpush1.msra.mxu0 %v3954
    %3965 = vmatprep.subr.mxu0 0.0
    %3966 = vmatpush1.msra.mxu0 %v3955
    %3967 = vmatprep.subr.mxu0 0.0
    %3968 = vmatpush1.msra.mxu0 %v3956
    %3969 = vmatprep.subr.mxu0 0.0
    %3970 = vmatpush1.msra.mxu0 %v3957
    %3971 = vmatprep.subr.mxu0 0.0
    %3972 = vmatpush1.msra.mxu0 0.0
    %3973 = vmatprep.subr.mxu0 0.0
    %3974 = vmatpush1.msra.mxu0 0.0
    %3975 = vmatprep.subr.mxu0 0.0
    %3976 = vmatpush1.msra.mxu0 0.0
    %3977 = vmatprep.subr.mxu0 0.0
    %3978 = vmatpush1.msra.mxu0 0.0
    %3979 = vmatprep.subr.mxu0 0.0
    %3980 = vmatpush1.msra.mxu0 0.0
    %3981 = vmatprep.subr.mxu0 0.0
    %3982 = vmatpush1.msra.mxu0 0.0
    %3983 = vmatprep.subr.mxu0 0.0
    %3984 = vmatpush1.msra.mxu0 0.0
    %3985 = vmatprep.subr.mxu0 0.0
    %3986 = vmatpush1.msra.mxu0 0.0
    %3987 = vmatprep.subr.mxu0 0.0
    %3988 = vmatpush1.msra.mxu0 0.0
    %3989 = vmatprep.subr.mxu0 0.0
    %3990 = vmatpush1.msra.mxu0 0.0
    %3991 = vmatprep.subr.mxu0 0.0
    %3992 = vmatpush1.msra.mxu0 0.0
    %3993 = vmatprep.subr.mxu0 0.0
    %3994 = vmatpush1.msra.mxu0 0.0
    %3995 = vmatprep.subr.mxu0 0.0
    %3996 = vmatpush1.msra.mxu0 0.0
    %3997 = vmatprep.subr.mxu0 0.0
    %3998 = vmatpush1.msra.mxu0 0.0
    %3999 = vmatprep.subr.mxu0 0.0
    %4000 = vmatpush1.msra.mxu0 0.0
    %4001 = vmatprep.subr.mxu0 0.0
    %4002 = vmatpush1.msra.mxu0 0.0
    %4003 = vmatprep.subr.mxu0 0.0
    %4004 = vmatpush1.msra.mxu0 0.0
    %4005 = vmatprep.subr.mxu0 0.0
    %4006 = vmatpush1.msra.mxu0 0.0
    %4007 = vmatprep.subr.mxu0 0.0
    %4008 = vmatpush1.msra.mxu0 0.0
    %4009 = vmatprep.subr.mxu0 0.0
    %4010 = vmatpush1.msra.mxu0 0.0
    %4011 = vmatprep.subr.mxu0 0.0
    %4012 = vmatpush1.msra.mxu0 0.0
    %4013 = vmatprep.subr.mxu0 0.0
    %4014 = vmatpush1.msra.mxu0 0.0
    %4015 = vmatprep.subr.mxu0 0.0
    %4016 = vmatpush1.msra.mxu0 0.0
    %4017 = vmatprep.subr.mxu0 0.0
    %4018 = vmatpush1.msra.mxu0 0.0
    %4019 = vmatprep.subr.mxu0 0.0
    %4020 = vmatpush1.msra.mxu0 0.0
    %4021 = vmatprep.subr.mxu0 0.0
    %4022 = vmatpush1.msra.mxu0 0.0
    %4023 = vmatprep.subr.mxu0 0.0
    %4024 = vmatpush1.msra.mxu0 0.0
    %4025 = vmatprep.subr.mxu0 0.0
    %4026 = vmatpush1.msra.mxu0 0.0
    %4027 = vmatprep.mubr.f32.mxu0 0.0
    %4028 = vmatmul.mubr.f32.gmra.mrb[0].mxu0 %v3961
    %v4029 = vpop.f32.mrb[0].mxu0
    %v4030 = vadd.f32 0.0, %v4029
    %v4031 = vpop.f32.mrb[0].mxu0
    %4032 = vdwg.mxu0
    %v4033 = vadd.f32 %v3951, %v4030
    %v4034 = vld [vmem:[%s7 + $0xa0] sm:$0xff]
    %v4035 = vld [vmem:[%s7 + $0xa8] sm:$0xff]
    %v4036 = vld [vmem:[%s7 + $0xb0] sm:$0xff]
    %v4037 = vld [vmem:[%s7 + $0xb8] sm:$0xff]
    %v4038 = vrot.slane %v1871, 2
    %4039 = vrot.lane.b32.xlu0 %v4038, 96
    %v4040 = vpop.permute.xlu0 %4039
    %v4041 = vsel %vm57, %v4040, 0
    %4043 = vmatprep.subr.mxu0 0.0
    %4044 = vmatpush1.msra.mxu0 %v4034
    %4045 = vmatprep.subr.mxu0 0.0
    %4046 = vmatpush1.msra.mxu0 %v4035
    %4047 = vmatprep.subr.mxu0 0.0
    %4048 = vmatpush1.msra.mxu0 %v4036
    %4049 = vmatprep.subr.mxu0 0.0
    %4050 = vmatpush1.msra.mxu0 %v4037
    %4051 = vmatprep.subr.mxu0 0.0
    %4052 = vmatpush1.msra.mxu0 0.0
    %4053 = vmatprep.subr.mxu0 0.0
    %4054 = vmatpush1.msra.mxu0 0.0
    %4055 = vmatprep.subr.mxu0 0.0
    %4056 = vmatpush1.msra.mxu0 0.0
    %4057 = vmatprep.subr.mxu0 0.0
    %4058 = vmatpush1.msra.mxu0 0.0
    %4059 = vmatprep.subr.mxu0 0.0
    %4060 = vmatpush1.msra.mxu0 0.0
    %4061 = vmatprep.subr.mxu0 0.0
    %4062 = vmatpush1.msra.mxu0 0.0
    %4063 = vmatprep.subr.mxu0 0.0
    %4064 = vmatpush1.msra.mxu0 0.0
    %4065 = vmatprep.subr.mxu0 0.0
    %4066 = vmatpush1.msra.mxu0 0.0
    %4067 = vmatprep.subr.mxu0 0.0
    %4068 = vmatpush1.msra.mxu0 0.0
    %4069 = vmatprep.subr.mxu0 0.0
    %4070 = vmatpush1.msra.mxu0 0.0
    %4071 = vmatprep.subr.mxu0 0.0
    %4072 = vmatpush1.msra.mxu0 0.0
    %4073 = vmatprep.subr.mxu0 0.0
    %4074 = vmatpush1.msra.mxu0 0.0
    %4075 = vmatprep.subr.mxu0 0.0
    %4076 = vmatpush1.msra.mxu0 0.0
    %4077 = vmatprep.subr.mxu0 0.0
    %4078 = vmatpush1.msra.mxu0 0.0
    %4079 = vmatprep.subr.mxu0 0.0
    %4080 = vmatpush1.msra.mxu0 0.0
    %4081 = vmatprep.subr.mxu0 0.0
    %4082 = vmatpush1.msra.mxu0 0.0
    %4083 = vmatprep.subr.mxu0 0.0
    %4084 = vmatpush1.msra.mxu0 0.0
    %4085 = vmatprep.subr.mxu0 0.0
    %4086 = vmatpush1.msra.mxu0 0.0
    %4087 = vmatprep.subr.mxu0 0.0
    %4088 = vmatpush1.msra.mxu0 0.0
    %4089 = vmatprep.subr.mxu0 0.0
    %4090 = vmatpush1.msra.mxu0 0.0
    %4091 = vmatprep.subr.mxu0 0.0
    %4092 = vmatpush1.msra.mxu0 0.0
    %4093 = vmatprep.subr.mxu0 0.0
    %4094 = vmatpush1.msra.mxu0 0.0
    %4095 = vmatprep.subr.mxu0 0.0
    %4096 = vmatpush1.msra.mxu0 0.0
    %4097 = vmatprep.subr.mxu0 0.0
    %4098 = vmatpush1.msra.mxu0 0.0
    %4099 = vmatprep.subr.mxu0 0.0
    %4100 = vmatpush1.msra.mxu0 0.0
    %4101 = vmatprep.subr.mxu0 0.0
    %4102 = vmatpush1.msra.mxu0 0.0
    %4103 = vmatprep.subr.mxu0 0.0
    %4104 = vmatpush1.msra.mxu0 0.0
    %4105 = vmatprep.subr.mxu0 0.0
    %4106 = vmatpush1.msra.mxu0 0.0
    %4107 = vmatprep.mubr.f32.mxu0 0.0
    %4108 = vmatmul.mubr.f32.gmra.mrb[0].mxu0 %v4041
    %v4109 = vpop.f32.mrb[0].mxu0
    %v4110 = vadd.f32 0.0, %v4109
    %v4111 = vpop.f32.mrb[0].mxu0
    %4112 = vdwg.mxu0
    %v4113 = vadd.f32 %v4033, %v4110
    %v4114 = vld [vmem:[%s7 + $0x40] sm:$0xff]
    %v4115 = vld [vmem:[%s7 + $0x48] sm:$0xff]
    %v4116 = vld [vmem:[%s7 + $0x50] sm:$0xff]
    %v4117 = vld [vmem:[%s7 + $0x58] sm:$0xff]
    %v4119 = vrot.slane %v3773, 4
    %4120 = vrot.lane.b32.xlu0 %v4119, 96
    %v4121 = vpop.permute.xlu0 %4120
    %v4122 = vsel %vm57, %v4121, 0
    %4124 = vmatprep.subr.mxu0 0.0
    %4125 = vmatpush1.msra.mxu0 %v4114
    %4126 = vmatprep.subr.mxu0 0.0
    %4127 = vmatpush1.msra.mxu0 %v4115
    %4128 = vmatprep.subr.mxu0 0.0
    %4129 = vmatpush1.msra.mxu0 %v4116
    %4130 = vmatprep.subr.mxu0 0.0
    %4131 = vmatpush1.msra.mxu0 %v4117
    %4132 = vmatprep.subr.mxu0 0.0
    %4133 = vmatpush1.msra.mxu0 0.0
    %4134 = vmatprep.subr.mxu0 0.0
    %4135 = vmatpush1.msra.mxu0 0.0
    %4136 = vmatprep.subr.mxu0 0.0
    %4137 = vmatpush1.msra.mxu0 0.0
    %4138 = vmatprep.subr.mxu0 0.0
    %4139 = vmatpush1.msra.mxu0 0.0
    %4140 = vmatprep.subr.mxu0 0.0
    %4141 = vmatpush1.msra.mxu0 0.0
    %4142 = vmatprep.subr.mxu0 0.0
    %4143 = vmatpush1.msra.mxu0 0.0
    %4144 = vmatprep.subr.mxu0 0.0
    %4145 = vmatpush1.msra.mxu0 0.0
    %4146 = vmatprep.subr.mxu0 0.0
    %4147 = vmatpush1.msra.mxu0 0.0
    %4148 = vmatprep.subr.mxu0 0.0
    %4149 = vmatpush1.msra.mxu0 0.0
    %4150 = vmatprep.subr.mxu0 0.0
    %4151 = vmatpush1.msra.mxu0 0.0
    %4152 = vmatprep.subr.mxu0 0.0
    %4153 = vmatpush1.msra.mxu0 0.0
    %4154 = vmatprep.subr.mxu0 0.0
    %4155 = vmatpush1.msra.mxu0 0.0
    %4156 = vmatprep.subr.mxu0 0.0
    %4157 = vmatpush1.msra.mxu0 0.0
    %4158 = vmatprep.subr.mxu0 0.0
    %4159 = vmatpush1.msra.mxu0 0.0
    %4160 = vmatprep.subr.mxu0 0.0
    %4161 = vmatpush1.msra.mxu0 0.0
    %4162 = vmatprep.subr.mxu0 0.0
    %4163 = vmatpush1.msra.mxu0 0.0
    %4164 = vmatprep.subr.mxu0 0.0
    %4165 = vmatpush1.msra.mxu0 0.0
    %4166 = vmatprep.subr.mxu0 0.0
    %4167 = vmatpush1.msra.mxu0 0.0
    %4168 = vmatprep.subr.mxu0 0.0
    %4169 = vmatpush1.msra.mxu0 0.0
    %4170 = vmatprep.subr.mxu0 0.0
    %4171 = vmatpush1.msra.mxu0 0.0
    %4172 = vmatprep.subr.mxu0 0.0
    %4173 = vmatpush1.msra.mxu0 0.0
    %4174 = vmatprep.subr.mxu0 0.0
    %4175 = vmatpush1.msra.mxu0 0.0
    %4176 = vmatprep.subr.mxu0 0.0
    %4177 = vmatpush1.msra.mxu0 0.0
    %4178 = vmatprep.subr.mxu0 0.0
    %4179 = vmatpush1.msra.mxu0 0.0
    %4180 = vmatprep.subr.mxu0 0.0
    %4181 = vmatpush1.msra.mxu0 0.0
    %4182 = vmatprep.subr.mxu0 0.0
    %4183 = vmatpush1.msra.mxu0 0.0
    %4184 = vmatprep.subr.mxu0 0.0
    %4185 = vmatpush1.msra.mxu0 0.0
    %4186 = vmatprep.subr.mxu0 0.0
    %4187 = vmatpush1.msra.mxu0 0.0
    %4188 = vmatprep.mubr.f32.mxu0 0.0
    %4189 = vmatmul.mubr.f32.gmra.mrb[0].mxu0 %v4122
    %v4190 = vpop.f32.mrb[0].mxu0
    %v4191 = vadd.f32 0.0, %v4190
    %v4192 = vpop.f32.mrb[0].mxu0
    %4193 = vdwg.mxu0
    %v4194 = vadd.f32 %v4113, %v4191
    %v4195 = vld [vmem:[%s7 + $0xc0] sm:$0xff]
    %v4196 = vld [vmem:[%s7 + $0xc8] sm:$0xff]
    %v4197 = vld [vmem:[%s7 + $0xd0] sm:$0xff]
    %v4198 = vld [vmem:[%s7 + $0xd8] sm:$0xff]
    %v4199 = vrot.slane %v3773, 6
    %4200 = vrot.lane.b32.xlu0 %v4199, 96
    %v4201 = vpop.permute.xlu0 %4200
    %v4202 = vsel %vm57, %v4201, 0
    %4204 = vmatprep.subr.mxu0 0.0
    %4205 = vmatpush1.msra.mxu0 %v4195
    %4206 = vmatprep.subr.mxu0 0.0
    %4207 = vmatpush1.msra.mxu0 %v4196
    %4208 = vmatprep.subr.mxu0 0.0
    %4209 = vmatpush1.msra.mxu0 %v4197
    %4210 = vmatprep.subr.mxu0 0.0
    %4211 = vmatpush1.msra.mxu0 %v4198
    %4212 = vmatprep.subr.mxu0 0.0
    %4213 = vmatpush1.msra.mxu0 0.0
    %4214 = vmatprep.subr.mxu0 0.0
    %4215 = vmatpush1.msra.mxu0 0.0
    %4216 = vmatprep.subr.mxu0 0.0
    %4217 = vmatpush1.msra.mxu0 0.0
    %4218 = vmatprep.subr.mxu0 0.0
    %4219 = vmatpush1.msra.mxu0 0.0
    %4220 = vmatprep.subr.mxu0 0.0
    %4221 = vmatpush1.msra.mxu0 0.0
    %4222 = vmatprep.subr.mxu0 0.0
    %4223 = vmatpush1.msra.mxu0 0.0
    %4224 = vmatprep.subr.mxu0 0.0
    %4225 = vmatpush1.msra.mxu0 0.0
    %4226 = vmatprep.subr.mxu0 0.0
    %4227 = vmatpush1.msra.mxu0 0.0
    %4228 = vmatprep.subr.mxu0 0.0
    %4229 = vmatpush1.msra.mxu0 0.0
    %4230 = vmatprep.subr.mxu0 0.0
    %4231 = vmatpush1.msra.mxu0 0.0
    %4232 = vmatprep.subr.mxu0 0.0
    %4233 = vmatpush1.msra.mxu0 0.0
    %4234 = vmatprep.subr.mxu0 0.0
    %4235 = vmatpush1.msra.mxu0 0.0
    %4236 = vmatprep.subr.mxu0 0.0
    %4237 = vmatpush1.msra.mxu0 0.0
    %4238 = vmatprep.subr.mxu0 0.0
    %4239 = vmatpush1.msra.mxu0 0.0
    %4240 = vmatprep.subr.mxu0 0.0
    %4241 = vmatpush1.msra.mxu0 0.0
    %4242 = vmatprep.subr.mxu0 0.0
    %4243 = vmatpush1.msra.mxu0 0.0
    %4244 = vmatprep.subr.mxu0 0.0
    %4245 = vmatpush1.msra.mxu0 0.0
    %4246 = vmatprep.subr.mxu0 0.0
    %4247 = vmatpush1.msra.mxu0 0.0
    %4248 = vmatprep.subr.mxu0 0.0
    %4249 = vmatpush1.msra.mxu0 0.0
    %4250 = vmatprep.subr.mxu0 0.0
    %4251 = vmatpush1.msra.mxu0 0.0
    %4252 = vmatprep.subr.mxu0 0.0
    %4253 = vmatpush1.msra.mxu0 0.0
    %4254 = vmatprep.subr.mxu0 0.0
    %4255 = vmatpush1.msra.mxu0 0.0
    %4256 = vmatprep.subr.mxu0 0.0
    %4257 = vmatpush1.msra.mxu0 0.0
    %4258 = vmatprep.subr.mxu0 0.0
    %4259 = vmatpush1.msra.mxu0 0.0
    %4260 = vmatprep.subr.mxu0 0.0
    %4261 = vmatpush1.msra.mxu0 0.0
    %4262 = vmatprep.subr.mxu0 0.0
    %4263 = vmatpush1.msra.mxu0 0.0
    %4264 = vmatprep.subr.mxu0 0.0
    %4265 = vmatpush1.msra.mxu0 0.0
    %4266 = vmatprep.subr.mxu0 0.0
    %4267 = vmatpush1.msra.mxu0 0.0
    %4268 = vmatprep.mubr.f32.mxu0 0.0
    %4269 = vmatmul.mubr.f32.gmra.mrb[0].mxu0 %v4202
    %v4270 = vpop.f32.mrb[0].mxu0
    %v4271 = vadd.f32 0.0, %v4270
    %v4272 = vpop.f32.mrb[0].mxu0
    %4273 = vdwg.mxu0
    %v4274 = vadd.f32 %v4194, %v4271
    %v4275 = vld [vmem:[%s7 + $0x60] sm:$0xff]
    %v4276 = vld [vmem:[%s7 + $0x68] sm:$0xff]
    %v4277 = vld [vmem:[%s7 + $0x70] sm:$0xff]
    %v4278 = vld [vmem:[%s7 + $0x78] sm:$0xff]
    %4280 = vrot.lane.b32.xlu0 %v3794, 96
    %v4281 = vpop.permute.xlu0 %4280
    %v4282 = vsel %vm57, %v4281, 0
    %4284 = vmatprep.subr.mxu0 0.0
    %4285 = vmatpush1.msra.mxu0 %v4275
    %4286 = vmatprep.subr.mxu0 0.0
    %4287 = vmatpush1.msra.mxu0 %v4276
    %4288 = vmatprep.subr.mxu0 0.0
    %4289 = vmatpush1.msra.mxu0 %v4277
    %4290 = vmatprep.subr.mxu0 0.0
    %4291 = vmatpush1.msra.mxu0 %v4278
    %4292 = vmatprep.subr.mxu0 0.0
    %4293 = vmatpush1.msra.mxu0 0.0
    %4294 = vmatprep.subr.mxu0 0.0
    %4295 = vmatpush1.msra.mxu0 0.0
    %4296 = vmatprep.subr.mxu0 0.0
    %4297 = vmatpush1.msra.mxu0 0.0
    %4298 = vmatprep.subr.mxu0 0.0
    %4299 = vmatpush1.msra.mxu0 0.0
    %4300 = vmatprep.subr.mxu0 0.0
    %4301 = vmatpush1.msra.mxu0 0.0
    %4302 = vmatprep.subr.mxu0 0.0
    %4303 = vmatpush1.msra.mxu0 0.0
    %4304 = vmatprep.subr.mxu0 0.0
    %4305 = vmatpush1.msra.mxu0 0.0
    %4306 = vmatprep.subr.mxu0 0.0
    %4307 = vmatpush1.msra.mxu0 0.0
    %4308 = vmatprep.subr.mxu0 0.0
    %4309 = vmatpush1.msra.mxu0 0.0
    %4310 = vmatprep.subr.mxu0 0.0
    %4311 = vmatpush1.msra.mxu0 0.0
    %4312 = vmatprep.subr.mxu0 0.0
    %4313 = vmatpush1.msra.mxu0 0.0
    %4314 = vmatprep.subr.mxu0 0.0
    %4315 = vmatpush1.msra.mxu0 0.0
    %4316 = vmatprep.subr.mxu0 0.0
    %4317 = vmatpush1.msra.mxu0 0.0
    %4318 = vmatprep.subr.mxu0 0.0
    %4319 = vmatpush1.msra.mxu0 0.0
    %4320 = vmatprep.subr.mxu0 0.0
    %4321 = vmatpush1.msra.mxu0 0.0
    %4322 = vmatprep.subr.mxu0 0.0
    %4323 = vmatpush1.msra.mxu0 0.0
    %4324 = vmatprep.subr.mxu0 0.0
    %4325 = vmatpush1.msra.mxu0 0.0
    %4326 = vmatprep.subr.mxu0 0.0
    %4327 = vmatpush1.msra.mxu0 0.0
    %4328 = vmatprep.subr.mxu0 0.0
    %4329 = vmatpush1.msra.mxu0 0.0
    %4330 = vmatprep.subr.mxu0 0.0
    %4331 = vmatpush1.msra.mxu0 0.0
    %4332 = vmatprep.subr.mxu0 0.0
    %4333 = vmatpush1.msra.mxu0 0.0
    %4334 = vmatprep.subr.mxu0 0.0
    %4335 = vmatpush1.msra.mxu0 0.0
    %4336 = vmatprep.subr.mxu0 0.0
    %4337 = vmatpush1.msra.mxu0 0.0
    %4338 = vmatprep.subr.mxu0 0.0
    %4339 = vmatpush1.msra.mxu0 0.0
    %4340 = vmatprep.subr.mxu0 0.0
    %4341 = vmatpush1.msra.mxu0 0.0
    %4342 = vmatprep.subr.mxu0 0.0
    %4343 = vmatpush1.msra.mxu0 0.0
    %4344 = vmatprep.subr.mxu0 0.0
    %4345 = vmatpush1.msra.mxu0 0.0
    %4346 = vmatprep.subr.mxu0 0.0
    %4347 = vmatpush1.msra.mxu0 0.0
    %4348 = vmatprep.mubr.f32.mxu0 0.0
    %4349 = vmatmul.mubr.f32.gmra.mrb[0].mxu0 %v4282
    %v4350 = vpop.f32.mrb[0].mxu0
    %v4351 = vadd.f32 0.0, %v4350
    %v4352 = vpop.f32.mrb[0].mxu0
    %4353 = vdwg.mxu0
    %v4354 = vadd.f32 %v4274, %v4351
    %v4355 = vld [vmem:[%s7 + $0xe0] sm:$0xff]
    %v4356 = vld [vmem:[%s7 + $0xe8] sm:$0xff]
    %v4357 = vld [vmem:[%s7 + $0xf0] sm:$0xff]
    %v4358 = vld [vmem:[%s7 + $0xf8] sm:$0xff]
    %v4359 = vrot.slane %v3794, 2
    %4360 = vrot.lane.b32.xlu0 %v4359, 96
    %v4361 = vpop.permute.xlu0 %4360
    %v4362 = vsel %vm57, %v4361, 0
    %4364 = vmatprep.subr.mxu0 0.0
    %4365 = vmatpush1.msra.mxu0 %v4355
    %4366 = vmatprep.subr.mxu0 0.0
    %4367 = vmatpush1.msra.mxu0 %v4356
    %4368 = vmatprep.subr.mxu0 0.0
    %4369 = vmatpush1.msra.mxu0 %v4357
    %4370 = vmatprep.subr.mxu0 0.0
    %4371 = vmatpush1.msra.mxu0 %v4358
    %4372 = vmatprep.subr.mxu0 0.0
    %4373 = vmatpush1.msra.mxu0 0.0
    %4374 = vmatprep.subr.mxu0 0.0
    %4375 = vmatpush1.msra.mxu0 0.0
    %4376 = vmatprep.subr.mxu0 0.0
    %4377 = vmatpush1.msra.mxu0 0.0
    %4378 = vmatprep.subr.mxu0 0.0
    %4379 = vmatpush1.msra.mxu0 0.0
    %4380 = vmatprep.subr.mxu0 0.0
    %4381 = vmatpush1.msra.mxu0 0.0
    %4382 = vmatprep.subr.mxu0 0.0
    %4383 = vmatpush1.msra.mxu0 0.0
    %4384 = vmatprep.subr.mxu0 0.0
    %4385 = vmatpush1.msra.mxu0 0.0
    %4386 = vmatprep.subr.mxu0 0.0
    %4387 = vmatpush1.msra.mxu0 0.0
    %4388 = vmatprep.subr.mxu0 0.0
    %4389 = vmatpush1.msra.mxu0 0.0
    %4390 = vmatprep.subr.mxu0 0.0
    %4391 = vmatpush1.msra.mxu0 0.0
    %4392 = vmatprep.subr.mxu0 0.0
    %4393 = vmatpush1.msra.mxu0 0.0
    %4394 = vmatprep.subr.mxu0 0.0
    %4395 = vmatpush1.msra.mxu0 0.0
    %4396 = vmatprep.subr.mxu0 0.0
    %4397 = vmatpush1.msra.mxu0 0.0
    %4398 = vmatprep.subr.mxu0 0.0
    %4399 = vmatpush1.msra.mxu0 0.0
    %4400 = vmatprep.subr.mxu0 0.0
    %4401 = vmatpush1.msra.mxu0 0.0
    %4402 = vmatprep.subr.mxu0 0.0
    %4403 = vmatpush1.msra.mxu0 0.0
    %4404 = vmatprep.subr.mxu0 0.0
    %4405 = vmatpush1.msra.mxu0 0.0
    %4406 = vmatprep.subr.mxu0 0.0
    %4407 = vmatpush1.msra.mxu0 0.0
    %4408 = vmatprep.subr.mxu0 0.0
    %4409 = vmatpush1.msra.mxu0 0.0
    %4410 = vmatprep.subr.mxu0 0.0
    %4411 = vmatpush1.msra.mxu0 0.0
    %4412 = vmatprep.subr.mxu0 0.0
    %4413 = vmatpush1.msra.mxu0 0.0
    %4414 = vmatprep.subr.mxu0 0.0
    %4415 = vmatpush1.msra.mxu0 0.0
    %4416 = vmatprep.subr.mxu0 0.0
    %4417 = vmatpush1.msra.mxu0 0.0
    %4418 = vmatprep.subr.mxu0 0.0
    %4419 = vmatpush1.msra.mxu0 0.0
    %4420 = vmatprep.subr.mxu0 0.0
    %4421 = vmatpush1.msra.mxu0 0.0
    %4422 = vmatprep.subr.mxu0 0.0
    %4423 = vmatpush1.msra.mxu0 0.0
    %4424 = vmatprep.subr.mxu0 0.0
    %4425 = vmatpush1.msra.mxu0 0.0
    %4426 = vmatprep.subr.mxu0 0.0
    %4427 = vmatpush1.msra.mxu0 0.0
    %4428 = vmatprep.mubr.f32.mxu0 0.0
    %4429 = vmatmul.mubr.f32.gmra.mrb[0].mxu0 %v4362
    %v4430 = vpop.f32.mrb[0].mxu0
    %v4431 = vadd.f32 0.0, %v4430
    %v4432 = vpop.f32.mrb[0].mxu0
    %4433 = vdwg.mxu0
    %v4434 = vadd.f32 %v4354, %v4431
    %v4435 = vld [vmem:[%s8] sm:$0x1]
    %v4437 = vlaneseq
    %v4438 = vshrl.u32 %v4437, 7
    %v4439 = vsub.s32 0, %v4438
    %v4440 = vrot.slane %v4435, %v4439
    %v4442 = vadd.f32 %v4434, %v4440
    %v4443 = vmax.f32 %v4442, 0.0
    %vm4444 = vcmask 254976
    %4445 = vst.msk [vmem:[#allocation4] sm:$0x3] %vm4444, %v4443
    // Predicated region
    $region38: #{lstm_module_forward.1} parent=1 // pred_check
      _
    $region39: #{lstm_module_forward.1} parent=1 // pred_check_branch
      %4447 = sbr.rel (0) target = $region41
    $region40: #{lstm_module_forward.1} parent=1 // pred_region
      %s4449 = ssub.s32 32, 32
      %4450 = vsyncadd [#allocation5], %s4449
      %s4452 = sshll.u32 [#allocation4], 4
      %s4453 = int_to_ptr.vmem [resolvable:$true] %s4452
      %4455 = dma.vmem_to_hbm [thread:$0]  %s4453, 32, %s9, [#allocation5]
    $region41: #{lstm_module_forward.1} parent=1 // pred_fallthru
      _
    // Predicated region
    $region42: #{lstm_module_forward.1} parent=1 // pred_check
      _
    $region43: #{lstm_module_forward.1} parent=1 // pred_check_branch
      %4457 = sbr.rel (0) target = $region45
    $region44: #{lstm_module_forward.1} parent=1 // pred_region
      %4458 = dma.done [#allocation5], 32
    $region45: #{lstm_module_forward.1} parent=1 // pred_fallthru
      _
    %4459 = vsyncpa [#allocation5], 1

</llo_original>
